<compile_context>
chip_gen: v7x
topology: tpu7x:2x2x1
jax: 0.10.0
libtpu: 0.0.40
codegen_flags: <defaults>
</compile_context>

<pallas_src>
import functools
import math

import jax
import jax.numpy as jnp
from jax.experimental import pallas as pl
from jax.experimental.pallas import tpu as pltpu


def _out_hw(size, k, s, p):
    return (size + 2 * p - k) // s + 1


def _zero_border(ref, pad):
    """Zero only the `pad`-wide halo of an (H, W, C) VMEM scratch ref."""
    h, w, c = ref.shape
    z_row = jnp.zeros((pad, w, c), ref.dtype)
    z_col = jnp.zeros((h, pad, c), ref.dtype)
    ref[0:pad, :, :] = z_row
    ref[h - pad:h, :, :] = z_row
    ref[:, 0:pad, :] = z_col
    ref[:, w - pad:w, :] = z_col


def _fused_prior_kernel(x_ref, w1_ref, w2_ref, w3_ref, b_ref, o_ref,
                        xpad_ref, h1pad_ref, h2pad_ref, *, dims):
    """Whole Analysis_prior_net forward for one batch element.

    x_ref   : (1, H, W, Cin)    raw NHWC input (abs applied in-kernel)
    w1_ref  : (9*Cin,  C)       conv1 weights, rows ordered (kh, kw, cin)
    w2_ref  : (25*C,   C)       conv2 weights
    w3_ref  : (25*C,   C)       conv3 weights
    b_ref   : (3, C)            biases of the 3 layers (f32)
    o_ref   : (1, 1, H3*W3*C)   final activations, lane-dense flat row
    xpad_ref  : VMEM (H+2,  W+2,  Cin) |x| zero-padded by 1 (layer-1 input)
    h1pad_ref : VMEM (H1+4, W1+4, C)   layer-1 output zero-padded by 2
    h2pad_ref : VMEM (H2+4, W2+4, C)   layer-2 output zero-padded by 2
    """
    H, W, H2, W2, H3, W3 = dims
    H1, W1 = H, W                      # 3x3, stride 1, pad 1 preserves H, W
    cin = x_ref.shape[-1]
    c = b_ref.shape[-1]
    cdt = w1_ref.dtype                 # MXU compute dtype (bf16 fast path)

    # ---------------- |x| + zero-pad(1) entirely in VMEM ---------------------
    _zero_border(xpad_ref, 1)                          # halo only, per step
    xpad_ref[1:1 + H, 1:1 + W, :] = jnp.abs(x_ref[0])

    # ---------------- layer 1: conv 3x3, stride 1, pad 1 (+ bias, ReLU) ------
    taps = []
    for kh in range(3):
        for kw in range(3):
            taps.append(xpad_ref[kh:kh + H1, kw:kw + W1, :])          # (H1,W1,Cin)
    p1 = jnp.concatenate(taps, axis=-1).reshape(H1 * W1, 9 * cin).astype(cdt)
    a1 = jnp.dot(p1, w1_ref[...], preferred_element_type=jnp.float32)
    a1 = jnp.maximum(a1 + b_ref[0:1, :], 0.0)                         # (P1, C)

    # Padded layer-1 activation stays resident in VMEM (no HBM round-trip).
    _zero_border(h1pad_ref, 2)
    h1pad_ref[2:2 + H1, 2:2 + W1, :] = a1.reshape(H1, W1, c)

    # ---------------- layer 2: conv 5x5, stride 2, pad 2 (+ bias, ReLU) ------
    taps = []
    for kh in range(5):
        for kw in range(5):
            taps.append(h1pad_ref[pl.ds(kh, H2, stride=2),
                                  pl.ds(kw, W2, stride=2), :])        # (H2,W2,C)
    p2 = jnp.concatenate(taps, axis=-1).reshape(H2 * W2, 25 * c).astype(cdt)
    a2 = jnp.dot(p2, w2_ref[...], preferred_element_type=jnp.float32)
    a2 = jnp.maximum(a2 + b_ref[1:2, :], 0.0)                         # (P2, C)

    _zero_border(h2pad_ref, 2)
    h2pad_ref[2:2 + H2, 2:2 + W2, :] = a2.reshape(H2, W2, c)

    # ---------------- layer 3: conv 5x5, stride 2, pad 2 (no ReLU) -----------
    taps = []
    for kh in range(5):
        for kw in range(5):
            taps.append(h2pad_ref[pl.ds(kh, H3, stride=2),
                                  pl.ds(kw, W3, stride=2), :])        # (H3,W3,C)
    p3 = jnp.concatenate(taps, axis=-1).reshape(H3 * W3, 25 * c).astype(cdt)
    a3 = jnp.dot(p3, w3_ref[...], preferred_element_type=jnp.float32) + b_ref[2:3, :]

    # Lane-dense store: flatten (P3, C) -> (1, P3*C) with a lane-axis concat
    # (same proven op class as the tap concats; no minor-dim reshape).
    flat = jnp.concatenate([a3[i:i + 1, :] for i in range(H3 * W3)], axis=1)
    o_ref[0] = flat.astype(o_ref.dtype)


def _oihw_to_mat(w):
    """PyTorch OIHW -> (KH*KW*Cin, Cout) so rows match the (kh, kw, cin) tap order."""
    cout, cin, kh, kw = w.shape
    return jnp.transpose(w, (2, 3, 1, 0)).reshape(kh * kw * cin, cout)


# ----------------------------- forward pass ---------------------------------

def analysis_prior_net(params, x_nchw, *, use_bf16=True):
    n, cin, h, w = x_nchw.shape
    c = params["b1"].shape[0]

    h2o, w2o = _out_hw(h, 5, 2, 2), _out_hw(w, 5, 2, 2)
    h3o, w3o = _out_hw(h2o, 5, 2, 2), _out_hw(w2o, 5, 2, 2)

    cdt = jnp.bfloat16 if use_bf16 else jnp.float32

    # Only the NCHW->NHWC relayout stays outside the kernel (one fused XLA copy).
    # abs() and zero padding now happen inside the kernel in VMEM.
    # TODO(synk): fold this transpose in-kernel too once an efficient
    #             (Cin, H, W) -> (H, W, Cin) relayout is viable for tiny Cin.
    x_nhwc = jnp.transpose(x_nchw, (0, 2, 3, 1))

    w1m = _oihw_to_mat(params["w1"]).astype(cdt)                      # (9*Cin, C)
    w2m = _oihw_to_mat(params["w2"]).astype(cdt)                      # (25*C, C)
    w3m = _oihw_to_mat(params["w3"]).astype(cdt)                      # (25*C, C)
    bstack = jnp.stack([params["b1"], params["b2"], params["b3"]], axis=0)  # (3, C)

    kernel = functools.partial(_fused_prior_kernel,
                               dims=(h, w, h2o, w2o, h3o, w3o))

    # Advisory cost estimate for XLA's scheduler around the custom call.
    flops = 2 * n * (h * w * 9 * cin * c
                     + h2o * w2o * 25 * c * c
                     + h3o * w3o * 25 * c * c)
    wt_itemsize = 2 if use_bf16 else 4
    bytes_accessed = (n * cin * h * w * 4
                      + (9 * cin * c + 2 * 25 * c * c) * wt_itemsize
                      + 3 * c * 4
                      + n * h3o * w3o * c * 4)

    out = pl.pallas_call(
        kernel,
        out_shape=jax.ShapeDtypeStruct((n, 1, h3o * w3o * c), jnp.float32),
        grid=(n,),
        in_specs=[
            pl.BlockSpec((1, h, w, cin), lambda i: (i, 0, 0, 0)),
            pl.BlockSpec((9 * cin, c), lambda i: (0, 0)),
            pl.BlockSpec((25 * c, c), lambda i: (0, 0)),
            pl.BlockSpec((25 * c, c), lambda i: (0, 0)),
            pl.BlockSpec((3, c), lambda i: (0, 0)),
        ],
        out_specs=pl.BlockSpec((1, 1, h3o * w3o * c), lambda i: (i, 0, 0)),
        scratch_shapes=[
            pltpu.VMEM((h + 2, w + 2, cin), jnp.float32),    # padded |x|
            pltpu.VMEM((h + 4, w + 4, c), jnp.float32),      # padded layer-1 act
            pltpu.VMEM((h2o + 4, w2o + 4, c), jnp.float32),  # padded layer-2 act
        ],
        compiler_params=pltpu.CompilerParams(
            dimension_semantics=("parallel",),
            # Explicit VMEM budget (item 7). Tiny at these test shapes; for
            # production channel counts add spatial/P-row tiling instead of
            # just raising this limit.
            vmem_limit_bytes=32 * 1024 * 1024,
        ),
        cost_estimate=pl.CostEstimate(flops=flops, transcendentals=0,
                                      bytes_accessed=bytes_accessed),
    )(x_nhwc, w1m, w2m, w3m, bstack)

    out = out.reshape(n, h3o, w3o, c)
    return jnp.transpose(out, (0, 3, 1, 2))                   # NHWC -> NCHW


# ---------------- parameter setup (deterministic, synthetic) ----------------

def _xavier_normal(key, shape_oihw, gain):
    cout, cin, kh, kw = shape_oihw
    fan_in = cin * kh * kw
    fan_out = cout * kh * kw
    std = gain * math.sqrt(2.0 / (fan_in + fan_out))
    return std * jax.random.normal(key, shape_oihw, dtype=jnp.float32)


def init_params(key, in_channel, out_channel):
    k1, k2, k3 = jax.random.split(key, 3)
    g1 = math.sqrt(2 * (in_channel + out_channel) / (2 * in_channel))
    return dict(
        w1=_xavier_normal(k1, (out_channel, in_channel, 3, 3), g1),
        b1=jnp.full((out_channel,), 0.01, jnp.float32),
        w2=_xavier_normal(k2, (out_channel, out_channel, 5, 5), math.sqrt(2.0)),
        b2=jnp.full((out_channel,), 0.01, jnp.float32),
        w3=_xavier_normal(k3, (out_channel, out_channel, 5, 5), math.sqrt(2.0)),
        b3=jnp.full((out_channel,), 0.01, jnp.float32),
    )


# ------------------------------- reference ----------------------------------

def reference(params, x_nchw):
    def conv(x, w, b, stride, pad):
        y = jax.lax.conv_general_dilated(
            x, w, (stride, stride), ((pad, pad), (pad, pad)),
            dimension_numbers=("NCHW", "OIHW", "NCHW"),
            precision=jax.lax.Precision.HIGHEST)
        return y + b.reshape(1, -1, 1, 1)
    x = jnp.abs(x_nchw)
    x = jax.nn.relu(conv(x, params["w1"], params["b1"], 1, 1))
    x = jax.nn.relu(conv(x, params["w2"], params["b2"], 2, 2))
    return conv(x, params["w3"], params["b3"], 2, 2)


if __name__ == "__main__":
    key = jax.random.PRNGKey(0)
    kx, kp = jax.random.split(key)
    in_channel, out_channel = 4, 8
    x = jax.random.normal(kx, (2, in_channel, 16, 16), dtype=jnp.float32)
    params = init_params(kp, in_channel, out_channel)

    ref = jax.block_until_ready(reference(params, x))

    # 1) Strict f32 check (tightened per the correctness review): both the
    #    kernel's f32 MXU path and the HIGHEST-precision reference are true-f32
    #    accurate, so a tight tolerance catches any layout/tap-ordering bug.
    fwd_f32 = jax.jit(functools.partial(analysis_prior_net, use_bf16=False))
    out_f32 = jax.block_until_ready(fwd_f32(params, x))
    assert out_f32.shape == (2, out_channel, 4, 4), out_f32.shape
    if not jnp.allclose(out_f32, ref, atol=1e-4, rtol=1e-4):
        raise AssertionError(
            "f32 path mismatch vs reference, max abs err="
            f"{float(jnp.max(jnp.abs(out_f32 - ref)))}")

    # 2) bf16 MXU path (production default): tolerance sized for three layers
    #    of bf16 input rounding with f32 accumulation.
    fwd_bf16 = jax.jit(functools.partial(analysis_prior_net, use_bf16=True))
    out_bf16 = jax.block_until_ready(fwd_bf16(params, x))
    assert out_bf16.shape == (2, out_channel, 4, 4), out_bf16.shape
    if not jnp.allclose(out_bf16, ref, atol=2e-2, rtol=2e-2):
        raise AssertionError(
            "bf16 path mismatch vs reference, max abs err="
            f"{float(jnp.max(jnp.abs(out_bf16 - ref)))}")

    print("KERNEL_OK")
</pallas_src>

<mosaic_0001>
module attributes {stable_mosaic.version = 11 : i64} {
  func.func @_fused_prior_kernel(%arg0: i32, %arg1: memref<1x16x16x4xf32, #tpu.memory_space<vmem>>, %arg2: memref<36x8xf32, #tpu.memory_space<vmem>>, %arg3: memref<200x8xf32, #tpu.memory_space<vmem>>, %arg4: memref<200x8xf32, #tpu.memory_space<vmem>>, %arg5: memref<3x8xf32, #tpu.memory_space<vmem>>, %arg6: memref<1x1x128xf32, #tpu.memory_space<vmem>>, %arg7: memref<18x18x4xf32, #tpu.memory_space<vmem>>, %arg8: memref<20x20x8xf32, #tpu.memory_space<vmem>>, %arg9: memref<12x12x8xf32, #tpu.memory_space<vmem>>) attributes {dimension_semantics = [#tpu.dimension_semantics<parallel>], iteration_bounds = array<i64: 2>, scalar_prefetch = 0 : i64, scratch_operands = 3 : i64, tpu.core_type = #tpu.core_type<tc>, window_params = [{transform_indices = @transform_0, window_bounds = array<i64: 1, 16, 16, 4>}, {pipeline_mode = #tpu.pipeline_mode<synchronous>, transform_indices = @transform_1, window_bounds = array<i64: 36, 8>}, {pipeline_mode = #tpu.pipeline_mode<synchronous>, transform_indices = @transform_2, window_bounds = array<i64: 200, 8>}, {pipeline_mode = #tpu.pipeline_mode<synchronous>, transform_indices = @transform_3, window_bounds = array<i64: 200, 8>}, {pipeline_mode = #tpu.pipeline_mode<synchronous>, transform_indices = @transform_4, window_bounds = array<i64: 3, 8>}, {transform_indices = @transform_5, window_bounds = array<i64: 1, 1, 128>}]} {
    %cst = arith.constant 0.000000e+00 : f32
    %0 = vector.broadcast %cst : f32 to vector<1x18x4xf32>
    %cst_0 = arith.constant 0.000000e+00 : f32
    %1 = vector.broadcast %cst_0 : f32 to vector<18x1x4xf32>
    %c0 = arith.constant 0 : index
    %c0_1 = arith.constant 0 : index
    %c0_2 = arith.constant 0 : index
    %2 = vector.load %arg7[%c0, %c0_1, %c0_2] : memref<18x18x4xf32, #tpu.memory_space<vmem>>, vector<1x18x4xf32>
    tpu.vector_store %arg7[%c0, %c0_1, %c0_2], %0 {strides = array<i32>} : memref<18x18x4xf32, #tpu.memory_space<vmem>>, vector<1x18x4xf32>,
    %c17 = arith.constant 17 : index
    %c0_3 = arith.constant 0 : index
    %c0_4 = arith.constant 0 : index
    %3 = vector.load %arg7[%c17, %c0_3, %c0_4] : memref<18x18x4xf32, #tpu.memory_space<vmem>>, vector<1x18x4xf32>
    tpu.vector_store %arg7[%c17, %c0_3, %c0_4], %0 {strides = array<i32>} : memref<18x18x4xf32, #tpu.memory_space<vmem>>, vector<1x18x4xf32>,
    %c0_5 = arith.constant 0 : index
    %c0_6 = arith.constant 0 : index
    %c0_7 = arith.constant 0 : index
    %4 = vector.load %arg7[%c0_5, %c0_6, %c0_7] : memref<18x18x4xf32, #tpu.memory_space<vmem>>, vector<18x1x4xf32>
    tpu.vector_store %arg7[%c0_5, %c0_6, %c0_7], %1 {strides = array<i32>} : memref<18x18x4xf32, #tpu.memory_space<vmem>>, vector<18x1x4xf32>,
    %c0_8 = arith.constant 0 : index
    %c17_9 = arith.constant 17 : index
    %c0_10 = arith.constant 0 : index
    %5 = vector.load %arg7[%c0_8, %c17_9, %c0_10] : memref<18x18x4xf32, #tpu.memory_space<vmem>>, vector<18x1x4xf32>
    tpu.vector_store %arg7[%c0_8, %c17_9, %c0_10], %1 {strides = array<i32>} : memref<18x18x4xf32, #tpu.memory_space<vmem>>, vector<18x1x4xf32>,
    %c0_11 = arith.constant 0 : index
    %c0_12 = arith.constant 0 : index
    %c0_13 = arith.constant 0 : index
    %c0_14 = arith.constant 0 : index
    %6 = vector.load %arg1[%c0_11, %c0_12, %c0_13, %c0_14] : memref<1x16x16x4xf32, #tpu.memory_space<vmem>>, vector<1x16x16x4xf32>
    %7 = vector.shape_cast %6 : vector<1x16x16x4xf32> to vector<16x16x4xf32>
    %8 = math.absf %7 : vector<16x16x4xf32>
    %c1 = arith.constant 1 : index
    %c1_15 = arith.constant 1 : index
    %c0_16 = arith.constant 0 : index
    %9 = vector.load %arg7[%c1, %c1_15, %c0_16] : memref<18x18x4xf32, #tpu.memory_space<vmem>>, vector<16x16x4xf32>
    tpu.vector_store %arg7[%c1, %c1_15, %c0_16], %8 {strides = array<i32>} : memref<18x18x4xf32, #tpu.memory_space<vmem>>, vector<16x16x4xf32>,
    %c0_17 = arith.constant 0 : index
    %c0_18 = arith.constant 0 : index
    %c0_19 = arith.constant 0 : index
    %10 = vector.load %arg7[%c0_17, %c0_18, %c0_19] : memref<18x18x4xf32, #tpu.memory_space<vmem>>, vector<16x16x4xf32>
    %c0_20 = arith.constant 0 : index
    %c1_21 = arith.constant 1 : index
    %c0_22 = arith.constant 0 : index
    %11 = vector.load %arg7[%c0_20, %c1_21, %c0_22] : memref<18x18x4xf32, #tpu.memory_space<vmem>>, vector<16x16x4xf32>
    %c0_23 = arith.constant 0 : index
    %c2 = arith.constant 2 : index
    %c0_24 = arith.constant 0 : index
    %12 = vector.load %arg7[%c0_23, %c2, %c0_24] : memref<18x18x4xf32, #tpu.memory_space<vmem>>, vector<16x16x4xf32>
    %c1_25 = arith.constant 1 : index
    %c0_26 = arith.constant 0 : index
    %c0_27 = arith.constant 0 : index
    %13 = vector.load %arg7[%c1_25, %c0_26, %c0_27] : memref<18x18x4xf32, #tpu.memory_space<vmem>>, vector<16x16x4xf32>
    %c1_28 = arith.constant 1 : index
    %c1_29 = arith.constant 1 : index
    %c0_30 = arith.constant 0 : index
    %14 = vector.load %arg7[%c1_28, %c1_29, %c0_30] : memref<18x18x4xf32, #tpu.memory_space<vmem>>, vector<16x16x4xf32>
    %c1_31 = arith.constant 1 : index
    %c2_32 = arith.constant 2 : index
    %c0_33 = arith.constant 0 : index
    %15 = vector.load %arg7[%c1_31, %c2_32, %c0_33] : memref<18x18x4xf32, #tpu.memory_space<vmem>>, vector<16x16x4xf32>
    %c2_34 = arith.constant 2 : index
    %c0_35 = arith.constant 0 : index
    %c0_36 = arith.constant 0 : index
    %16 = vector.load %arg7[%c2_34, %c0_35, %c0_36] : memref<18x18x4xf32, #tpu.memory_space<vmem>>, vector<16x16x4xf32>
    %c2_37 = arith.constant 2 : index
    %c1_38 = arith.constant 1 : index
    %c0_39 = arith.constant 0 : index
    %17 = vector.load %arg7[%c2_37, %c1_38, %c0_39] : memref<18x18x4xf32, #tpu.memory_space<vmem>>, vector<16x16x4xf32>
    %c2_40 = arith.constant 2 : index
    %c2_41 = arith.constant 2 : index
    %c0_42 = arith.constant 0 : index
    %18 = vector.load %arg7[%c2_40, %c2_41, %c0_42] : memref<18x18x4xf32, #tpu.memory_space<vmem>>, vector<16x16x4xf32>
    %19 = tpu.concatenate %10, %11, %12, %13, %14, %15, %16, %17, %18 in 2 : vector<16x16x4xf32>, vector<16x16x4xf32>, vector<16x16x4xf32>, vector<16x16x4xf32>, vector<16x16x4xf32>, vector<16x16x4xf32>, vector<16x16x4xf32>, vector<16x16x4xf32>, vector<16x16x4xf32> -> vector<16x16x36xf32>
    %20 = vector.shape_cast %19 : vector<16x16x36xf32> to vector<256x36xf32>
    %c0_43 = arith.constant 0 : index
    %c0_44 = arith.constant 0 : index
    %21 = vector.load %arg2[%c0_43, %c0_44] : memref<36x8xf32, #tpu.memory_space<vmem>>, vector<36x8xf32>
    %cst_45 = arith.constant dense<0.000000e+00> : vector<256x8xf32>
    %22 = tpu.matmul %20, %21, %cst_45 {dimension_numbers = #tpu.dot_dimension_numbers<[1], [0], [0], [1], [0, 0, 1, 1], [], []>} : vector<256x36xf32>, vector<36x8xf32>, vector<256x8xf32> -> vector<256x8xf32>
    %c0_46 = arith.constant 0 : index
    %c0_47 = arith.constant 0 : index
    %23 = vector.load %arg5[%c0_46, %c0_47] : memref<3x8xf32, #tpu.memory_space<vmem>>, vector<1x8xf32>
    %24 = vector.broadcast %23 : vector<1x8xf32> to vector<256x8xf32>
    %25 = arith.addf %22, %24 : vector<256x8xf32>
    %cst_48 = arith.constant 0.000000e+00 : f32
    %26 = vector.broadcast %cst_48 : f32 to vector<256x8xf32>
    %27 = arith.maximumf %25, %26 : vector<256x8xf32>
    %cst_49 = arith.constant 0.000000e+00 : f32
    %28 = vector.broadcast %cst_49 : f32 to vector<2x20x8xf32>
    %cst_50 = arith.constant 0.000000e+00 : f32
    %29 = vector.broadcast %cst_50 : f32 to vector<20x2x8xf32>
    %c0_51 = arith.constant 0 : index
    %c0_52 = arith.constant 0 : index
    %c0_53 = arith.constant 0 : index
    %30 = vector.load %arg8[%c0_51, %c0_52, %c0_53] : memref<20x20x8xf32, #tpu.memory_space<vmem>>, vector<2x20x8xf32>
    tpu.vector_store %arg8[%c0_51, %c0_52, %c0_53], %28 {strides = array<i32>} : memref<20x20x8xf32, #tpu.memory_space<vmem>>, vector<2x20x8xf32>,
    %c18 = arith.constant 18 : index
    %c0_54 = arith.constant 0 : index
    %c0_55 = arith.constant 0 : index
    %31 = vector.load %arg8[%c18, %c0_54, %c0_55] : memref<20x20x8xf32, #tpu.memory_space<vmem>>, vector<2x20x8xf32>
    tpu.vector_store %arg8[%c18, %c0_54, %c0_55], %28 {strides = array<i32>} : memref<20x20x8xf32, #tpu.memory_space<vmem>>, vector<2x20x8xf32>,
    %c0_56 = arith.constant 0 : index
    %c0_57 = arith.constant 0 : index
    %c0_58 = arith.constant 0 : index
    %32 = vector.load %arg8[%c0_56, %c0_57, %c0_58] : memref<20x20x8xf32, #tpu.memory_space<vmem>>, vector<20x2x8xf32>
    tpu.vector_store %arg8[%c0_56, %c0_57, %c0_58], %29 {strides = array<i32>} : memref<20x20x8xf32, #tpu.memory_space<vmem>>, vector<20x2x8xf32>,
    %c0_59 = arith.constant 0 : index
    %c18_60 = arith.constant 18 : index
    %c0_61 = arith.constant 0 : index
    %33 = vector.load %arg8[%c0_59, %c18_60, %c0_61] : memref<20x20x8xf32, #tpu.memory_space<vmem>>, vector<20x2x8xf32>
    tpu.vector_store %arg8[%c0_59, %c18_60, %c0_61], %29 {strides = array<i32>} : memref<20x20x8xf32, #tpu.memory_space<vmem>>, vector<20x2x8xf32>,
    %34 = vector.shape_cast %27 : vector<256x8xf32> to vector<16x16x8xf32>
    %c2_62 = arith.constant 2 : index
    %c2_63 = arith.constant 2 : index
    %c0_64 = arith.constant 0 : index
    %35 = vector.load %arg8[%c2_62, %c2_63, %c0_64] : memref<20x20x8xf32, #tpu.memory_space<vmem>>, vector<16x16x8xf32>
    tpu.vector_store %arg8[%c2_62, %c2_63, %c0_64], %34 {strides = array<i32>} : memref<20x20x8xf32, #tpu.memory_space<vmem>>, vector<16x16x8xf32>,
    %c0_65 = arith.constant 0 : index
    %c0_66 = arith.constant 0 : index
    %c0_67 = arith.constant 0 : index
    %36 = tpu.strided_load %arg8[%c0_65, %c0_66, %c0_67] {strides = array<i32: 2, 2, 1>} : memref<20x20x8xf32, #tpu.memory_space<vmem>>, vector<8x8x8xf32>
    %c0_68 = arith.constant 0 : index
    %c1_69 = arith.constant 1 : index
    %c0_70 = arith.constant 0 : index
    %37 = tpu.strided_load %arg8[%c0_68, %c1_69, %c0_70] {strides = array<i32: 2, 2, 1>} : memref<20x20x8xf32, #tpu.memory_space<vmem>>, vector<8x8x8xf32>
    %c0_71 = arith.constant 0 : index
    %c2_72 = arith.constant 2 : index
    %c0_73 = arith.constant 0 : index
    %38 = tpu.strided_load %arg8[%c0_71, %c2_72, %c0_73] {strides = array<i32: 2, 2, 1>} : memref<20x20x8xf32, #tpu.memory_space<vmem>>, vector<8x8x8xf32>
    %c0_74 = arith.constant 0 : index
    %c3 = arith.constant 3 : index
    %c0_75 = arith.constant 0 : index
    %39 = tpu.strided_load %arg8[%c0_74, %c3, %c0_75] {strides = array<i32: 2, 2, 1>} : memref<20x20x8xf32, #tpu.memory_space<vmem>>, vector<8x8x8xf32>
    %c0_76 = arith.constant 0 : index
    %c4 = arith.constant 4 : index
    %c0_77 = arith.constant 0 : index
    %40 = tpu.strided_load %arg8[%c0_76, %c4, %c0_77] {strides = array<i32: 2, 2, 1>} : memref<20x20x8xf32, #tpu.memory_space<vmem>>, vector<8x8x8xf32>
    %c1_78 = arith.constant 1 : index
    %c0_79 = arith.constant 0 : index
    %c0_80 = arith.constant 0 : index
    %41 = tpu.strided_load %arg8[%c1_78, %c0_79, %c0_80] {strides = array<i32: 2, 2, 1>} : memref<20x20x8xf32, #tpu.memory_space<vmem>>, vector<8x8x8xf32>
    %c1_81 = arith.constant 1 : index
    %c1_82 = arith.constant 1 : index
    %c0_83 = arith.constant 0 : index
    %42 = tpu.strided_load %arg8[%c1_81, %c1_82, %c0_83] {strides = array<i32: 2, 2, 1>} : memref<20x20x8xf32, #tpu.memory_space<vmem>>, vector<8x8x8xf32>
    %c1_84 = arith.constant 1 : index
    %c2_85 = arith.constant 2 : index
    %c0_86 = arith.constant 0 : index
    %43 = tpu.strided_load %arg8[%c1_84, %c2_85, %c0_86] {strides = array<i32: 2, 2, 1>} : memref<20x20x8xf32, #tpu.memory_space<vmem>>, vector<8x8x8xf32>
    %c1_87 = arith.constant 1 : index
    %c3_88 = arith.constant 3 : index
    %c0_89 = arith.constant 0 : index
    %44 = tpu.strided_load %arg8[%c1_87, %c3_88, %c0_89] {strides = array<i32: 2, 2, 1>} : memref<20x20x8xf32, #tpu.memory_space<vmem>>, vector<8x8x8xf32>
    %c1_90 = arith.constant 1 : index
    %c4_91 = arith.constant 4 : index
    %c0_92 = arith.constant 0 : index
    %45 = tpu.strided_load %arg8[%c1_90, %c4_91, %c0_92] {strides = array<i32: 2, 2, 1>} : memref<20x20x8xf32, #tpu.memory_space<vmem>>, vector<8x8x8xf32>
    %c2_93 = arith.constant 2 : index
    %c0_94 = arith.constant 0 : index
    %c0_95 = arith.constant 0 : index
    %46 = tpu.strided_load %arg8[%c2_93, %c0_94, %c0_95] {strides = array<i32: 2, 2, 1>} : memref<20x20x8xf32, #tpu.memory_space<vmem>>, vector<8x8x8xf32>
    %c2_96 = arith.constant 2 : index
    %c1_97 = arith.constant 1 : index
    %c0_98 = arith.constant 0 : index
    %47 = tpu.strided_load %arg8[%c2_96, %c1_97, %c0_98] {strides = array<i32: 2, 2, 1>} : memref<20x20x8xf32, #tpu.memory_space<vmem>>, vector<8x8x8xf32>
    %c2_99 = arith.constant 2 : index
    %c2_100 = arith.constant 2 : index
    %c0_101 = arith.constant 0 : index
    %48 = tpu.strided_load %arg8[%c2_99, %c2_100, %c0_101] {strides = array<i32: 2, 2, 1>} : memref<20x20x8xf32, #tpu.memory_space<vmem>>, vector<8x8x8xf32>
    %c2_102 = arith.constant 2 : index
    %c3_103 = arith.constant 3 : index
    %c0_104 = arith.constant 0 : index
    %49 = tpu.strided_load %arg8[%c2_102, %c3_103, %c0_104] {strides = array<i32: 2, 2, 1>} : memref<20x20x8xf32, #tpu.memory_space<vmem>>, vector<8x8x8xf32>
    %c2_105 = arith.constant 2 : index
    %c4_106 = arith.constant 4 : index
    %c0_107 = arith.constant 0 : index
    %50 = tpu.strided_load %arg8[%c2_105, %c4_106, %c0_107] {strides = array<i32: 2, 2, 1>} : memref<20x20x8xf32, #tpu.memory_space<vmem>>, vector<8x8x8xf32>
    %c3_108 = arith.constant 3 : index
    %c0_109 = arith.constant 0 : index
    %c0_110 = arith.constant 0 : index
    %51 = tpu.strided_load %arg8[%c3_108, %c0_109, %c0_110] {strides = array<i32: 2, 2, 1>} : memref<20x20x8xf32, #tpu.memory_space<vmem>>, vector<8x8x8xf32>
    %c3_111 = arith.constant 3 : index
    %c1_112 = arith.constant 1 : index
    %c0_113 = arith.constant 0 : index
    %52 = tpu.strided_load %arg8[%c3_111, %c1_112, %c0_113] {strides = array<i32: 2, 2, 1>} : memref<20x20x8xf32, #tpu.memory_space<vmem>>, vector<8x8x8xf32>
    %c3_114 = arith.constant 3 : index
    %c2_115 = arith.constant 2 : index
    %c0_116 = arith.constant 0 : index
    %53 = tpu.strided_load %arg8[%c3_114, %c2_115, %c0_116] {strides = array<i32: 2, 2, 1>} : memref<20x20x8xf32, #tpu.memory_space<vmem>>, vector<8x8x8xf32>
    %c3_117 = arith.constant 3 : index
    %c3_118 = arith.constant 3 : index
    %c0_119 = arith.constant 0 : index
    %54 = tpu.strided_load %arg8[%c3_117, %c3_118, %c0_119] {strides = array<i32: 2, 2, 1>} : memref<20x20x8xf32, #tpu.memory_space<vmem>>, vector<8x8x8xf32>
    %c3_120 = arith.constant 3 : index
    %c4_121 = arith.constant 4 : index
    %c0_122 = arith.constant 0 : index
    %55 = tpu.strided_load %arg8[%c3_120, %c4_121, %c0_122] {strides = array<i32: 2, 2, 1>} : memref<20x20x8xf32, #tpu.memory_space<vmem>>, vector<8x8x8xf32>
    %c4_123 = arith.constant 4 : index
    %c0_124 = arith.constant 0 : index
    %c0_125 = arith.constant 0 : index
    %56 = tpu.strided_load %arg8[%c4_123, %c0_124, %c0_125] {strides = array<i32: 2, 2, 1>} : memref<20x20x8xf32, #tpu.memory_space<vmem>>, vector<8x8x8xf32>
    %c4_126 = arith.constant 4 : index
    %c1_127 = arith.constant 1 : index
    %c0_128 = arith.constant 0 : index
    %57 = tpu.strided_load %arg8[%c4_126, %c1_127, %c0_128] {strides = array<i32: 2, 2, 1>} : memref<20x20x8xf32, #tpu.memory_space<vmem>>, vector<8x8x8xf32>
    %c4_129 = arith.constant 4 : index
    %c2_130 = arith.constant 2 : index
    %c0_131 = arith.constant 0 : index
    %58 = tpu.strided_load %arg8[%c4_129, %c2_130, %c0_131] {strides = array<i32: 2, 2, 1>} : memref<20x20x8xf32, #tpu.memory_space<vmem>>, vector<8x8x8xf32>
    %c4_132 = arith.constant 4 : index
    %c3_133 = arith.constant 3 : index
    %c0_134 = arith.constant 0 : index
    %59 = tpu.strided_load %arg8[%c4_132, %c3_133, %c0_134] {strides = array<i32: 2, 2, 1>} : memref<20x20x8xf32, #tpu.memory_space<vmem>>, vector<8x8x8xf32>
    %c4_135 = arith.constant 4 : index
    %c4_136 = arith.constant 4 : index
    %c0_137 = arith.constant 0 : index
    %60 = tpu.strided_load %arg8[%c4_135, %c4_136, %c0_137] {strides = array<i32: 2, 2, 1>} : memref<20x20x8xf32, #tpu.memory_space<vmem>>, vector<8x8x8xf32>
    %61 = tpu.concatenate %36, %37, %38, %39, %40, %41, %42, %43, %44, %45, %46, %47, %48, %49, %50, %51 in 2 : vector<8x8x8xf32>, vector<8x8x8xf32>, vector<8x8x8xf32>, vector<8x8x8xf32>, vector<8x8x8xf32>, vector<8x8x8xf32>, vector<8x8x8xf32>, vector<8x8x8xf32>, vector<8x8x8xf32>, vector<8x8x8xf32>, vector<8x8x8xf32>, vector<8x8x8xf32>, vector<8x8x8xf32>, vector<8x8x8xf32>, vector<8x8x8xf32>, vector<8x8x8xf32> -> vector<8x8x128xf32>
    %62 = tpu.concatenate %52, %53, %54, %55, %56, %57, %58, %59, %60 in 2 : vector<8x8x8xf32>, vector<8x8x8xf32>, vector<8x8x8xf32>, vector<8x8x8xf32>, vector<8x8x8xf32>, vector<8x8x8xf32>, vector<8x8x8xf32>, vector<8x8x8xf32>, vector<8x8x8xf32> -> vector<8x8x72xf32>
    %63 = tpu.concatenate %61, %62 in 2 : vector<8x8x128xf32>, vector<8x8x72xf32> -> vector<8x8x200xf32>
    %64 = vector.shape_cast %63 : vector<8x8x200xf32> to vector<64x200xf32>
    %c0_138 = arith.constant 0 : index
    %c0_139 = arith.constant 0 : index
    %65 = vector.load %arg3[%c0_138, %c0_139] : memref<200x8xf32, #tpu.memory_space<vmem>>, vector<200x8xf32>
    %cst_140 = arith.constant dense<0.000000e+00> : vector<64x8xf32>
    %66 = tpu.matmul %64, %65, %cst_140 {dimension_numbers = #tpu.dot_dimension_numbers<[1], [0], [0], [1], [0, 0, 1, 1], [], []>} : vector<64x200xf32>, vector<200x8xf32>, vector<64x8xf32> -> vector<64x8xf32>
    %c1_141 = arith.constant 1 : index
    %c0_142 = arith.constant 0 : index
    %67 = vector.load %arg5[%c1_141, %c0_142] : memref<3x8xf32, #tpu.memory_space<vmem>>, vector<1x8xf32>
    %68 = vector.broadcast %67 : vector<1x8xf32> to vector<64x8xf32>
    %69 = arith.addf %66, %68 : vector<64x8xf32>
    %cst_143 = arith.constant 0.000000e+00 : f32
    %70 = vector.broadcast %cst_143 : f32 to vector<64x8xf32>
    %71 = arith.maximumf %69, %70 : vector<64x8xf32>
    %cst_144 = arith.constant 0.000000e+00 : f32
    %72 = vector.broadcast %cst_144 : f32 to vector<2x12x8xf32>
    %cst_145 = arith.constant 0.000000e+00 : f32
    %73 = vector.broadcast %cst_145 : f32 to vector<12x2x8xf32>
    %c0_146 = arith.constant 0 : index
    %c0_147 = arith.constant 0 : index
    %c0_148 = arith.constant 0 : index
    %74 = vector.load %arg9[%c0_146, %c0_147, %c0_148] : memref<12x12x8xf32, #tpu.memory_space<vmem>>, vector<2x12x8xf32>
    tpu.vector_store %arg9[%c0_146, %c0_147, %c0_148], %72 {strides = array<i32>} : memref<12x12x8xf32, #tpu.memory_space<vmem>>, vector<2x12x8xf32>,
    %c10 = arith.constant 10 : index
    %c0_149 = arith.constant 0 : index
    %c0_150 = arith.constant 0 : index
    %75 = vector.load %arg9[%c10, %c0_149, %c0_150] : memref<12x12x8xf32, #tpu.memory_space<vmem>>, vector<2x12x8xf32>
    tpu.vector_store %arg9[%c10, %c0_149, %c0_150], %72 {strides = array<i32>} : memref<12x12x8xf32, #tpu.memory_space<vmem>>, vector<2x12x8xf32>,
    %c0_151 = arith.constant 0 : index
    %c0_152 = arith.constant 0 : index
    %c0_153 = arith.constant 0 : index
    %76 = vector.load %arg9[%c0_151, %c0_152, %c0_153] : memref<12x12x8xf32, #tpu.memory_space<vmem>>, vector<12x2x8xf32>
    tpu.vector_store %arg9[%c0_151, %c0_152, %c0_153], %73 {strides = array<i32>} : memref<12x12x8xf32, #tpu.memory_space<vmem>>, vector<12x2x8xf32>,
    %c0_154 = arith.constant 0 : index
    %c10_155 = arith.constant 10 : index
    %c0_156 = arith.constant 0 : index
    %77 = vector.load %arg9[%c0_154, %c10_155, %c0_156] : memref<12x12x8xf32, #tpu.memory_space<vmem>>, vector<12x2x8xf32>
    tpu.vector_store %arg9[%c0_154, %c10_155, %c0_156], %73 {strides = array<i32>} : memref<12x12x8xf32, #tpu.memory_space<vmem>>, vector<12x2x8xf32>,
    %78 = vector.shape_cast %71 : vector<64x8xf32> to vector<8x8x8xf32>
    %c2_157 = arith.constant 2 : index
    %c2_158 = arith.constant 2 : index
    %c0_159 = arith.constant 0 : index
    %79 = vector.load %arg9[%c2_157, %c2_158, %c0_159] : memref<12x12x8xf32, #tpu.memory_space<vmem>>, vector<8x8x8xf32>
    tpu.vector_store %arg9[%c2_157, %c2_158, %c0_159], %78 {strides = array<i32>} : memref<12x12x8xf32, #tpu.memory_space<vmem>>, vector<8x8x8xf32>,
    %c0_160 = arith.constant 0 : index
    %c0_161 = arith.constant 0 : index
    %c0_162 = arith.constant 0 : index
    %80 = tpu.strided_load %arg9[%c0_160, %c0_161, %c0_162] {strides = array<i32: 2, 2, 1>} : memref<12x12x8xf32, #tpu.memory_space<vmem>>, vector<4x4x8xf32>
    %c0_163 = arith.constant 0 : index
    %c1_164 = arith.constant 1 : index
    %c0_165 = arith.constant 0 : index
    %81 = tpu.strided_load %arg9[%c0_163, %c1_164, %c0_165] {strides = array<i32: 2, 2, 1>} : memref<12x12x8xf32, #tpu.memory_space<vmem>>, vector<4x4x8xf32>
    %c0_166 = arith.constant 0 : index
    %c2_167 = arith.constant 2 : index
    %c0_168 = arith.constant 0 : index
    %82 = tpu.strided_load %arg9[%c0_166, %c2_167, %c0_168] {strides = array<i32: 2, 2, 1>} : memref<12x12x8xf32, #tpu.memory_space<vmem>>, vector<4x4x8xf32>
    %c0_169 = arith.constant 0 : index
    %c3_170 = arith.constant 3 : index
    %c0_171 = arith.constant 0 : index
    %83 = tpu.strided_load %arg9[%c0_169, %c3_170, %c0_171] {strides = array<i32: 2, 2, 1>} : memref<12x12x8xf32, #tpu.memory_space<vmem>>, vector<4x4x8xf32>
    %c0_172 = arith.constant 0 : index
    %c4_173 = arith.constant 4 : index
    %c0_174 = arith.constant 0 : index
    %84 = tpu.strided_load %arg9[%c0_172, %c4_173, %c0_174] {strides = array<i32: 2, 2, 1>} : memref<12x12x8xf32, #tpu.memory_space<vmem>>, vector<4x4x8xf32>
    %c1_175 = arith.constant 1 : index
    %c0_176 = arith.constant 0 : index
    %c0_177 = arith.constant 0 : index
    %85 = tpu.strided_load %arg9[%c1_175, %c0_176, %c0_177] {strides = array<i32: 2, 2, 1>} : memref<12x12x8xf32, #tpu.memory_space<vmem>>, vector<4x4x8xf32>
    %c1_178 = arith.constant 1 : index
    %c1_179 = arith.constant 1 : index
    %c0_180 = arith.constant 0 : index
    %86 = tpu.strided_load %arg9[%c1_178, %c1_179, %c0_180] {strides = array<i32: 2, 2, 1>} : memref<12x12x8xf32, #tpu.memory_space<vmem>>, vector<4x4x8xf32>
    %c1_181 = arith.constant 1 : index
    %c2_182 = arith.constant 2 : index
    %c0_183 = arith.constant 0 : index
    %87 = tpu.strided_load %arg9[%c1_181, %c2_182, %c0_183] {strides = array<i32: 2, 2, 1>} : memref<12x12x8xf32, #tpu.memory_space<vmem>>, vector<4x4x8xf32>
    %c1_184 = arith.constant 1 : index
    %c3_185 = arith.constant 3 : index
    %c0_186 = arith.constant 0 : index
    %88 = tpu.strided_load %arg9[%c1_184, %c3_185, %c0_186] {strides = array<i32: 2, 2, 1>} : memref<12x12x8xf32, #tpu.memory_space<vmem>>, vector<4x4x8xf32>
    %c1_187 = arith.constant 1 : index
    %c4_188 = arith.constant 4 : index
    %c0_189 = arith.constant 0 : index
    %89 = tpu.strided_load %arg9[%c1_187, %c4_188, %c0_189] {strides = array<i32: 2, 2, 1>} : memref<12x12x8xf32, #tpu.memory_space<vmem>>, vector<4x4x8xf32>
    %c2_190 = arith.constant 2 : index
    %c0_191 = arith.constant 0 : index
    %c0_192 = arith.constant 0 : index
    %90 = tpu.strided_load %arg9[%c2_190, %c0_191, %c0_192] {strides = array<i32: 2, 2, 1>} : memref<12x12x8xf32, #tpu.memory_space<vmem>>, vector<4x4x8xf32>
    %c2_193 = arith.constant 2 : index
    %c1_194 = arith.constant 1 : index
    %c0_195 = arith.constant 0 : index
    %91 = tpu.strided_load %arg9[%c2_193, %c1_194, %c0_195] {strides = array<i32: 2, 2, 1>} : memref<12x12x8xf32, #tpu.memory_space<vmem>>, vector<4x4x8xf32>
    %c2_196 = arith.constant 2 : index
    %c2_197 = arith.constant 2 : index
    %c0_198 = arith.constant 0 : index
    %92 = tpu.strided_load %arg9[%c2_196, %c2_197, %c0_198] {strides = array<i32: 2, 2, 1>} : memref<12x12x8xf32, #tpu.memory_space<vmem>>, vector<4x4x8xf32>
    %c2_199 = arith.constant 2 : index
    %c3_200 = arith.constant 3 : index
    %c0_201 = arith.constant 0 : index
    %93 = tpu.strided_load %arg9[%c2_199, %c3_200, %c0_201] {strides = array<i32: 2, 2, 1>} : memref<12x12x8xf32, #tpu.memory_space<vmem>>, vector<4x4x8xf32>
    %c2_202 = arith.constant 2 : index
    %c4_203 = arith.constant 4 : index
    %c0_204 = arith.constant 0 : index
    %94 = tpu.strided_load %arg9[%c2_202, %c4_203, %c0_204] {strides = array<i32: 2, 2, 1>} : memref<12x12x8xf32, #tpu.memory_space<vmem>>, vector<4x4x8xf32>
    %c3_205 = arith.constant 3 : index
    %c0_206 = arith.constant 0 : index
    %c0_207 = arith.constant 0 : index
    %95 = tpu.strided_load %arg9[%c3_205, %c0_206, %c0_207] {strides = array<i32: 2, 2, 1>} : memref<12x12x8xf32, #tpu.memory_space<vmem>>, vector<4x4x8xf32>
    %c3_208 = arith.constant 3 : index
    %c1_209 = arith.constant 1 : index
    %c0_210 = arith.constant 0 : index
    %96 = tpu.strided_load %arg9[%c3_208, %c1_209, %c0_210] {strides = array<i32: 2, 2, 1>} : memref<12x12x8xf32, #tpu.memory_space<vmem>>, vector<4x4x8xf32>
    %c3_211 = arith.constant 3 : index
    %c2_212 = arith.constant 2 : index
    %c0_213 = arith.constant 0 : index
    %97 = tpu.strided_load %arg9[%c3_211, %c2_212, %c0_213] {strides = array<i32: 2, 2, 1>} : memref<12x12x8xf32, #tpu.memory_space<vmem>>, vector<4x4x8xf32>
    %c3_214 = arith.constant 3 : index
    %c3_215 = arith.constant 3 : index
    %c0_216 = arith.constant 0 : index
    %98 = tpu.strided_load %arg9[%c3_214, %c3_215, %c0_216] {strides = array<i32: 2, 2, 1>} : memref<12x12x8xf32, #tpu.memory_space<vmem>>, vector<4x4x8xf32>
    %c3_217 = arith.constant 3 : index
    %c4_218 = arith.constant 4 : index
    %c0_219 = arith.constant 0 : index
    %99 = tpu.strided_load %arg9[%c3_217, %c4_218, %c0_219] {strides = array<i32: 2, 2, 1>} : memref<12x12x8xf32, #tpu.memory_space<vmem>>, vector<4x4x8xf32>
    %c4_220 = arith.constant 4 : index
    %c0_221 = arith.constant 0 : index
    %c0_222 = arith.constant 0 : index
    %100 = tpu.strided_load %arg9[%c4_220, %c0_221, %c0_222] {strides = array<i32: 2, 2, 1>} : memref<12x12x8xf32, #tpu.memory_space<vmem>>, vector<4x4x8xf32>
    %c4_223 = arith.constant 4 : index
    %c1_224 = arith.constant 1 : index
    %c0_225 = arith.constant 0 : index
    %101 = tpu.strided_load %arg9[%c4_223, %c1_224, %c0_225] {strides = array<i32: 2, 2, 1>} : memref<12x12x8xf32, #tpu.memory_space<vmem>>, vector<4x4x8xf32>
    %c4_226 = arith.constant 4 : index
    %c2_227 = arith.constant 2 : index
    %c0_228 = arith.constant 0 : index
    %102 = tpu.strided_load %arg9[%c4_226, %c2_227, %c0_228] {strides = array<i32: 2, 2, 1>} : memref<12x12x8xf32, #tpu.memory_space<vmem>>, vector<4x4x8xf32>
    %c4_229 = arith.constant 4 : index
    %c3_230 = arith.constant 3 : index
    %c0_231 = arith.constant 0 : index
    %103 = tpu.strided_load %arg9[%c4_229, %c3_230, %c0_231] {strides = array<i32: 2, 2, 1>} : memref<12x12x8xf32, #tpu.memory_space<vmem>>, vector<4x4x8xf32>
    %c4_232 = arith.constant 4 : index
    %c4_233 = arith.constant 4 : index
    %c0_234 = arith.constant 0 : index
    %104 = tpu.strided_load %arg9[%c4_232, %c4_233, %c0_234] {strides = array<i32: 2, 2, 1>} : memref<12x12x8xf32, #tpu.memory_space<vmem>>, vector<4x4x8xf32>
    %105 = tpu.concatenate %80, %81, %82, %83, %84, %85, %86, %87, %88, %89, %90, %91, %92, %93, %94, %95 in 2 : vector<4x4x8xf32>, vector<4x4x8xf32>, vector<4x4x8xf32>, vector<4x4x8xf32>, vector<4x4x8xf32>, vector<4x4x8xf32>, vector<4x4x8xf32>, vector<4x4x8xf32>, vector<4x4x8xf32>, vector<4x4x8xf32>, vector<4x4x8xf32>, vector<4x4x8xf32>, vector<4x4x8xf32>, vector<4x4x8xf32>, vector<4x4x8xf32>, vector<4x4x8xf32> -> vector<4x4x128xf32>
    %106 = tpu.concatenate %96, %97, %98, %99, %100, %101, %102, %103, %104 in 2 : vector<4x4x8xf32>, vector<4x4x8xf32>, vector<4x4x8xf32>, vector<4x4x8xf32>, vector<4x4x8xf32>, vector<4x4x8xf32>, vector<4x4x8xf32>, vector<4x4x8xf32>, vector<4x4x8xf32> -> vector<4x4x72xf32>
    %107 = tpu.concatenate %105, %106 in 2 : vector<4x4x128xf32>, vector<4x4x72xf32> -> vector<4x4x200xf32>
    %108 = vector.shape_cast %107 : vector<4x4x200xf32> to vector<16x200xf32>
    %c0_235 = arith.constant 0 : index
    %c0_236 = arith.constant 0 : index
    %109 = vector.load %arg4[%c0_235, %c0_236] : memref<200x8xf32, #tpu.memory_space<vmem>>, vector<200x8xf32>
    %cst_237 = arith.constant dense<0.000000e+00> : vector<16x8xf32>
    %110 = tpu.matmul %108, %109, %cst_237 {dimension_numbers = #tpu.dot_dimension_numbers<[1], [0], [0], [1], [0, 0, 1, 1], [], []>} : vector<16x200xf32>, vector<200x8xf32>, vector<16x8xf32> -> vector<16x8xf32>
    %c2_238 = arith.constant 2 : index
    %c0_239 = arith.constant 0 : index
    %111 = vector.load %arg5[%c2_238, %c0_239] : memref<3x8xf32, #tpu.memory_space<vmem>>, vector<1x8xf32>
    %112 = vector.broadcast %111 : vector<1x8xf32> to vector<16x8xf32>
    %113 = arith.addf %110, %112 : vector<16x8xf32>
    %114 = vector.extract_strided_slice %113 {offsets = [0, 0], sizes = [1, 8], strides = [1, 1]} : vector<16x8xf32> to vector<1x8xf32>
    %115 = vector.extract_strided_slice %113 {offsets = [1, 0], sizes = [1, 8], strides = [1, 1]} : vector<16x8xf32> to vector<1x8xf32>
    %116 = vector.extract_strided_slice %113 {offsets = [2, 0], sizes = [1, 8], strides = [1, 1]} : vector<16x8xf32> to vector<1x8xf32>
    %117 = vector.extract_strided_slice %113 {offsets = [3, 0], sizes = [1, 8], strides = [1, 1]} : vector<16x8xf32> to vector<1x8xf32>
    %118 = vector.extract_strided_slice %113 {offsets = [4, 0], sizes = [1, 8], strides = [1, 1]} : vector<16x8xf32> to vector<1x8xf32>
    %119 = vector.extract_strided_slice %113 {offsets = [5, 0], sizes = [1, 8], strides = [1, 1]} : vector<16x8xf32> to vector<1x8xf32>
    %120 = vector.extract_strided_slice %113 {offsets = [6, 0], sizes = [1, 8], strides = [1, 1]} : vector<16x8xf32> to vector<1x8xf32>
    %121 = vector.extract_strided_slice %113 {offsets = [7, 0], sizes = [1, 8], strides = [1, 1]} : vector<16x8xf32> to vector<1x8xf32>
    %122 = vector.extract_strided_slice %113 {offsets = [8, 0], sizes = [1, 8], strides = [1, 1]} : vector<16x8xf32> to vector<1x8xf32>
    %123 = vector.extract_strided_slice %113 {offsets = [9, 0], sizes = [1, 8], strides = [1, 1]} : vector<16x8xf32> to vector<1x8xf32>
    %124 = vector.extract_strided_slice %113 {offsets = [10, 0], sizes = [1, 8], strides = [1, 1]} : vector<16x8xf32> to vector<1x8xf32>
    %125 = vector.extract_strided_slice %113 {offsets = [11, 0], sizes = [1, 8], strides = [1, 1]} : vector<16x8xf32> to vector<1x8xf32>
    %126 = vector.extract_strided_slice %113 {offsets = [12, 0], sizes = [1, 8], strides = [1, 1]} : vector<16x8xf32> to vector<1x8xf32>
    %127 = vector.extract_strided_slice %113 {offsets = [13, 0], sizes = [1, 8], strides = [1, 1]} : vector<16x8xf32> to vector<1x8xf32>
    %128 = vector.extract_strided_slice %113 {offsets = [14, 0], sizes = [1, 8], strides = [1, 1]} : vector<16x8xf32> to vector<1x8xf32>
    %129 = vector.extract_strided_slice %113 {offsets = [15, 0], sizes = [1, 8], strides = [1, 1]} : vector<16x8xf32> to vector<1x8xf32>
    %130 = tpu.concatenate %114, %115, %116, %117, %118, %119, %120, %121, %122, %123, %124, %125, %126, %127, %128, %129 in 1 : vector<1x8xf32>, vector<1x8xf32>, vector<1x8xf32>, vector<1x8xf32>, vector<1x8xf32>, vector<1x8xf32>, vector<1x8xf32>, vector<1x8xf32>, vector<1x8xf32>, vector<1x8xf32>, vector<1x8xf32>, vector<1x8xf32>, vector<1x8xf32>, vector<1x8xf32>, vector<1x8xf32>, vector<1x8xf32> -> vector<1x128xf32>
    %c0_240 = arith.constant 0 : index
    %c0_241 = arith.constant 0 : index
    %c0_242 = arith.constant 0 : index
    %131 = vector.load %arg6[%c0_240, %c0_241, %c0_242] : memref<1x1x128xf32, #tpu.memory_space<vmem>>, vector<1x1x128xf32>
    %132 = vector.shape_cast %131 : vector<1x1x128xf32> to vector<1x128xf32>
    %133 = vector.shape_cast %130 : vector<1x128xf32> to vector<1x1x128xf32>
    tpu.vector_store %arg6[%c0_240, %c0_241, %c0_242], %133 {strides = array<i32>} : memref<1x1x128xf32, #tpu.memory_space<vmem>>, vector<1x1x128xf32>,
    return
  }
  func.func @transform_0(%arg0: i32) -> (i32, i32, i32, i32) {
    %c0_i32 = arith.constant 0 : i32
    %c0_i32_0 = arith.constant 0 : i32
    %c0_i32_1 = arith.constant 0 : i32
    %c0_i32_2 = arith.constant 0 : i32
    return %arg0, %c0_i32, %c0_i32_0, %c0_i32_1 : i32, i32, i32, i32
  }
  func.func @transform_1(%arg0: i32) -> (i32, i32) {
    %c0_i32 = arith.constant 0 : i32
    %c0_i32_0 = arith.constant 0 : i32
    %c0_i32_1 = arith.constant 0 : i32
    return %c0_i32, %c0_i32_0 : i32, i32
  }
  func.func @transform_2(%arg0: i32) -> (i32, i32) {
    %c0_i32 = arith.constant 0 : i32
    %c0_i32_0 = arith.constant 0 : i32
    %c0_i32_1 = arith.constant 0 : i32
    return %c0_i32, %c0_i32_0 : i32, i32
  }
  func.func @transform_3(%arg0: i32) -> (i32, i32) {
    %c0_i32 = arith.constant 0 : i32
    %c0_i32_0 = arith.constant 0 : i32
    %c0_i32_1 = arith.constant 0 : i32
    return %c0_i32, %c0_i32_0 : i32, i32
  }
  func.func @transform_4(%arg0: i32) -> (i32, i32) {
    %c0_i32 = arith.constant 0 : i32
    %c0_i32_0 = arith.constant 0 : i32
    %c0_i32_1 = arith.constant 0 : i32
    return %c0_i32, %c0_i32_0 : i32, i32
  }
  func.func @transform_5(%arg0: i32) -> (i32, i32, i32) {
    %c0_i32 = arith.constant 0 : i32
    %c0_i32_0 = arith.constant 0 : i32
    %c0_i32_1 = arith.constant 0 : i32
    return %arg0, %c0_i32, %c0_i32_0 : i32, i32, i32
  }
}

</mosaic_0001>

<llo_original>
// kernel: analysis_prior_net.1
$region0: #{analysis_prior_net.1}
  #allocation0 [shape = 'u32[]', space=smem, size = 0x4, offset = 0x4, fixed_abs, tag = 'smem constant byte address 0x4 - core index']
  #allocation1 [shape = 'u32[144,128]{1,0:T(1,128)}', space=vmem, size = 0x12000, scoped, tag = 'internal scratch']
  #allocation2 [shape = 'f32[18,18,4]{2,1,0:T(8,128)}', space=vmem, size = 0x36000, scoped, tag = 'scratch operand']
  #allocation3 [shape = 'f32[20,20,8]{2,1,0:T(8,128)}', space=vmem, size = 0x3c000, scoped, tag = 'scratch operand']
  #allocation4 [shape = 'f32[12,12,8]{2,1,0:T(8,128)}', space=vmem, size = 0x18000, scoped, tag = 'scratch operand']
  %s0 = inlined_call_operand.vmem [shape: f32[2,16,16,4], index: 0, kind: input, shape index: {}]
  %s1 = inlined_call_operand.vmem [shape: f32[36,8], index: 1, kind: input, shape index: {}]
  %s2 = inlined_call_operand.vmem [shape: f32[200,8], index: 2, kind: input, shape index: {}]
  %s3 = inlined_call_operand.vmem [shape: f32[200,8], index: 3, kind: input, shape index: {}]
  %s4 = inlined_call_operand.vmem [shape: f32[3,8], index: 4, kind: input, shape index: {}]
  %s5 = inlined_call_operand.vmem [shape: f32[2,1,128], index: 5, kind: output, shape index: {}]
  %s6 = sld [smem:[#allocation0]]
  $region53: #{analysis_prior_net.1} parent=0
    _
  %s8 = ssub.s32 1, %s6
  %s9 = scalar_select 0, %s8, %s6
  loop: start=0, step=1, limit=4
  $region2: #{analysis_prior_net.1} parent=0 // loop_pre_header
    _
  $region3: #{analysis_prior_net.1} parent=0 // loop_header
    %s11 = sphi 0, %s15
    %p12 = scmp.ge.s32.totalorder %s11, 4
    %s21 = sphi 0, %s23
    %s24 = sphi 0, %s21
    %s25 = sphi 0, %s24
    %s41 = sphi 0, %s25
    %s45 = sphi 0, %s45
    %s47 = sphi 0, %s45
    %s48 = sphi 0, %s47
    %s62 = sphi 0, %s48
    %s66 = sphi 0, %s66
    %s68 = sphi 0, %s66
    %s69 = sphi 0, %s68
    %s83 = sphi 0, %s69
    %s87 = sphi 0, %s87
    %s89 = sphi 0, %s87
    %s90 = sphi 0, %s89
    %s104 = sphi 0, %s90
    %s108 = sphi 0, %s108
    %s110 = sphi 0, %s108
    %s111 = sphi 0, %s110
    %s125 = sphi 0, %s111
    %s131 = sphi 0, %s133
    %s134 = sphi 0, %s131
    %s135 = sphi 0, %s134
    %s151 = sphi 0, %s135
  $region4: #{analysis_prior_net.1} parent=0 // loop_header_branch
    %14 = sbr.rel (%p12) target = $region8
  $region5: #{analysis_prior_net.1} parent=0 // loop_body
    %s16 = ssub.s32 %s11, 1
    %s17 = ssub.s32 %s11, 2
    %s18 = sadd.s32 %s11, 1
    %s19 = ssub.s32 %s11, %s18
    %p20 = scmp.eq.s32.totalorder %s19, 0
    %s22 = sadd.s32 %s21, 1
    %s23 = scalar_select %p20, %s21, %s22
    %p26 = pneg %p20
    %p27 = scmp.eq.s32.totalorder %s11, 1
    %p28 = por %p26, %p27
    %p29 = scmp.ne.s32.totalorder %s21, %s24
    %p30 = scmp.eq.s32.totalorder %s11, 0
    %p31 = por %p29, %p30
    %p32 = scmp.ne.s32.totalorder %s21, %s24
    %p33 = scmp.eq.s32.totalorder %s16, 1
    %p34 = por %p32, %p33
    %p35 = scmp.ne.s32.totalorder %s24, %s25
    %p36 = scmp.eq.s32.totalorder %s16, 0
    %p37 = por %p35, %p36
    %p38 = scmp.ne.s32.totalorder %s24, %s25
    %p39 = scmp.eq.s32.totalorder %s17, 1
    %p40 = por %p38, %p39
    %p42 = scmp.ne.s32.totalorder %s25, %s41
    %p43 = scmp.eq.s32.totalorder %s17, 0
    %p44 = por %p42, %p43
    %s46 = sadd.s32 %s45, 1
    %p49 = scmp.eq.s32.totalorder %s11, 1
    %p50 = scmp.ne.s32.totalorder %s45, %s47
    %p51 = scmp.eq.s32.totalorder %s11, 0
    %p52 = por %p50, %p51
    %p53 = scmp.ne.s32.totalorder %s45, %s47
    %p54 = scmp.eq.s32.totalorder %s16, 1
    %p55 = por %p53, %p54
    %p56 = scmp.ne.s32.totalorder %s47, %s48
    %p57 = scmp.eq.s32.totalorder %s16, 0
    %p58 = por %p56, %p57
    %p59 = scmp.ne.s32.totalorder %s47, %s48
    %p60 = scmp.eq.s32.totalorder %s17, 1
    %p61 = por %p59, %p60
    %p63 = scmp.ne.s32.totalorder %s48, %s62
    %p64 = scmp.eq.s32.totalorder %s17, 0
    %p65 = por %p63, %p64
    %s67 = sadd.s32 %s66, 1
    %p70 = scmp.eq.s32.totalorder %s11, 1
    %p71 = scmp.ne.s32.totalorder %s66, %s68
    %p72 = scmp.eq.s32.totalorder %s11, 0
    %p73 = por %p71, %p72
    %p74 = scmp.ne.s32.totalorder %s66, %s68
    %p75 = scmp.eq.s32.totalorder %s16, 1
    %p76 = por %p74, %p75
    %p77 = scmp.ne.s32.totalorder %s68, %s69
    %p78 = scmp.eq.s32.totalorder %s16, 0
    %p79 = por %p77, %p78
    %p80 = scmp.ne.s32.totalorder %s68, %s69
    %p81 = scmp.eq.s32.totalorder %s17, 1
    %p82 = por %p80, %p81
    %p84 = scmp.ne.s32.totalorder %s69, %s83
    %p85 = scmp.eq.s32.totalorder %s17, 0
    %p86 = por %p84, %p85
    %s88 = sadd.s32 %s87, 1
    %p91 = scmp.eq.s32.totalorder %s11, 1
    %p92 = scmp.ne.s32.totalorder %s87, %s89
    %p93 = scmp.eq.s32.totalorder %s11, 0
    %p94 = por %p92, %p93
    %p95 = scmp.ne.s32.totalorder %s87, %s89
    %p96 = scmp.eq.s32.totalorder %s16, 1
    %p97 = por %p95, %p96
    %p98 = scmp.ne.s32.totalorder %s89, %s90
    %p99 = scmp.eq.s32.totalorder %s16, 0
    %p100 = por %p98, %p99
    %p101 = scmp.ne.s32.totalorder %s89, %s90
    %p102 = scmp.eq.s32.totalorder %s17, 1
    %p103 = por %p101, %p102
    %p105 = scmp.ne.s32.totalorder %s90, %s104
    %p106 = scmp.eq.s32.totalorder %s17, 0
    %p107 = por %p105, %p106
    %s109 = sadd.s32 %s108, 1
    %p112 = scmp.eq.s32.totalorder %s11, 1
    %p113 = scmp.ne.s32.totalorder %s108, %s110
    %p114 = scmp.eq.s32.totalorder %s11, 0
    %p115 = por %p113, %p114
    %p116 = scmp.ne.s32.totalorder %s108, %s110
    %p117 = scmp.eq.s32.totalorder %s16, 1
    %p118 = por %p116, %p117
    %p119 = scmp.ne.s32.totalorder %s110, %s111
    %p120 = scmp.eq.s32.totalorder %s16, 0
    %p121 = por %p119, %p120
    %p122 = scmp.ne.s32.totalorder %s110, %s111
    %p123 = scmp.eq.s32.totalorder %s17, 1
    %p124 = por %p122, %p123
    %p126 = scmp.ne.s32.totalorder %s111, %s125
    %p127 = scmp.eq.s32.totalorder %s17, 0
    %p128 = por %p126, %p127
    %s129 = ssub.s32 %s11, %s18
    %p130 = scmp.eq.s32.totalorder %s129, 0
    %s132 = sadd.s32 %s131, 1
    %s133 = scalar_select %p130, %s131, %s132
    %p136 = pneg %p130
    %p137 = scmp.eq.s32.totalorder %s11, 1
    %p138 = por %p136, %p137
    %p139 = scmp.ne.s32.totalorder %s131, %s134
    %p140 = scmp.eq.s32.totalorder %s11, 0
    %p141 = por %p139, %p140
    %p142 = scmp.ne.s32.totalorder %s131, %s134
    %p143 = scmp.eq.s32.totalorder %s16, 1
    %p144 = por %p142, %p143
    %p145 = scmp.ne.s32.totalorder %s134, %s135
    %p146 = scmp.eq.s32.totalorder %s16, 0
    %p147 = por %p145, %p146
    %p148 = scmp.ne.s32.totalorder %s134, %s135
    %p149 = scmp.eq.s32.totalorder %s17, 1
    %p150 = por %p148, %p149
    %p152 = scmp.ne.s32.totalorder %s135, %s151
    %p153 = scmp.eq.s32.totalorder %s17, 0
    %p154 = por %p152, %p153
    %p155 = scmp.le.s32.totalorder 1, %s11
    %p156 = scmp.lt.s32.totalorder %s11, 3
    %p157 = pnand %p155, %p156
    %p158 = pneg %p157
    // Predicated region
    $region9: #{analysis_prior_net.1} parent=5 // pred_check
      _
    $region10: #{analysis_prior_net.1} parent=5 // pred_check_branch
      %160 = sbr.rel (%p157) target = $region12
    $region11: #{analysis_prior_net.1} parent=5 // pred_region
      %s161 = ssub.s32 %s11, 1
      // Predicated region
      $region13: #{analysis_prior_net.1} parent=11 // pred_check
        %p162 = pneg %p58
      $region14: #{analysis_prior_net.1} parent=11 // pred_check_branch
        %164 = sbr.rel (%p162) target = $region16
      $region15: #{analysis_prior_net.1} parent=11 // pred_region
        _
      $region16: #{analysis_prior_net.1} parent=11 // pred_fallthru
        _
      // Predicated region
      $region17: #{analysis_prior_net.1} parent=11 // pred_check
        %p165 = pneg %p79
      $region18: #{analysis_prior_net.1} parent=11 // pred_check_branch
        %167 = sbr.rel (%p165) target = $region20
      $region19: #{analysis_prior_net.1} parent=11 // pred_region
        _
      $region20: #{analysis_prior_net.1} parent=11 // pred_fallthru
        _
      // Predicated region
      $region21: #{analysis_prior_net.1} parent=11 // pred_check
        %p168 = pneg %p100
      $region22: #{analysis_prior_net.1} parent=11 // pred_check_branch
        %170 = sbr.rel (%p168) target = $region24
      $region23: #{analysis_prior_net.1} parent=11 // pred_region
        _
      $region24: #{analysis_prior_net.1} parent=11 // pred_fallthru
        _
      // Predicated region
      $region25: #{analysis_prior_net.1} parent=11 // pred_check
        %p171 = pneg %p121
      $region26: #{analysis_prior_net.1} parent=11 // pred_check_branch
        %173 = sbr.rel (%p171) target = $region28
      $region27: #{analysis_prior_net.1} parent=11 // pred_region
        _
      $region28: #{analysis_prior_net.1} parent=11 // pred_fallthru
        _
    $region12: #{analysis_prior_net.1} parent=5 // pred_fallthru
      _
    %p174 = scmp.lt.s32.totalorder %s11, 2
    // Predicated region
    $region29: #{analysis_prior_net.1} parent=5 // pred_check
      %p175 = pneg %p174
    $region30: #{analysis_prior_net.1} parent=5 // pred_check_branch
      %177 = sbr.rel (%p175) target = $region32
    $region31: #{analysis_prior_net.1} parent=5 // pred_region
      // Predicated region
      $region33: #{analysis_prior_net.1} parent=31 // pred_check
        %p178 = pneg %p31
      $region34: #{analysis_prior_net.1} parent=31 // pred_check_branch
        %180 = sbr.rel (%p178) target = $region36
      $region35: #{analysis_prior_net.1} parent=31 // pred_region
        %p181 = scmp.lt.s32.totalorder %s11, 1
        %s182 = scalar_select %p181, %s11, 1
        %s183 = smul.addr %s182, 32
        %s184 = smul.addr %s183, 8
        %s185 = scalar_lea.vmem %s0, %s184
      $region36: #{analysis_prior_net.1} parent=31 // pred_fallthru
        _
    $region32: #{analysis_prior_net.1} parent=5 // pred_fallthru
      _
    %p186 = scmp.le.s32.totalorder 1, %s11
    %p187 = scmp.lt.s32.totalorder %s11, 3
    %p188 = pnand %p186, %p187
    %p189 = pneg %p188
    // Predicated region
    $region37: #{analysis_prior_net.1} parent=5 // pred_check
      _
    $region38: #{analysis_prior_net.1} parent=5 // pred_check_branch
      %191 = sbr.rel (%p188) target = $region40
    $region39: #{analysis_prior_net.1} parent=5 // pred_region
      %s192 = ssub.s32 %s11, 1
      %p193 = scmp.lt.s32.totalorder %s16, 1
      %s194 = scalar_select %p193, %s16, 1
      %s195 = smul.addr %s194, 32
      %s196 = smul.addr %s195, 8
      %s197 = scalar_lea.vmem %s0, %s196
      %p198 = pneg %p37
      %p199 = pneg %p34
      %p200 = pneg %p58
      %p201 = pneg %p55
      %p202 = pneg %p79
      %p203 = pneg %p76
      %p204 = pneg %p100
      %p205 = pneg %p97
      %p206 = pneg %p121
      %p207 = pneg %p118
      %p208 = pneg %p147
      %p209 = pneg %p144
      %p210 = scmp.lt.s32.totalorder %s16, 1
      %s211 = scalar_select %p210, %s16, 1
      %s212 = scalar_lea.vmem %s5, %s211
      %p213 = scmp.lt.s32.totalorder %s16, 1
      %s214 = scalar_select %p213, %s16, 1
      %s215 = smul.addr %s214, 32
      %s216 = smul.addr %s215, 8
      %s217 = scalar_lea.vmem %s0, %s216
      %p218 = scmp.lt.s32.totalorder %s16, 1
      %s219 = scalar_select %p218, %s16, 1
      %s220 = scalar_lea.vmem %s5, %s219
      %vm221 = vcmask 31744
      %222 = vst.msk [vmem:[#allocation2] sm:$0xff] %vm221, 0.0
      %223 = vst.msk [vmem:[#allocation2 + $0x8] sm:$0xff] %vm221, 0.0
      %vm224 = vcmask 25600
      %225 = vst.msk [vmem:[#allocation2 + $0x10] sm:$0x3] %vm224, 0.0
      %s226 = scalar_lea.vmem [#allocation2], 408
      %227 = vst.msk [vmem:[%s226] sm:$0xff] %vm221, 0.0
      %228 = vst.msk [vmem:[%s226 + $0x8] sm:$0xff] %vm221, 0.0
      %229 = vst.msk [vmem:[%s226 + $0x10] sm:$0x3] %vm224, 0.0
      %vm230 = vcmask 24576
      %231 = vst.msk [vmem:[#allocation2] sm:$0x1] %vm230, 0.0
      %232 = vst.msk [vmem:[#allocation2 + $0x18] sm:$0x1] %vm230, 0.0
      %233 = vst.msk [vmem:[#allocation2 + $0x30] sm:$0x1] %vm230, 0.0
      %234 = vst.msk [vmem:[#allocation2 + $0x48] sm:$0x1] %vm230, 0.0
      %235 = vst.msk [vmem:[#allocation2 + $0x60] sm:$0x1] %vm230, 0.0
      %236 = vst.msk [vmem:[#allocation2 + $0x78] sm:$0x1] %vm230, 0.0
      %237 = vst.msk [vmem:[#allocation2 + $0x90] sm:$0x1] %vm230, 0.0
      %238 = vst.msk [vmem:[#allocation2 + $0xa8] sm:$0x1] %vm230, 0.0
      %239 = vst.msk [vmem:[#allocation2 + $0xc0] sm:$0x1] %vm230, 0.0
      %240 = vst.msk [vmem:[#allocation2 + $0xd8] sm:$0x1] %vm230, 0.0
      %241 = vst.msk [vmem:[#allocation2 + $0xf0] sm:$0x1] %vm230, 0.0
      %242 = vst.msk [vmem:[#allocation2 + $0x108] sm:$0x1] %vm230, 0.0
      %243 = vst.msk [vmem:[#allocation2 + $0x120] sm:$0x1] %vm230, 0.0
      %244 = vst.msk [vmem:[#allocation2 + $0x138] sm:$0x1] %vm230, 0.0
      %245 = vst.msk [vmem:[#allocation2 + $0x150] sm:$0x1] %vm230, 0.0
      %246 = vst.msk [vmem:[#allocation2 + $0x168] sm:$0x1] %vm230, 0.0
      %247 = vst.msk [vmem:[#allocation2 + $0x180] sm:$0x1] %vm230, 0.0
      %248 = vst.msk [vmem:[#allocation2 + $0x198] sm:$0x1] %vm230, 0.0
      %249 = vst.msk [vmem:[#allocation2 + $0x11] sm:$0x1] %vm230, 0.0
      %250 = vst.msk [vmem:[#allocation2 + $0x29] sm:$0x1] %vm230, 0.0
      %251 = vst.msk [vmem:[#allocation2 + $0x41] sm:$0x1] %vm230, 0.0
      %252 = vst.msk [vmem:[#allocation2 + $0x59] sm:$0x1] %vm230, 0.0
      %253 = vst.msk [vmem:[#allocation2 + $0x71] sm:$0x1] %vm230, 0.0
      %254 = vst.msk [vmem:[#allocation2 + $0x89] sm:$0x1] %vm230, 0.0
      %255 = vst.msk [vmem:[#allocation2 + $0xa1] sm:$0x1] %vm230, 0.0
      %256 = vst.msk [vmem:[#allocation2 + $0xb9] sm:$0x1] %vm230, 0.0
      %257 = vst.msk [vmem:[#allocation2 + $0xd1] sm:$0x1] %vm230, 0.0
      %258 = vst.msk [vmem:[#allocation2 + $0xe9] sm:$0x1] %vm230, 0.0
      %259 = vst.msk [vmem:[#allocation2 + $0x101] sm:$0x1] %vm230, 0.0
      %260 = vst.msk [vmem:[#allocation2 + $0x119] sm:$0x1] %vm230, 0.0
      %261 = vst.msk [vmem:[#allocation2 + $0x131] sm:$0x1] %vm230, 0.0
      %262 = vst.msk [vmem:[#allocation2 + $0x149] sm:$0x1] %vm230, 0.0
      %263 = vst.msk [vmem:[#allocation2 + $0x161] sm:$0x1] %vm230, 0.0
      %264 = vst.msk [vmem:[#allocation2 + $0x179] sm:$0x1] %vm230, 0.0
      %265 = vst.msk [vmem:[#allocation2 + $0x191] sm:$0x1] %vm230, 0.0
      %266 = vst.msk [vmem:[#allocation2 + $0x1a9] sm:$0x1] %vm230, 0.0
      %v267 = vld [vmem:[%s217] sm:$0xff]
      %v268 = vld [vmem:[%s217 + $0x8] sm:$0xff]
      %v269 = vld [vmem:[%s217 + $0x10] sm:$0xff]
      %v270 = vld [vmem:[%s217 + $0x18] sm:$0xff]
      %v271 = vld [vmem:[%s217 + $0x20] sm:$0xff]
      %v272 = vld [vmem:[%s217 + $0x28] sm:$0xff]
      %v273 = vld [vmem:[%s217 + $0x30] sm:$0xff]
      %v274 = vld [vmem:[%s217 + $0x38] sm:$0xff]
      %v275 = vld [vmem:[%s217 + $0x40] sm:$0xff]
      %v276 = vld [vmem:[%s217 + $0x48] sm:$0xff]
      %v277 = vld [vmem:[%s217 + $0x50] sm:$0xff]
      %v278 = vld [vmem:[%s217 + $0x58] sm:$0xff]
      %v279 = vld [vmem:[%s217 + $0x60] sm:$0xff]
      %v280 = vld [vmem:[%s217 + $0x68] sm:$0xff]
      %v281 = vld [vmem:[%s217 + $0x70] sm:$0xff]
      %v282 = vld [vmem:[%s217 + $0x78] sm:$0xff]
      %v283 = vld [vmem:[%s217 + $0x80] sm:$0xff]
      %v284 = vld [vmem:[%s217 + $0x88] sm:$0xff]
      %v285 = vld [vmem:[%s217 + $0x90] sm:$0xff]
      %v286 = vld [vmem:[%s217 + $0x98] sm:$0xff]
      %v287 = vld [vmem:[%s217 + $0xa0] sm:$0xff]
      %v288 = vld [vmem:[%s217 + $0xa8] sm:$0xff]
      %v289 = vld [vmem:[%s217 + $0xb0] sm:$0xff]
      %v290 = vld [vmem:[%s217 + $0xb8] sm:$0xff]
      %v291 = vld [vmem:[%s217 + $0xc0] sm:$0xff]
      %v292 = vld [vmem:[%s217 + $0xc8] sm:$0xff]
      %v293 = vld [vmem:[%s217 + $0xd0] sm:$0xff]
      %v294 = vld [vmem:[%s217 + $0xd8] sm:$0xff]
      %v295 = vld [vmem:[%s217 + $0xe0] sm:$0xff]
      %v296 = vld [vmem:[%s217 + $0xe8] sm:$0xff]
      %v297 = vld [vmem:[%s217 + $0xf0] sm:$0xff]
      %v298 = vld [vmem:[%s217 + $0xf8] sm:$0xff]
      %v299 = vand.u32 2147483647, %v267
      %v300 = vand.u32 2147483647, %v268
      %v301 = vand.u32 2147483647, %v269
      %v302 = vand.u32 2147483647, %v270
      %v303 = vand.u32 2147483647, %v271
      %v304 = vand.u32 2147483647, %v272
      %v305 = vand.u32 2147483647, %v273
      %v306 = vand.u32 2147483647, %v274
      %v307 = vand.u32 2147483647, %v275
      %v308 = vand.u32 2147483647, %v276
      %v309 = vand.u32 2147483647, %v277
      %v310 = vand.u32 2147483647, %v278
      %v311 = vand.u32 2147483647, %v279
      %v312 = vand.u32 2147483647, %v280
      %v313 = vand.u32 2147483647, %v281
      %v314 = vand.u32 2147483647, %v282
      %v315 = vand.u32 2147483647, %v283
      %v316 = vand.u32 2147483647, %v284
      %v317 = vand.u32 2147483647, %v285
      %v318 = vand.u32 2147483647, %v286
      %v319 = vand.u32 2147483647, %v287
      %v320 = vand.u32 2147483647, %v288
      %v321 = vand.u32 2147483647, %v289
      %v322 = vand.u32 2147483647, %v290
      %v323 = vand.u32 2147483647, %v291
      %v324 = vand.u32 2147483647, %v292
      %v325 = vand.u32 2147483647, %v293
      %v326 = vand.u32 2147483647, %v294
      %v327 = vand.u32 2147483647, %v295
      %v328 = vand.u32 2147483647, %v296
      %v329 = vand.u32 2147483647, %v297
      %v330 = vand.u32 2147483647, %v298
      %s331 = scalar_lea.vmem [#allocation2], 24
      %332 = vst.msk [vmem:[%s331 + $0x1] sm:$0xff] %vm221, %v299
      %333 = vst.msk [vmem:[%s331 + $0x9] sm:$0xff] %vm221, %v300
      %334 = vst.msk [vmem:[%s331 + $0x19] sm:$0xff] %vm221, %v301
      %335 = vst.msk [vmem:[%s331 + $0x21] sm:$0xff] %vm221, %v302
      %336 = vst.msk [vmem:[%s331 + $0x31] sm:$0xff] %vm221, %v303
      %337 = vst.msk [vmem:[%s331 + $0x39] sm:$0xff] %vm221, %v304
      %338 = vst.msk [vmem:[%s331 + $0x49] sm:$0xff] %vm221, %v305
      %339 = vst.msk [vmem:[%s331 + $0x51] sm:$0xff] %vm221, %v306
      %340 = vst.msk [vmem:[%s331 + $0x61] sm:$0xff] %vm221, %v307
      %341 = vst.msk [vmem:[%s331 + $0x69] sm:$0xff] %vm221, %v308
      %342 = vst.msk [vmem:[%s331 + $0x79] sm:$0xff] %vm221, %v309
      %343 = vst.msk [vmem:[%s331 + $0x81] sm:$0xff] %vm221, %v310
      %344 = vst.msk [vmem:[%s331 + $0x91] sm:$0xff] %vm221, %v311
      %345 = vst.msk [vmem:[%s331 + $0x99] sm:$0xff] %vm221, %v312
      %346 = vst.msk [vmem:[%s331 + $0xa9] sm:$0xff] %vm221, %v313
      %347 = vst.msk [vmem:[%s331 + $0xb1] sm:$0xff] %vm221, %v314
      %348 = vst.msk [vmem:[%s331 + $0xc1] sm:$0xff] %vm221, %v315
      %349 = vst.msk [vmem:[%s331 + $0xc9] sm:$0xff] %vm221, %v316
      %350 = vst.msk [vmem:[%s331 + $0xd9] sm:$0xff] %vm221, %v317
      %351 = vst.msk [vmem:[%s331 + $0xe1] sm:$0xff] %vm221, %v318
      %352 = vst.msk [vmem:[%s331 + $0xf1] sm:$0xff] %vm221, %v319
      %353 = vst.msk [vmem:[%s331 + $0xf9] sm:$0xff] %vm221, %v320
      %354 = vst.msk [vmem:[%s331 + $0x109] sm:$0xff] %vm221, %v321
      %355 = vst.msk [vmem:[%s331 + $0x111] sm:$0xff] %vm221, %v322
      %356 = vst.msk [vmem:[%s331 + $0x121] sm:$0xff] %vm221, %v323
      %357 = vst.msk [vmem:[%s331 + $0x129] sm:$0xff] %vm221, %v324
      %358 = vst.msk [vmem:[%s331 + $0x139] sm:$0xff] %vm221, %v325
      %359 = vst.msk [vmem:[%s331 + $0x141] sm:$0xff] %vm221, %v326
      %360 = vst.msk [vmem:[%s331 + $0x151] sm:$0xff] %vm221, %v327
      %361 = vst.msk [vmem:[%s331 + $0x159] sm:$0xff] %vm221, %v328
      %362 = vst.msk [vmem:[%s331 + $0x169] sm:$0xff] %vm221, %v329
      %363 = vst.msk [vmem:[%s331 + $0x171] sm:$0xff] %vm221, %v330
      %v364 = vld [vmem:[#allocation2] sm:$0xff]
      %v365 = vld [vmem:[#allocation2 + $0x8] sm:$0xff]
      %v366 = vld [vmem:[#allocation2 + $0x18] sm:$0xff]
      %v367 = vld [vmem:[#allocation2 + $0x20] sm:$0xff]
      %v368 = vld [vmem:[#allocation2 + $0x30] sm:$0xff]
      %v369 = vld [vmem:[#allocation2 + $0x38] sm:$0xff]
      %v370 = vld [vmem:[#allocation2 + $0x48] sm:$0xff]
      %v371 = vld [vmem:[#allocation2 + $0x50] sm:$0xff]
      %v372 = vld [vmem:[#allocation2 + $0x60] sm:$0xff]
      %v373 = vld [vmem:[#allocation2 + $0x68] sm:$0xff]
      %v374 = vld [vmem:[#allocation2 + $0x78] sm:$0xff]
      %v375 = vld [vmem:[#allocation2 + $0x80] sm:$0xff]
      %v376 = vld [vmem:[#allocation2 + $0x90] sm:$0xff]
      %v377 = vld [vmem:[#allocation2 + $0x98] sm:$0xff]
      %v378 = vld [vmem:[#allocation2 + $0xa8] sm:$0xff]
      %v379 = vld [vmem:[#allocation2 + $0xb0] sm:$0xff]
      %v380 = vld [vmem:[#allocation2 + $0xc0] sm:$0xff]
      %v381 = vld [vmem:[#allocation2 + $0xc8] sm:$0xff]
      %v382 = vld [vmem:[#allocation2 + $0xd8] sm:$0xff]
      %v383 = vld [vmem:[#allocation2 + $0xe0] sm:$0xff]
      %v384 = vld [vmem:[#allocation2 + $0xf0] sm:$0xff]
      %v385 = vld [vmem:[#allocation2 + $0xf8] sm:$0xff]
      %v386 = vld [vmem:[#allocation2 + $0x108] sm:$0xff]
      %v387 = vld [vmem:[#allocation2 + $0x110] sm:$0xff]
      %v388 = vld [vmem:[#allocation2 + $0x120] sm:$0xff]
      %v389 = vld [vmem:[#allocation2 + $0x128] sm:$0xff]
      %v390 = vld [vmem:[#allocation2 + $0x138] sm:$0xff]
      %v391 = vld [vmem:[#allocation2 + $0x140] sm:$0xff]
      %v392 = vld [vmem:[#allocation2 + $0x150] sm:$0xff]
      %v393 = vld [vmem:[#allocation2 + $0x158] sm:$0xff]
      %v394 = vld [vmem:[#allocation2 + $0x168] sm:$0xff]
      %v395 = vld [vmem:[#allocation2 + $0x170] sm:$0xff]
      %v396 = vld [vmem:[#allocation2 + $0x1] sm:$0xff]
      %v397 = vld [vmem:[#allocation2 + $0x9] sm:$0xff]
      %v398 = vld [vmem:[#allocation2 + $0x19] sm:$0xff]
      %v399 = vld [vmem:[#allocation2 + $0x21] sm:$0xff]
      %v400 = vld [vmem:[#allocation2 + $0x31] sm:$0xff]
      %v401 = vld [vmem:[#allocation2 + $0x39] sm:$0xff]
      %v402 = vld [vmem:[#allocation2 + $0x49] sm:$0xff]
      %v403 = vld [vmem:[#allocation2 + $0x51] sm:$0xff]
      %v404 = vld [vmem:[#allocation2 + $0x61] sm:$0xff]
      %v405 = vld [vmem:[#allocation2 + $0x69] sm:$0xff]
      %v406 = vld [vmem:[#allocation2 + $0x79] sm:$0xff]
      %v407 = vld [vmem:[#allocation2 + $0x81] sm:$0xff]
      %v408 = vld [vmem:[#allocation2 + $0x91] sm:$0xff]
      %v409 = vld [vmem:[#allocation2 + $0x99] sm:$0xff]
      %v410 = vld [vmem:[#allocation2 + $0xa9] sm:$0xff]
      %v411 = vld [vmem:[#allocation2 + $0xb1] sm:$0xff]
      %v412 = vld [vmem:[#allocation2 + $0xc1] sm:$0xff]
      %v413 = vld [vmem:[#allocation2 + $0xc9] sm:$0xff]
      %v414 = vld [vmem:[#allocation2 + $0xd9] sm:$0xff]
      %v415 = vld [vmem:[#allocation2 + $0xe1] sm:$0xff]
      %v416 = vld [vmem:[#allocation2 + $0xf1] sm:$0xff]
      %v417 = vld [vmem:[#allocation2 + $0xf9] sm:$0xff]
      %v418 = vld [vmem:[#allocation2 + $0x109] sm:$0xff]
      %v419 = vld [vmem:[#allocation2 + $0x111] sm:$0xff]
      %v420 = vld [vmem:[#allocation2 + $0x121] sm:$0xff]
      %v421 = vld [vmem:[#allocation2 + $0x129] sm:$0xff]
      %v422 = vld [vmem:[#allocation2 + $0x139] sm:$0xff]
      %v423 = vld [vmem:[#allocation2 + $0x141] sm:$0xff]
      %v424 = vld [vmem:[#allocation2 + $0x151] sm:$0xff]
      %v425 = vld [vmem:[#allocation2 + $0x159] sm:$0xff]
      %v426 = vld [vmem:[#allocation2 + $0x169] sm:$0xff]
      %v427 = vld [vmem:[#allocation2 + $0x171] sm:$0xff]
      %v428 = vld [vmem:[#allocation2 + $0x2] sm:$0xff]
      %v429 = vld [vmem:[#allocation2 + $0xa] sm:$0xff]
      %v430 = vld [vmem:[#allocation2 + $0x1a] sm:$0xff]
      %v431 = vld [vmem:[#allocation2 + $0x22] sm:$0xff]
      %v432 = vld [vmem:[#allocation2 + $0x32] sm:$0xff]
      %v433 = vld [vmem:[#allocation2 + $0x3a] sm:$0xff]
      %v434 = vld [vmem:[#allocation2 + $0x4a] sm:$0xff]
      %v435 = vld [vmem:[#allocation2 + $0x52] sm:$0xff]
      %v436 = vld [vmem:[#allocation2 + $0x62] sm:$0xff]
      %v437 = vld [vmem:[#allocation2 + $0x6a] sm:$0xff]
      %v438 = vld [vmem:[#allocation2 + $0x7a] sm:$0xff]
      %v439 = vld [vmem:[#allocation2 + $0x82] sm:$0xff]
      %v440 = vld [vmem:[#allocation2 + $0x92] sm:$0xff]
      %v441 = vld [vmem:[#allocation2 + $0x9a] sm:$0xff]
      %v442 = vld [vmem:[#allocation2 + $0xaa] sm:$0xff]
      %v443 = vld [vmem:[#allocation2 + $0xb2] sm:$0xff]
      %v444 = vld [vmem:[#allocation2 + $0xc2] sm:$0xff]
      %v445 = vld [vmem:[#allocation2 + $0xca] sm:$0xff]
      %v446 = vld [vmem:[#allocation2 + $0xda] sm:$0xff]
      %v447 = vld [vmem:[#allocation2 + $0xe2] sm:$0xff]
      %v448 = vld [vmem:[#allocation2 + $0xf2] sm:$0xff]
      %v449 = vld [vmem:[#allocation2 + $0xfa] sm:$0xff]
      %v450 = vld [vmem:[#allocation2 + $0x10a] sm:$0xff]
      %v451 = vld [vmem:[#allocation2 + $0x112] sm:$0xff]
      %v452 = vld [vmem:[#allocation2 + $0x122] sm:$0xff]
      %v453 = vld [vmem:[#allocation2 + $0x12a] sm:$0xff]
      %v454 = vld [vmem:[#allocation2 + $0x13a] sm:$0xff]
      %v455 = vld [vmem:[#allocation2 + $0x142] sm:$0xff]
      %v456 = vld [vmem:[#allocation2 + $0x152] sm:$0xff]
      %v457 = vld [vmem:[#allocation2 + $0x15a] sm:$0xff]
      %v458 = vld [vmem:[#allocation2 + $0x16a] sm:$0xff]
      %v459 = vld [vmem:[#allocation2 + $0x172] sm:$0xff]
      %v460 = vld [vmem:[%s331] sm:$0xff]
      %v461 = vld [vmem:[%s331 + $0x8] sm:$0xff]
      %v462 = vld [vmem:[%s331 + $0x18] sm:$0xff]
      %v463 = vld [vmem:[%s331 + $0x20] sm:$0xff]
      %v464 = vld [vmem:[%s331 + $0x30] sm:$0xff]
      %v465 = vld [vmem:[%s331 + $0x38] sm:$0xff]
      %v466 = vld [vmem:[%s331 + $0x48] sm:$0xff]
      %v467 = vld [vmem:[%s331 + $0x50] sm:$0xff]
      %v468 = vld [vmem:[%s331 + $0x60] sm:$0xff]
      %v469 = vld [vmem:[%s331 + $0x68] sm:$0xff]
      %v470 = vld [vmem:[%s331 + $0x78] sm:$0xff]
      %v471 = vld [vmem:[%s331 + $0x80] sm:$0xff]
      %v472 = vld [vmem:[%s331 + $0x90] sm:$0xff]
      %v473 = vld [vmem:[%s331 + $0x98] sm:$0xff]
      %v474 = vld [vmem:[%s331 + $0xa8] sm:$0xff]
      %v475 = vld [vmem:[%s331 + $0xb0] sm:$0xff]
      %v476 = vld [vmem:[%s331 + $0xc0] sm:$0xff]
      %v477 = vld [vmem:[%s331 + $0xc8] sm:$0xff]
      %v478 = vld [vmem:[%s331 + $0xd8] sm:$0xff]
      %v479 = vld [vmem:[%s331 + $0xe0] sm:$0xff]
      %v480 = vld [vmem:[%s331 + $0xf0] sm:$0xff]
      %v481 = vld [vmem:[%s331 + $0xf8] sm:$0xff]
      %v482 = vld [vmem:[%s331 + $0x108] sm:$0xff]
      %v483 = vld [vmem:[%s331 + $0x110] sm:$0xff]
      %v484 = vld [vmem:[%s331 + $0x120] sm:$0xff]
      %v485 = vld [vmem:[%s331 + $0x128] sm:$0xff]
      %v486 = vld [vmem:[%s331 + $0x138] sm:$0xff]
      %v487 = vld [vmem:[%s331 + $0x140] sm:$0xff]
      %v488 = vld [vmem:[%s331 + $0x150] sm:$0xff]
      %v489 = vld [vmem:[%s331 + $0x158] sm:$0xff]
      %v490 = vld [vmem:[%s331 + $0x168] sm:$0xff]
      %v491 = vld [vmem:[%s331 + $0x170] sm:$0xff]
      %v492 = vld [vmem:[%s331 + $0x1] sm:$0xff]
      %v493 = vld [vmem:[%s331 + $0x9] sm:$0xff]
      %v494 = vld [vmem:[%s331 + $0x19] sm:$0xff]
      %v495 = vld [vmem:[%s331 + $0x21] sm:$0xff]
      %v496 = vld [vmem:[%s331 + $0x31] sm:$0xff]
      %v497 = vld [vmem:[%s331 + $0x39] sm:$0xff]
      %v498 = vld [vmem:[%s331 + $0x49] sm:$0xff]
      %v499 = vld [vmem:[%s331 + $0x51] sm:$0xff]
      %v500 = vld [vmem:[%s331 + $0x61] sm:$0xff]
      %v501 = vld [vmem:[%s331 + $0x69] sm:$0xff]
      %v502 = vld [vmem:[%s331 + $0x79] sm:$0xff]
      %v503 = vld [vmem:[%s331 + $0x81] sm:$0xff]
      %v504 = vld [vmem:[%s331 + $0x91] sm:$0xff]
      %v505 = vld [vmem:[%s331 + $0x99] sm:$0xff]
      %v506 = vld [vmem:[%s331 + $0xa9] sm:$0xff]
      %v507 = vld [vmem:[%s331 + $0xb1] sm:$0xff]
      %v508 = vld [vmem:[%s331 + $0xc1] sm:$0xff]
      %v509 = vld [vmem:[%s331 + $0xc9] sm:$0xff]
      %v510 = vld [vmem:[%s331 + $0xd9] sm:$0xff]
      %v511 = vld [vmem:[%s331 + $0xe1] sm:$0xff]
      %v512 = vld [vmem:[%s331 + $0xf1] sm:$0xff]
      %v513 = vld [vmem:[%s331 + $0xf9] sm:$0xff]
      %v514 = vld [vmem:[%s331 + $0x109] sm:$0xff]
      %v515 = vld [vmem:[%s331 + $0x111] sm:$0xff]
      %v516 = vld [vmem:[%s331 + $0x121] sm:$0xff]
      %v517 = vld [vmem:[%s331 + $0x129] sm:$0xff]
      %v518 = vld [vmem:[%s331 + $0x139] sm:$0xff]
      %v519 = vld [vmem:[%s331 + $0x141] sm:$0xff]
      %v520 = vld [vmem:[%s331 + $0x151] sm:$0xff]
      %v521 = vld [vmem:[%s331 + $0x159] sm:$0xff]
      %v522 = vld [vmem:[%s331 + $0x169] sm:$0xff]
      %v523 = vld [vmem:[%s331 + $0x171] sm:$0xff]
      %v524 = vld [vmem:[%s331 + $0x2] sm:$0xff]
      %v525 = vld [vmem:[%s331 + $0xa] sm:$0xff]
      %v526 = vld [vmem:[%s331 + $0x1a] sm:$0xff]
      %v527 = vld [vmem:[%s331 + $0x22] sm:$0xff]
      %v528 = vld [vmem:[%s331 + $0x32] sm:$0xff]
      %v529 = vld [vmem:[%s331 + $0x3a] sm:$0xff]
      %v530 = vld [vmem:[%s331 + $0x4a] sm:$0xff]
      %v531 = vld [vmem:[%s331 + $0x52] sm:$0xff]
      %v532 = vld [vmem:[%s331 + $0x62] sm:$0xff]
      %v533 = vld [vmem:[%s331 + $0x6a] sm:$0xff]
      %v534 = vld [vmem:[%s331 + $0x7a] sm:$0xff]
      %v535 = vld [vmem:[%s331 + $0x82] sm:$0xff]
      %v536 = vld [vmem:[%s331 + $0x92] sm:$0xff]
      %v537 = vld [vmem:[%s331 + $0x9a] sm:$0xff]
      %v538 = vld [vmem:[%s331 + $0xaa] sm:$0xff]
      %v539 = vld [vmem:[%s331 + $0xb2] sm:$0xff]
      %v540 = vld [vmem:[%s331 + $0xc2] sm:$0xff]
      %v541 = vld [vmem:[%s331 + $0xca] sm:$0xff]
      %v542 = vld [vmem:[%s331 + $0xda] sm:$0xff]
      %v543 = vld [vmem:[%s331 + $0xe2] sm:$0xff]
      %v544 = vld [vmem:[%s331 + $0xf2] sm:$0xff]
      %v545 = vld [vmem:[%s331 + $0xfa] sm:$0xff]
      %v546 = vld [vmem:[%s331 + $0x10a] sm:$0xff]
      %v547 = vld [vmem:[%s331 + $0x112] sm:$0xff]
      %v548 = vld [vmem:[%s331 + $0x122] sm:$0xff]
      %v549 = vld [vmem:[%s331 + $0x12a] sm:$0xff]
      %v550 = vld [vmem:[%s331 + $0x13a] sm:$0xff]
      %v551 = vld [vmem:[%s331 + $0x142] sm:$0xff]
      %v552 = vld [vmem:[%s331 + $0x152] sm:$0xff]
      %v553 = vld [vmem:[%s331 + $0x15a] sm:$0xff]
      %v554 = vld [vmem:[%s331 + $0x16a] sm:$0xff]
      %v555 = vld [vmem:[%s331 + $0x172] sm:$0xff]
      %s556 = scalar_lea.vmem [#allocation2], 48
      %v557 = vld [vmem:[%s556] sm:$0xff]
      %v558 = vld [vmem:[%s556 + $0x8] sm:$0xff]
      %v559 = vld [vmem:[%s556 + $0x18] sm:$0xff]
      %v560 = vld [vmem:[%s556 + $0x20] sm:$0xff]
      %v561 = vld [vmem:[%s556 + $0x30] sm:$0xff]
      %v562 = vld [vmem:[%s556 + $0x38] sm:$0xff]
      %v563 = vld [vmem:[%s556 + $0x48] sm:$0xff]
      %v564 = vld [vmem:[%s556 + $0x50] sm:$0xff]
      %v565 = vld [vmem:[%s556 + $0x60] sm:$0xff]
      %v566 = vld [vmem:[%s556 + $0x68] sm:$0xff]
      %v567 = vld [vmem:[%s556 + $0x78] sm:$0xff]
      %v568 = vld [vmem:[%s556 + $0x80] sm:$0xff]
      %v569 = vld [vmem:[%s556 + $0x90] sm:$0xff]
      %v570 = vld [vmem:[%s556 + $0x98] sm:$0xff]
      %v571 = vld [vmem:[%s556 + $0xa8] sm:$0xff]
      %v572 = vld [vmem:[%s556 + $0xb0] sm:$0xff]
      %v573 = vld [vmem:[%s556 + $0xc0] sm:$0xff]
      %v574 = vld [vmem:[%s556 + $0xc8] sm:$0xff]
      %v575 = vld [vmem:[%s556 + $0xd8] sm:$0xff]
      %v576 = vld [vmem:[%s556 + $0xe0] sm:$0xff]
      %v577 = vld [vmem:[%s556 + $0xf0] sm:$0xff]
      %v578 = vld [vmem:[%s556 + $0xf8] sm:$0xff]
      %v579 = vld [vmem:[%s556 + $0x108] sm:$0xff]
      %v580 = vld [vmem:[%s556 + $0x110] sm:$0xff]
      %v581 = vld [vmem:[%s556 + $0x120] sm:$0xff]
      %v582 = vld [vmem:[%s556 + $0x128] sm:$0xff]
      %v583 = vld [vmem:[%s556 + $0x138] sm:$0xff]
      %v584 = vld [vmem:[%s556 + $0x140] sm:$0xff]
      %v585 = vld [vmem:[%s556 + $0x150] sm:$0xff]
      %v586 = vld [vmem:[%s556 + $0x158] sm:$0xff]
      %v587 = vld [vmem:[%s556 + $0x168] sm:$0xff]
      %v588 = vld [vmem:[%s556 + $0x170] sm:$0xff]
      %v589 = vld [vmem:[%s556 + $0x1] sm:$0xff]
      %v590 = vld [vmem:[%s556 + $0x9] sm:$0xff]
      %v591 = vld [vmem:[%s556 + $0x19] sm:$0xff]
      %v592 = vld [vmem:[%s556 + $0x21] sm:$0xff]
      %v593 = vld [vmem:[%s556 + $0x31] sm:$0xff]
      %v594 = vld [vmem:[%s556 + $0x39] sm:$0xff]
      %v595 = vld [vmem:[%s556 + $0x49] sm:$0xff]
      %v596 = vld [vmem:[%s556 + $0x51] sm:$0xff]
      %v597 = vld [vmem:[%s556 + $0x61] sm:$0xff]
      %v598 = vld [vmem:[%s556 + $0x69] sm:$0xff]
      %v599 = vld [vmem:[%s556 + $0x79] sm:$0xff]
      %v600 = vld [vmem:[%s556 + $0x81] sm:$0xff]
      %v601 = vld [vmem:[%s556 + $0x91] sm:$0xff]
      %v602 = vld [vmem:[%s556 + $0x99] sm:$0xff]
      %v603 = vld [vmem:[%s556 + $0xa9] sm:$0xff]
      %v604 = vld [vmem:[%s556 + $0xb1] sm:$0xff]
      %v605 = vld [vmem:[%s556 + $0xc1] sm:$0xff]
      %v606 = vld [vmem:[%s556 + $0xc9] sm:$0xff]
      %v607 = vld [vmem:[%s556 + $0xd9] sm:$0xff]
      %v608 = vld [vmem:[%s556 + $0xe1] sm:$0xff]
      %v609 = vld [vmem:[%s556 + $0xf1] sm:$0xff]
      %v610 = vld [vmem:[%s556 + $0xf9] sm:$0xff]
      %v611 = vld [vmem:[%s556 + $0x109] sm:$0xff]
      %v612 = vld [vmem:[%s556 + $0x111] sm:$0xff]
      %v613 = vld [vmem:[%s556 + $0x121] sm:$0xff]
      %v614 = vld [vmem:[%s556 + $0x129] sm:$0xff]
      %v615 = vld [vmem:[%s556 + $0x139] sm:$0xff]
      %v616 = vld [vmem:[%s556 + $0x141] sm:$0xff]
      %v617 = vld [vmem:[%s556 + $0x151] sm:$0xff]
      %v618 = vld [vmem:[%s556 + $0x159] sm:$0xff]
      %v619 = vld [vmem:[%s556 + $0x169] sm:$0xff]
      %v620 = vld [vmem:[%s556 + $0x171] sm:$0xff]
      %v621 = vld [vmem:[%s556 + $0x2] sm:$0xff]
      %v622 = vld [vmem:[%s556 + $0xa] sm:$0xff]
      %v623 = vld [vmem:[%s556 + $0x1a] sm:$0xff]
      %v624 = vld [vmem:[%s556 + $0x22] sm:$0xff]
      %v625 = vld [vmem:[%s556 + $0x32] sm:$0xff]
      %v626 = vld [vmem:[%s556 + $0x3a] sm:$0xff]
      %v627 = vld [vmem:[%s556 + $0x4a] sm:$0xff]
      %v628 = vld [vmem:[%s556 + $0x52] sm:$0xff]
      %v629 = vld [vmem:[%s556 + $0x62] sm:$0xff]
      %v630 = vld [vmem:[%s556 + $0x6a] sm:$0xff]
      %v631 = vld [vmem:[%s556 + $0x7a] sm:$0xff]
      %v632 = vld [vmem:[%s556 + $0x82] sm:$0xff]
      %v633 = vld [vmem:[%s556 + $0x92] sm:$0xff]
      %v634 = vld [vmem:[%s556 + $0x9a] sm:$0xff]
      %v635 = vld [vmem:[%s556 + $0xaa] sm:$0xff]
      %v636 = vld [vmem:[%s556 + $0xb2] sm:$0xff]
      %v637 = vld [vmem:[%s556 + $0xc2] sm:$0xff]
      %v638 = vld [vmem:[%s556 + $0xca] sm:$0xff]
      %v639 = vld [vmem:[%s556 + $0xda] sm:$0xff]
      %v640 = vld [vmem:[%s556 + $0xe2] sm:$0xff]
      %v641 = vld [vmem:[%s556 + $0xf2] sm:$0xff]
      %v642 = vld [vmem:[%s556 + $0xfa] sm:$0xff]
      %v643 = vld [vmem:[%s556 + $0x10a] sm:$0xff]
      %v644 = vld [vmem:[%s556 + $0x112] sm:$0xff]
      %v645 = vld [vmem:[%s556 + $0x122] sm:$0xff]
      %v646 = vld [vmem:[%s556 + $0x12a] sm:$0xff]
      %v647 = vld [vmem:[%s556 + $0x13a] sm:$0xff]
      %v648 = vld [vmem:[%s556 + $0x142] sm:$0xff]
      %v649 = vld [vmem:[%s556 + $0x152] sm:$0xff]
      %v650 = vld [vmem:[%s556 + $0x15a] sm:$0xff]
      %v651 = vld [vmem:[%s556 + $0x16a] sm:$0xff]
      %v652 = vld [vmem:[%s556 + $0x172] sm:$0xff]
      %685 = vrot.lane.b32.xlu0 %v396, 4
      %v686 = vpop.permute.xlu0 %685
      %687 = vrot.lane.b32.xlu0 %v397, 4
      %v688 = vpop.permute.xlu0 %687
      %689 = vrot.lane.b32.xlu0 %v398, 4
      %v690 = vpop.permute.xlu0 %689
      %691 = vrot.lane.b32.xlu0 %v399, 4
      %v692 = vpop.permute.xlu0 %691
      %693 = vrot.lane.b32.xlu0 %v400, 4
      %v694 = vpop.permute.xlu0 %693
      %695 = vrot.lane.b32.xlu0 %v401, 4
      %v696 = vpop.permute.xlu0 %695
      %697 = vrot.lane.b32.xlu0 %v402, 4
      %v698 = vpop.permute.xlu0 %697
      %699 = vrot.lane.b32.xlu0 %v403, 4
      %v700 = vpop.permute.xlu0 %699
      %701 = vrot.lane.b32.xlu0 %v404, 4
      %v702 = vpop.permute.xlu0 %701
      %703 = vrot.lane.b32.xlu0 %v405, 4
      %v704 = vpop.permute.xlu0 %703
      %705 = vrot.lane.b32.xlu0 %v406, 4
      %v706 = vpop.permute.xlu0 %705
      %707 = vrot.lane.b32.xlu0 %v407, 4
      %v708 = vpop.permute.xlu0 %707
      %709 = vrot.lane.b32.xlu0 %v408, 4
      %v710 = vpop.permute.xlu0 %709
      %711 = vrot.lane.b32.xlu0 %v409, 4
      %v712 = vpop.permute.xlu0 %711
      %713 = vrot.lane.b32.xlu0 %v410, 4
      %v714 = vpop.permute.xlu0 %713
      %715 = vrot.lane.b32.xlu0 %v411, 4
      %v716 = vpop.permute.xlu0 %715
      %717 = vrot.lane.b32.xlu0 %v412, 4
      %v718 = vpop.permute.xlu0 %717
      %719 = vrot.lane.b32.xlu0 %v413, 4
      %v720 = vpop.permute.xlu0 %719
      %721 = vrot.lane.b32.xlu0 %v414, 4
      %v722 = vpop.permute.xlu0 %721
      %723 = vrot.lane.b32.xlu0 %v415, 4
      %v724 = vpop.permute.xlu0 %723
      %725 = vrot.lane.b32.xlu0 %v416, 4
      %v726 = vpop.permute.xlu0 %725
      %727 = vrot.lane.b32.xlu0 %v417, 4
      %v728 = vpop.permute.xlu0 %727
      %729 = vrot.lane.b32.xlu0 %v418, 4
      %v730 = vpop.permute.xlu0 %729
      %731 = vrot.lane.b32.xlu0 %v419, 4
      %v732 = vpop.permute.xlu0 %731
      %733 = vrot.lane.b32.xlu0 %v420, 4
      %v734 = vpop.permute.xlu0 %733
      %735 = vrot.lane.b32.xlu0 %v421, 4
      %v736 = vpop.permute.xlu0 %735
      %737 = vrot.lane.b32.xlu0 %v422, 4
      %v738 = vpop.permute.xlu0 %737
      %739 = vrot.lane.b32.xlu0 %v423, 4
      %v740 = vpop.permute.xlu0 %739
      %741 = vrot.lane.b32.xlu0 %v424, 4
      %v742 = vpop.permute.xlu0 %741
      %743 = vrot.lane.b32.xlu0 %v425, 4
      %v744 = vpop.permute.xlu0 %743
      %745 = vrot.lane.b32.xlu0 %v426, 4
      %v746 = vpop.permute.xlu0 %745
      %747 = vrot.lane.b32.xlu0 %v427, 4
      %v748 = vpop.permute.xlu0 %747
      %813 = vrot.lane.b32.xlu0 %v428, 8
      %v814 = vpop.permute.xlu0 %813
      %815 = vrot.lane.b32.xlu0 %v429, 8
      %v816 = vpop.permute.xlu0 %815
      %817 = vrot.lane.b32.xlu0 %v430, 8
      %v818 = vpop.permute.xlu0 %817
      %819 = vrot.lane.b32.xlu0 %v431, 8
      %v820 = vpop.permute.xlu0 %819
      %821 = vrot.lane.b32.xlu0 %v432, 8
      %v822 = vpop.permute.xlu0 %821
      %823 = vrot.lane.b32.xlu0 %v433, 8
      %v824 = vpop.permute.xlu0 %823
      %825 = vrot.lane.b32.xlu0 %v434, 8
      %v826 = vpop.permute.xlu0 %825
      %827 = vrot.lane.b32.xlu0 %v435, 8
      %v828 = vpop.permute.xlu0 %827
      %829 = vrot.lane.b32.xlu0 %v436, 8
      %v830 = vpop.permute.xlu0 %829
      %831 = vrot.lane.b32.xlu0 %v437, 8
      %v832 = vpop.permute.xlu0 %831
      %833 = vrot.lane.b32.xlu0 %v438, 8
      %v834 = vpop.permute.xlu0 %833
      %835 = vrot.lane.b32.xlu0 %v439, 8
      %v836 = vpop.permute.xlu0 %835
      %837 = vrot.lane.b32.xlu0 %v440, 8
      %v838 = vpop.permute.xlu0 %837
      %839 = vrot.lane.b32.xlu0 %v441, 8
      %v840 = vpop.permute.xlu0 %839
      %841 = vrot.lane.b32.xlu0 %v442, 8
      %v842 = vpop.permute.xlu0 %841
      %843 = vrot.lane.b32.xlu0 %v443, 8
      %v844 = vpop.permute.xlu0 %843
      %845 = vrot.lane.b32.xlu0 %v444, 8
      %v846 = vpop.permute.xlu0 %845
      %847 = vrot.lane.b32.xlu0 %v445, 8
      %v848 = vpop.permute.xlu0 %847
      %849 = vrot.lane.b32.xlu0 %v446, 8
      %v850 = vpop.permute.xlu0 %849
      %851 = vrot.lane.b32.xlu0 %v447, 8
      %v852 = vpop.permute.xlu0 %851
      %853 = vrot.lane.b32.xlu0 %v448, 8
      %v854 = vpop.permute.xlu0 %853
      %855 = vrot.lane.b32.xlu0 %v449, 8
      %v856 = vpop.permute.xlu0 %855
      %857 = vrot.lane.b32.xlu0 %v450, 8
      %v858 = vpop.permute.xlu0 %857
      %859 = vrot.lane.b32.xlu0 %v451, 8
      %v860 = vpop.permute.xlu0 %859
      %861 = vrot.lane.b32.xlu0 %v452, 8
      %v862 = vpop.permute.xlu0 %861
      %863 = vrot.lane.b32.xlu0 %v453, 8
      %v864 = vpop.permute.xlu0 %863
      %865 = vrot.lane.b32.xlu0 %v454, 8
      %v866 = vpop.permute.xlu0 %865
      %867 = vrot.lane.b32.xlu0 %v455, 8
      %v868 = vpop.permute.xlu0 %867
      %869 = vrot.lane.b32.xlu0 %v456, 8
      %v870 = vpop.permute.xlu0 %869
      %871 = vrot.lane.b32.xlu0 %v457, 8
      %v872 = vpop.permute.xlu0 %871
      %873 = vrot.lane.b32.xlu0 %v458, 8
      %v874 = vpop.permute.xlu0 %873
      %875 = vrot.lane.b32.xlu0 %v459, 8
      %v876 = vpop.permute.xlu0 %875
      %941 = vrot.lane.b32.xlu0 %v460, 12
      %v942 = vpop.permute.xlu0 %941
      %943 = vrot.lane.b32.xlu0 %v461, 12
      %v944 = vpop.permute.xlu0 %943
      %945 = vrot.lane.b32.xlu0 %v462, 12
      %v946 = vpop.permute.xlu0 %945
      %947 = vrot.lane.b32.xlu0 %v463, 12
      %v948 = vpop.permute.xlu0 %947
      %949 = vrot.lane.b32.xlu0 %v464, 12
      %v950 = vpop.permute.xlu0 %949
      %951 = vrot.lane.b32.xlu0 %v465, 12
      %v952 = vpop.permute.xlu0 %951
      %953 = vrot.lane.b32.xlu0 %v466, 12
      %v954 = vpop.permute.xlu0 %953
      %955 = vrot.lane.b32.xlu0 %v467, 12
      %v956 = vpop.permute.xlu0 %955
      %957 = vrot.lane.b32.xlu0 %v468, 12
      %v958 = vpop.permute.xlu0 %957
      %959 = vrot.lane.b32.xlu0 %v469, 12
      %v960 = vpop.permute.xlu0 %959
      %961 = vrot.lane.b32.xlu0 %v470, 12
      %v962 = vpop.permute.xlu0 %961
      %963 = vrot.lane.b32.xlu0 %v471, 12
      %v964 = vpop.permute.xlu0 %963
      %965 = vrot.lane.b32.xlu0 %v472, 12
      %v966 = vpop.permute.xlu0 %965
      %967 = vrot.lane.b32.xlu0 %v473, 12
      %v968 = vpop.permute.xlu0 %967
      %969 = vrot.lane.b32.xlu0 %v474, 12
      %v970 = vpop.permute.xlu0 %969
      %971 = vrot.lane.b32.xlu0 %v475, 12
      %v972 = vpop.permute.xlu0 %971
      %973 = vrot.lane.b32.xlu0 %v476, 12
      %v974 = vpop.permute.xlu0 %973
      %975 = vrot.lane.b32.xlu0 %v477, 12
      %v976 = vpop.permute.xlu0 %975
      %977 = vrot.lane.b32.xlu0 %v478, 12
      %v978 = vpop.permute.xlu0 %977
      %979 = vrot.lane.b32.xlu0 %v479, 12
      %v980 = vpop.permute.xlu0 %979
      %981 = vrot.lane.b32.xlu0 %v480, 12
      %v982 = vpop.permute.xlu0 %981
      %983 = vrot.lane.b32.xlu0 %v481, 12
      %v984 = vpop.permute.xlu0 %983
      %985 = vrot.lane.b32.xlu0 %v482, 12
      %v986 = vpop.permute.xlu0 %985
      %987 = vrot.lane.b32.xlu0 %v483, 12
      %v988 = vpop.permute.xlu0 %987
      %989 = vrot.lane.b32.xlu0 %v484, 12
      %v990 = vpop.permute.xlu0 %989
      %991 = vrot.lane.b32.xlu0 %v485, 12
      %v992 = vpop.permute.xlu0 %991
      %993 = vrot.lane.b32.xlu0 %v486, 12
      %v994 = vpop.permute.xlu0 %993
      %995 = vrot.lane.b32.xlu0 %v487, 12
      %v996 = vpop.permute.xlu0 %995
      %997 = vrot.lane.b32.xlu0 %v488, 12
      %v998 = vpop.permute.xlu0 %997
      %999 = vrot.lane.b32.xlu0 %v489, 12
      %v1000 = vpop.permute.xlu0 %999
      %1001 = vrot.lane.b32.xlu0 %v490, 12
      %v1002 = vpop.permute.xlu0 %1001
      %1003 = vrot.lane.b32.xlu0 %v491, 12
      %v1004 = vpop.permute.xlu0 %1003
      %1069 = vrot.lane.b32.xlu0 %v492, 16
      %v1070 = vpop.permute.xlu0 %1069
      %1071 = vrot.lane.b32.xlu0 %v493, 16
      %v1072 = vpop.permute.xlu0 %1071
      %1073 = vrot.lane.b32.xlu0 %v494, 16
      %v1074 = vpop.permute.xlu0 %1073
      %1075 = vrot.lane.b32.xlu0 %v495, 16
      %v1076 = vpop.permute.xlu0 %1075
      %1077 = vrot.lane.b32.xlu0 %v496, 16
      %v1078 = vpop.permute.xlu0 %1077
      %1079 = vrot.lane.b32.xlu0 %v497, 16
      %v1080 = vpop.permute.xlu0 %1079
      %1081 = vrot.lane.b32.xlu0 %v498, 16
      %v1082 = vpop.permute.xlu0 %1081
      %1083 = vrot.lane.b32.xlu0 %v499, 16
      %v1084 = vpop.permute.xlu0 %1083
      %1085 = vrot.lane.b32.xlu0 %v500, 16
      %v1086 = vpop.permute.xlu0 %1085
      %1087 = vrot.lane.b32.xlu0 %v501, 16
      %v1088 = vpop.permute.xlu0 %1087
      %1089 = vrot.lane.b32.xlu0 %v502, 16
      %v1090 = vpop.permute.xlu0 %1089
      %1091 = vrot.lane.b32.xlu0 %v503, 16
      %v1092 = vpop.permute.xlu0 %1091
      %1093 = vrot.lane.b32.xlu0 %v504, 16
      %v1094 = vpop.permute.xlu0 %1093
      %1095 = vrot.lane.b32.xlu0 %v505, 16
      %v1096 = vpop.permute.xlu0 %1095
      %1097 = vrot.lane.b32.xlu0 %v506, 16
      %v1098 = vpop.permute.xlu0 %1097
      %1099 = vrot.lane.b32.xlu0 %v507, 16
      %v1100 = vpop.permute.xlu0 %1099
      %1101 = vrot.lane.b32.xlu0 %v508, 16
      %v1102 = vpop.permute.xlu0 %1101
      %1103 = vrot.lane.b32.xlu0 %v509, 16
      %v1104 = vpop.permute.xlu0 %1103
      %1105 = vrot.lane.b32.xlu0 %v510, 16
      %v1106 = vpop.permute.xlu0 %1105
      %1107 = vrot.lane.b32.xlu0 %v511, 16
      %v1108 = vpop.permute.xlu0 %1107
      %1109 = vrot.lane.b32.xlu0 %v512, 16
      %v1110 = vpop.permute.xlu0 %1109
      %1111 = vrot.lane.b32.xlu0 %v513, 16
      %v1112 = vpop.permute.xlu0 %1111
      %1113 = vrot.lane.b32.xlu0 %v514, 16
      %v1114 = vpop.permute.xlu0 %1113
      %1115 = vrot.lane.b32.xlu0 %v515, 16
      %v1116 = vpop.permute.xlu0 %1115
      %1117 = vrot.lane.b32.xlu0 %v516, 16
      %v1118 = vpop.permute.xlu0 %1117
      %1119 = vrot.lane.b32.xlu0 %v517, 16
      %v1120 = vpop.permute.xlu0 %1119
      %1121 = vrot.lane.b32.xlu0 %v518, 16
      %v1122 = vpop.permute.xlu0 %1121
      %1123 = vrot.lane.b32.xlu0 %v519, 16
      %v1124 = vpop.permute.xlu0 %1123
      %1125 = vrot.lane.b32.xlu0 %v520, 16
      %v1126 = vpop.permute.xlu0 %1125
      %1127 = vrot.lane.b32.xlu0 %v521, 16
      %v1128 = vpop.permute.xlu0 %1127
      %1129 = vrot.lane.b32.xlu0 %v522, 16
      %v1130 = vpop.permute.xlu0 %1129
      %1131 = vrot.lane.b32.xlu0 %v523, 16
      %v1132 = vpop.permute.xlu0 %1131
      %1197 = vrot.lane.b32.xlu0 %v524, 20
      %v1198 = vpop.permute.xlu0 %1197
      %1199 = vrot.lane.b32.xlu0 %v525, 20
      %v1200 = vpop.permute.xlu0 %1199
      %1201 = vrot.lane.b32.xlu0 %v526, 20
      %v1202 = vpop.permute.xlu0 %1201
      %1203 = vrot.lane.b32.xlu0 %v527, 20
      %v1204 = vpop.permute.xlu0 %1203
      %1205 = vrot.lane.b32.xlu0 %v528, 20
      %v1206 = vpop.permute.xlu0 %1205
      %1207 = vrot.lane.b32.xlu0 %v529, 20
      %v1208 = vpop.permute.xlu0 %1207
      %1209 = vrot.lane.b32.xlu0 %v530, 20
      %v1210 = vpop.permute.xlu0 %1209
      %1211 = vrot.lane.b32.xlu0 %v531, 20
      %v1212 = vpop.permute.xlu0 %1211
      %1213 = vrot.lane.b32.xlu0 %v532, 20
      %v1214 = vpop.permute.xlu0 %1213
      %1215 = vrot.lane.b32.xlu0 %v533, 20
      %v1216 = vpop.permute.xlu0 %1215
      %1217 = vrot.lane.b32.xlu0 %v534, 20
      %v1218 = vpop.permute.xlu0 %1217
      %1219 = vrot.lane.b32.xlu0 %v535, 20
      %v1220 = vpop.permute.xlu0 %1219
      %1221 = vrot.lane.b32.xlu0 %v536, 20
      %v1222 = vpop.permute.xlu0 %1221
      %1223 = vrot.lane.b32.xlu0 %v537, 20
      %v1224 = vpop.permute.xlu0 %1223
      %1225 = vrot.lane.b32.xlu0 %v538, 20
      %v1226 = vpop.permute.xlu0 %1225
      %1227 = vrot.lane.b32.xlu0 %v539, 20
      %v1228 = vpop.permute.xlu0 %1227
      %1229 = vrot.lane.b32.xlu0 %v540, 20
      %v1230 = vpop.permute.xlu0 %1229
      %1231 = vrot.lane.b32.xlu0 %v541, 20
      %v1232 = vpop.permute.xlu0 %1231
      %1233 = vrot.lane.b32.xlu0 %v542, 20
      %v1234 = vpop.permute.xlu0 %1233
      %1235 = vrot.lane.b32.xlu0 %v543, 20
      %v1236 = vpop.permute.xlu0 %1235
      %1237 = vrot.lane.b32.xlu0 %v544, 20
      %v1238 = vpop.permute.xlu0 %1237
      %1239 = vrot.lane.b32.xlu0 %v545, 20
      %v1240 = vpop.permute.xlu0 %1239
      %1241 = vrot.lane.b32.xlu0 %v546, 20
      %v1242 = vpop.permute.xlu0 %1241
      %1243 = vrot.lane.b32.xlu0 %v547, 20
      %v1244 = vpop.permute.xlu0 %1243
      %1245 = vrot.lane.b32.xlu0 %v548, 20
      %v1246 = vpop.permute.xlu0 %1245
      %1247 = vrot.lane.b32.xlu0 %v549, 20
      %v1248 = vpop.permute.xlu0 %1247
      %1249 = vrot.lane.b32.xlu0 %v550, 20
      %v1250 = vpop.permute.xlu0 %1249
      %1251 = vrot.lane.b32.xlu0 %v551, 20
      %v1252 = vpop.permute.xlu0 %1251
      %1253 = vrot.lane.b32.xlu0 %v552, 20
      %v1254 = vpop.permute.xlu0 %1253
      %1255 = vrot.lane.b32.xlu0 %v553, 20
      %v1256 = vpop.permute.xlu0 %1255
      %1257 = vrot.lane.b32.xlu0 %v554, 20
      %v1258 = vpop.permute.xlu0 %1257
      %1259 = vrot.lane.b32.xlu0 %v555, 20
      %v1260 = vpop.permute.xlu0 %1259
      %1325 = vrot.lane.b32.xlu0 %v557, 24
      %v1326 = vpop.permute.xlu0 %1325
      %1327 = vrot.lane.b32.xlu0 %v558, 24
      %v1328 = vpop.permute.xlu0 %1327
      %1329 = vrot.lane.b32.xlu0 %v559, 24
      %v1330 = vpop.permute.xlu0 %1329
      %1331 = vrot.lane.b32.xlu0 %v560, 24
      %v1332 = vpop.permute.xlu0 %1331
      %1333 = vrot.lane.b32.xlu0 %v561, 24
      %v1334 = vpop.permute.xlu0 %1333
      %1335 = vrot.lane.b32.xlu0 %v562, 24
      %v1336 = vpop.permute.xlu0 %1335
      %1337 = vrot.lane.b32.xlu0 %v563, 24
      %v1338 = vpop.permute.xlu0 %1337
      %1339 = vrot.lane.b32.xlu0 %v564, 24
      %v1340 = vpop.permute.xlu0 %1339
      %1341 = vrot.lane.b32.xlu0 %v565, 24
      %v1342 = vpop.permute.xlu0 %1341
      %1343 = vrot.lane.b32.xlu0 %v566, 24
      %v1344 = vpop.permute.xlu0 %1343
      %1345 = vrot.lane.b32.xlu0 %v567, 24
      %v1346 = vpop.permute.xlu0 %1345
      %1347 = vrot.lane.b32.xlu0 %v568, 24
      %v1348 = vpop.permute.xlu0 %1347
      %1349 = vrot.lane.b32.xlu0 %v569, 24
      %v1350 = vpop.permute.xlu0 %1349
      %1351 = vrot.lane.b32.xlu0 %v570, 24
      %v1352 = vpop.permute.xlu0 %1351
      %1353 = vrot.lane.b32.xlu0 %v571, 24
      %v1354 = vpop.permute.xlu0 %1353
      %1355 = vrot.lane.b32.xlu0 %v572, 24
      %v1356 = vpop.permute.xlu0 %1355
      %1357 = vrot.lane.b32.xlu0 %v573, 24
      %v1358 = vpop.permute.xlu0 %1357
      %1359 = vrot.lane.b32.xlu0 %v574, 24
      %v1360 = vpop.permute.xlu0 %1359
      %1361 = vrot.lane.b32.xlu0 %v575, 24
      %v1362 = vpop.permute.xlu0 %1361
      %1363 = vrot.lane.b32.xlu0 %v576, 24
      %v1364 = vpop.permute.xlu0 %1363
      %1365 = vrot.lane.b32.xlu0 %v577, 24
      %v1366 = vpop.permute.xlu0 %1365
      %1367 = vrot.lane.b32.xlu0 %v578, 24
      %v1368 = vpop.permute.xlu0 %1367
      %1369 = vrot.lane.b32.xlu0 %v579, 24
      %v1370 = vpop.permute.xlu0 %1369
      %1371 = vrot.lane.b32.xlu0 %v580, 24
      %v1372 = vpop.permute.xlu0 %1371
      %1373 = vrot.lane.b32.xlu0 %v581, 24
      %v1374 = vpop.permute.xlu0 %1373
      %1375 = vrot.lane.b32.xlu0 %v582, 24
      %v1376 = vpop.permute.xlu0 %1375
      %1377 = vrot.lane.b32.xlu0 %v583, 24
      %v1378 = vpop.permute.xlu0 %1377
      %1379 = vrot.lane.b32.xlu0 %v584, 24
      %v1380 = vpop.permute.xlu0 %1379
      %1381 = vrot.lane.b32.xlu0 %v585, 24
      %v1382 = vpop.permute.xlu0 %1381
      %1383 = vrot.lane.b32.xlu0 %v586, 24
      %v1384 = vpop.permute.xlu0 %1383
      %1385 = vrot.lane.b32.xlu0 %v587, 24
      %v1386 = vpop.permute.xlu0 %1385
      %1387 = vrot.lane.b32.xlu0 %v588, 24
      %v1388 = vpop.permute.xlu0 %1387
      %1453 = vrot.lane.b32.xlu0 %v589, 28
      %v1454 = vpop.permute.xlu0 %1453
      %1455 = vrot.lane.b32.xlu0 %v590, 28
      %v1456 = vpop.permute.xlu0 %1455
      %1457 = vrot.lane.b32.xlu0 %v591, 28
      %v1458 = vpop.permute.xlu0 %1457
      %1459 = vrot.lane.b32.xlu0 %v592, 28
      %v1460 = vpop.permute.xlu0 %1459
      %1461 = vrot.lane.b32.xlu0 %v593, 28
      %v1462 = vpop.permute.xlu0 %1461
      %1463 = vrot.lane.b32.xlu0 %v594, 28
      %v1464 = vpop.permute.xlu0 %1463
      %1465 = vrot.lane.b32.xlu0 %v595, 28
      %v1466 = vpop.permute.xlu0 %1465
      %1467 = vrot.lane.b32.xlu0 %v596, 28
      %v1468 = vpop.permute.xlu0 %1467
      %1469 = vrot.lane.b32.xlu0 %v597, 28
      %v1470 = vpop.permute.xlu0 %1469
      %1471 = vrot.lane.b32.xlu0 %v598, 28
      %v1472 = vpop.permute.xlu0 %1471
      %1473 = vrot.lane.b32.xlu0 %v599, 28
      %v1474 = vpop.permute.xlu0 %1473
      %1475 = vrot.lane.b32.xlu0 %v600, 28
      %v1476 = vpop.permute.xlu0 %1475
      %1477 = vrot.lane.b32.xlu0 %v601, 28
      %v1478 = vpop.permute.xlu0 %1477
      %1479 = vrot.lane.b32.xlu0 %v602, 28
      %v1480 = vpop.permute.xlu0 %1479
      %1481 = vrot.lane.b32.xlu0 %v603, 28
      %v1482 = vpop.permute.xlu0 %1481
      %1483 = vrot.lane.b32.xlu0 %v604, 28
      %v1484 = vpop.permute.xlu0 %1483
      %1485 = vrot.lane.b32.xlu0 %v605, 28
      %v1486 = vpop.permute.xlu0 %1485
      %1487 = vrot.lane.b32.xlu0 %v606, 28
      %v1488 = vpop.permute.xlu0 %1487
      %1489 = vrot.lane.b32.xlu0 %v607, 28
      %v1490 = vpop.permute.xlu0 %1489
      %1491 = vrot.lane.b32.xlu0 %v608, 28
      %v1492 = vpop.permute.xlu0 %1491
      %1493 = vrot.lane.b32.xlu0 %v609, 28
      %v1494 = vpop.permute.xlu0 %1493
      %1495 = vrot.lane.b32.xlu0 %v610, 28
      %v1496 = vpop.permute.xlu0 %1495
      %1497 = vrot.lane.b32.xlu0 %v611, 28
      %v1498 = vpop.permute.xlu0 %1497
      %1499 = vrot.lane.b32.xlu0 %v612, 28
      %v1500 = vpop.permute.xlu0 %1499
      %1501 = vrot.lane.b32.xlu0 %v613, 28
      %v1502 = vpop.permute.xlu0 %1501
      %1503 = vrot.lane.b32.xlu0 %v614, 28
      %v1504 = vpop.permute.xlu0 %1503
      %1505 = vrot.lane.b32.xlu0 %v615, 28
      %v1506 = vpop.permute.xlu0 %1505
      %1507 = vrot.lane.b32.xlu0 %v616, 28
      %v1508 = vpop.permute.xlu0 %1507
      %1509 = vrot.lane.b32.xlu0 %v617, 28
      %v1510 = vpop.permute.xlu0 %1509
      %1511 = vrot.lane.b32.xlu0 %v618, 28
      %v1512 = vpop.permute.xlu0 %1511
      %1513 = vrot.lane.b32.xlu0 %v619, 28
      %v1514 = vpop.permute.xlu0 %1513
      %1515 = vrot.lane.b32.xlu0 %v620, 28
      %v1516 = vpop.permute.xlu0 %1515
      %1581 = vrot.lane.b32.xlu0 %v621, 32
      %v1582 = vpop.permute.xlu0 %1581
      %1583 = vrot.lane.b32.xlu0 %v622, 32
      %v1584 = vpop.permute.xlu0 %1583
      %1585 = vrot.lane.b32.xlu0 %v623, 32
      %v1586 = vpop.permute.xlu0 %1585
      %1587 = vrot.lane.b32.xlu0 %v624, 32
      %v1588 = vpop.permute.xlu0 %1587
      %1589 = vrot.lane.b32.xlu0 %v625, 32
      %v1590 = vpop.permute.xlu0 %1589
      %1591 = vrot.lane.b32.xlu0 %v626, 32
      %v1592 = vpop.permute.xlu0 %1591
      %1593 = vrot.lane.b32.xlu0 %v627, 32
      %v1594 = vpop.permute.xlu0 %1593
      %1595 = vrot.lane.b32.xlu0 %v628, 32
      %v1596 = vpop.permute.xlu0 %1595
      %1597 = vrot.lane.b32.xlu0 %v629, 32
      %v1598 = vpop.permute.xlu0 %1597
      %1599 = vrot.lane.b32.xlu0 %v630, 32
      %v1600 = vpop.permute.xlu0 %1599
      %1601 = vrot.lane.b32.xlu0 %v631, 32
      %v1602 = vpop.permute.xlu0 %1601
      %1603 = vrot.lane.b32.xlu0 %v632, 32
      %v1604 = vpop.permute.xlu0 %1603
      %1605 = vrot.lane.b32.xlu0 %v633, 32
      %v1606 = vpop.permute.xlu0 %1605
      %1607 = vrot.lane.b32.xlu0 %v634, 32
      %v1608 = vpop.permute.xlu0 %1607
      %1609 = vrot.lane.b32.xlu0 %v635, 32
      %v1610 = vpop.permute.xlu0 %1609
      %1611 = vrot.lane.b32.xlu0 %v636, 32
      %v1612 = vpop.permute.xlu0 %1611
      %1613 = vrot.lane.b32.xlu0 %v637, 32
      %v1614 = vpop.permute.xlu0 %1613
      %1615 = vrot.lane.b32.xlu0 %v638, 32
      %v1616 = vpop.permute.xlu0 %1615
      %1617 = vrot.lane.b32.xlu0 %v639, 32
      %v1618 = vpop.permute.xlu0 %1617
      %1619 = vrot.lane.b32.xlu0 %v640, 32
      %v1620 = vpop.permute.xlu0 %1619
      %1621 = vrot.lane.b32.xlu0 %v641, 32
      %v1622 = vpop.permute.xlu0 %1621
      %1623 = vrot.lane.b32.xlu0 %v642, 32
      %v1624 = vpop.permute.xlu0 %1623
      %1625 = vrot.lane.b32.xlu0 %v643, 32
      %v1626 = vpop.permute.xlu0 %1625
      %1627 = vrot.lane.b32.xlu0 %v644, 32
      %v1628 = vpop.permute.xlu0 %1627
      %1629 = vrot.lane.b32.xlu0 %v645, 32
      %v1630 = vpop.permute.xlu0 %1629
      %1631 = vrot.lane.b32.xlu0 %v646, 32
      %v1632 = vpop.permute.xlu0 %1631
      %1633 = vrot.lane.b32.xlu0 %v647, 32
      %v1634 = vpop.permute.xlu0 %1633
      %1635 = vrot.lane.b32.xlu0 %v648, 32
      %v1636 = vpop.permute.xlu0 %1635
      %1637 = vrot.lane.b32.xlu0 %v649, 32
      %v1638 = vpop.permute.xlu0 %1637
      %1639 = vrot.lane.b32.xlu0 %v650, 32
      %v1640 = vpop.permute.xlu0 %1639
      %1641 = vrot.lane.b32.xlu0 %v651, 32
      %v1642 = vpop.permute.xlu0 %1641
      %1643 = vrot.lane.b32.xlu0 %v652, 32
      %v1644 = vpop.permute.xlu0 %1643
      %v1677 = vsel %vm221, %v364, %v686
      %v1678 = vsel %vm221, %v365, %v688
      %v1679 = vsel %vm221, %v366, %v690
      %v1680 = vsel %vm221, %v367, %v692
      %v1681 = vsel %vm221, %v368, %v694
      %v1682 = vsel %vm221, %v369, %v696
      %v1683 = vsel %vm221, %v370, %v698
      %v1684 = vsel %vm221, %v371, %v700
      %v1685 = vsel %vm221, %v372, %v702
      %v1686 = vsel %vm221, %v373, %v704
      %v1687 = vsel %vm221, %v374, %v706
      %v1688 = vsel %vm221, %v375, %v708
      %v1689 = vsel %vm221, %v376, %v710
      %v1690 = vsel %vm221, %v377, %v712
      %v1691 = vsel %vm221, %v378, %v714
      %v1692 = vsel %vm221, %v379, %v716
      %v1693 = vsel %vm221, %v380, %v718
      %v1694 = vsel %vm221, %v381, %v720
      %v1695 = vsel %vm221, %v382, %v722
      %v1696 = vsel %vm221, %v383, %v724
      %v1697 = vsel %vm221, %v384, %v726
      %v1698 = vsel %vm221, %v385, %v728
      %v1699 = vsel %vm221, %v386, %v730
      %v1700 = vsel %vm221, %v387, %v732
      %v1701 = vsel %vm221, %v388, %v734
      %v1702 = vsel %vm221, %v389, %v736
      %v1703 = vsel %vm221, %v390, %v738
      %v1704 = vsel %vm221, %v391, %v740
      %v1705 = vsel %vm221, %v392, %v742
      %v1706 = vsel %vm221, %v393, %v744
      %v1707 = vsel %vm221, %v394, %v746
      %v1708 = vsel %vm221, %v395, %v748
      %vm1709 = vcmask 64512
      %v1710 = vsel %vm1709, %v1677, %v814
      %v1711 = vsel %vm1709, %v1678, %v816
      %v1712 = vsel %vm1709, %v1679, %v818
      %v1713 = vsel %vm1709, %v1680, %v820
      %v1714 = vsel %vm1709, %v1681, %v822
      %v1715 = vsel %vm1709, %v1682, %v824
      %v1716 = vsel %vm1709, %v1683, %v826
      %v1717 = vsel %vm1709, %v1684, %v828
      %v1718 = vsel %vm1709, %v1685, %v830
      %v1719 = vsel %vm1709, %v1686, %v832
      %v1720 = vsel %vm1709, %v1687, %v834
      %v1721 = vsel %vm1709, %v1688, %v836
      %v1722 = vsel %vm1709, %v1689, %v838
      %v1723 = vsel %vm1709, %v1690, %v840
      %v1724 = vsel %vm1709, %v1691, %v842
      %v1725 = vsel %vm1709, %v1692, %v844
      %v1726 = vsel %vm1709, %v1693, %v846
      %v1727 = vsel %vm1709, %v1694, %v848
      %v1728 = vsel %vm1709, %v1695, %v850
      %v1729 = vsel %vm1709, %v1696, %v852
      %v1730 = vsel %vm1709, %v1697, %v854
      %v1731 = vsel %vm1709, %v1698, %v856
      %v1732 = vsel %vm1709, %v1699, %v858
      %v1733 = vsel %vm1709, %v1700, %v860
      %v1734 = vsel %vm1709, %v1701, %v862
      %v1735 = vsel %vm1709, %v1702, %v864
      %v1736 = vsel %vm1709, %v1703, %v866
      %v1737 = vsel %vm1709, %v1704, %v868
      %v1738 = vsel %vm1709, %v1705, %v870
      %v1739 = vsel %vm1709, %v1706, %v872
      %v1740 = vsel %vm1709, %v1707, %v874
      %v1741 = vsel %vm1709, %v1708, %v876
      %vm1742 = vcmask 97280
      %v1743 = vsel %vm1742, %v1710, %v942
      %v1744 = vsel %vm1742, %v1711, %v944
      %v1745 = vsel %vm1742, %v1712, %v946
      %v1746 = vsel %vm1742, %v1713, %v948
      %v1747 = vsel %vm1742, %v1714, %v950
      %v1748 = vsel %vm1742, %v1715, %v952
      %v1749 = vsel %vm1742, %v1716, %v954
      %v1750 = vsel %vm1742, %v1717, %v956
      %v1751 = vsel %vm1742, %v1718, %v958
      %v1752 = vsel %vm1742, %v1719, %v960
      %v1753 = vsel %vm1742, %v1720, %v962
      %v1754 = vsel %vm1742, %v1721, %v964
      %v1755 = vsel %vm1742, %v1722, %v966
      %v1756 = vsel %vm1742, %v1723, %v968
      %v1757 = vsel %vm1742, %v1724, %v970
      %v1758 = vsel %vm1742, %v1725, %v972
      %v1759 = vsel %vm1742, %v1726, %v974
      %v1760 = vsel %vm1742, %v1727, %v976
      %v1761 = vsel %vm1742, %v1728, %v978
      %v1762 = vsel %vm1742, %v1729, %v980
      %v1763 = vsel %vm1742, %v1730, %v982
      %v1764 = vsel %vm1742, %v1731, %v984
      %v1765 = vsel %vm1742, %v1732, %v986
      %v1766 = vsel %vm1742, %v1733, %v988
      %v1767 = vsel %vm1742, %v1734, %v990
      %v1768 = vsel %vm1742, %v1735, %v992
      %v1769 = vsel %vm1742, %v1736, %v994
      %v1770 = vsel %vm1742, %v1737, %v996
      %v1771 = vsel %vm1742, %v1738, %v998
      %v1772 = vsel %vm1742, %v1739, %v1000
      %v1773 = vsel %vm1742, %v1740, %v1002
      %v1774 = vsel %vm1742, %v1741, %v1004
      %vm1775 = vcmask 130048
      %v1776 = vsel %vm1775, %v1743, %v1070
      %v1777 = vsel %vm1775, %v1744, %v1072
      %v1778 = vsel %vm1775, %v1745, %v1074
      %v1779 = vsel %vm1775, %v1746, %v1076
      %v1780 = vsel %vm1775, %v1747, %v1078
      %v1781 = vsel %vm1775, %v1748, %v1080
      %v1782 = vsel %vm1775, %v1749, %v1082
      %v1783 = vsel %vm1775, %v1750, %v1084
      %v1784 = vsel %vm1775, %v1751, %v1086
      %v1785 = vsel %vm1775, %v1752, %v1088
      %v1786 = vsel %vm1775, %v1753, %v1090
      %v1787 = vsel %vm1775, %v1754, %v1092
      %v1788 = vsel %vm1775, %v1755, %v1094
      %v1789 = vsel %vm1775, %v1756, %v1096
      %v1790 = vsel %vm1775, %v1757, %v1098
      %v1791 = vsel %vm1775, %v1758, %v1100
      %v1792 = vsel %vm1775, %v1759, %v1102
      %v1793 = vsel %vm1775, %v1760, %v1104
      %v1794 = vsel %vm1775, %v1761, %v1106
      %v1795 = vsel %vm1775, %v1762, %v1108
      %v1796 = vsel %vm1775, %v1763, %v1110
      %v1797 = vsel %vm1775, %v1764, %v1112
      %v1798 = vsel %vm1775, %v1765, %v1114
      %v1799 = vsel %vm1775, %v1766, %v1116
      %v1800 = vsel %vm1775, %v1767, %v1118
      %v1801 = vsel %vm1775, %v1768, %v1120
      %v1802 = vsel %vm1775, %v1769, %v1122
      %v1803 = vsel %vm1775, %v1770, %v1124
      %v1804 = vsel %vm1775, %v1771, %v1126
      %v1805 = vsel %vm1775, %v1772, %v1128
      %v1806 = vsel %vm1775, %v1773, %v1130
      %v1807 = vsel %vm1775, %v1774, %v1132
      %vm1808 = vcmask 162816
      %v1809 = vsel %vm1808, %v1776, %v1198
      %v1810 = vsel %vm1808, %v1777, %v1200
      %v1811 = vsel %vm1808, %v1778, %v1202
      %v1812 = vsel %vm1808, %v1779, %v1204
      %v1813 = vsel %vm1808, %v1780, %v1206
      %v1814 = vsel %vm1808, %v1781, %v1208
      %v1815 = vsel %vm1808, %v1782, %v1210
      %v1816 = vsel %vm1808, %v1783, %v1212
      %v1817 = vsel %vm1808, %v1784, %v1214
      %v1818 = vsel %vm1808, %v1785, %v1216
      %v1819 = vsel %vm1808, %v1786, %v1218
      %v1820 = vsel %vm1808, %v1787, %v1220
      %v1821 = vsel %vm1808, %v1788, %v1222
      %v1822 = vsel %vm1808, %v1789, %v1224
      %v1823 = vsel %vm1808, %v1790, %v1226
      %v1824 = vsel %vm1808, %v1791, %v1228
      %v1825 = vsel %vm1808, %v1792, %v1230
      %v1826 = vsel %vm1808, %v1793, %v1232
      %v1827 = vsel %vm1808, %v1794, %v1234
      %v1828 = vsel %vm1808, %v1795, %v1236
      %v1829 = vsel %vm1808, %v1796, %v1238
      %v1830 = vsel %vm1808, %v1797, %v1240
      %v1831 = vsel %vm1808, %v1798, %v1242
      %v1832 = vsel %vm1808, %v1799, %v1244
      %v1833 = vsel %vm1808, %v1800, %v1246
      %v1834 = vsel %vm1808, %v1801, %v1248
      %v1835 = vsel %vm1808, %v1802, %v1250
      %v1836 = vsel %vm1808, %v1803, %v1252
      %v1837 = vsel %vm1808, %v1804, %v1254
      %v1838 = vsel %vm1808, %v1805, %v1256
      %v1839 = vsel %vm1808, %v1806, %v1258
      %v1840 = vsel %vm1808, %v1807, %v1260
      %vm1841 = vcmask 195584
      %v1842 = vsel %vm1841, %v1809, %v1326
      %v1843 = vsel %vm1841, %v1810, %v1328
      %v1844 = vsel %vm1841, %v1811, %v1330
      %v1845 = vsel %vm1841, %v1812, %v1332
      %v1846 = vsel %vm1841, %v1813, %v1334
      %v1847 = vsel %vm1841, %v1814, %v1336
      %v1848 = vsel %vm1841, %v1815, %v1338
      %v1849 = vsel %vm1841, %v1816, %v1340
      %v1850 = vsel %vm1841, %v1817, %v1342
      %v1851 = vsel %vm1841, %v1818, %v1344
      %v1852 = vsel %vm1841, %v1819, %v1346
      %v1853 = vsel %vm1841, %v1820, %v1348
      %v1854 = vsel %vm1841, %v1821, %v1350
      %v1855 = vsel %vm1841, %v1822, %v1352
      %v1856 = vsel %vm1841, %v1823, %v1354
      %v1857 = vsel %vm1841, %v1824, %v1356
      %v1858 = vsel %vm1841, %v1825, %v1358
      %v1859 = vsel %vm1841, %v1826, %v1360
      %v1860 = vsel %vm1841, %v1827, %v1362
      %v1861 = vsel %vm1841, %v1828, %v1364
      %v1862 = vsel %vm1841, %v1829, %v1366
      %v1863 = vsel %vm1841, %v1830, %v1368
      %v1864 = vsel %vm1841, %v1831, %v1370
      %v1865 = vsel %vm1841, %v1832, %v1372
      %v1866 = vsel %vm1841, %v1833, %v1374
      %v1867 = vsel %vm1841, %v1834, %v1376
      %v1868 = vsel %vm1841, %v1835, %v1378
      %v1869 = vsel %vm1841, %v1836, %v1380
      %v1870 = vsel %vm1841, %v1837, %v1382
      %v1871 = vsel %vm1841, %v1838, %v1384
      %v1872 = vsel %vm1841, %v1839, %v1386
      %v1873 = vsel %vm1841, %v1840, %v1388
      %vm1874 = vcmask 228352
      %v1875 = vsel %vm1874, %v1842, %v1454
      %v1876 = vsel %vm1874, %v1843, %v1456
      %v1877 = vsel %vm1874, %v1844, %v1458
      %v1878 = vsel %vm1874, %v1845, %v1460
      %v1879 = vsel %vm1874, %v1846, %v1462
      %v1880 = vsel %vm1874, %v1847, %v1464
      %v1881 = vsel %vm1874, %v1848, %v1466
      %v1882 = vsel %vm1874, %v1849, %v1468
      %v1883 = vsel %vm1874, %v1850, %v1470
      %v1884 = vsel %vm1874, %v1851, %v1472
      %v1885 = vsel %vm1874, %v1852, %v1474
      %v1886 = vsel %vm1874, %v1853, %v1476
      %v1887 = vsel %vm1874, %v1854, %v1478
      %v1888 = vsel %vm1874, %v1855, %v1480
      %v1889 = vsel %vm1874, %v1856, %v1482
      %v1890 = vsel %vm1874, %v1857, %v1484
      %v1891 = vsel %vm1874, %v1858, %v1486
      %v1892 = vsel %vm1874, %v1859, %v1488
      %v1893 = vsel %vm1874, %v1860, %v1490
      %v1894 = vsel %vm1874, %v1861, %v1492
      %v1895 = vsel %vm1874, %v1862, %v1494
      %v1896 = vsel %vm1874, %v1863, %v1496
      %v1897 = vsel %vm1874, %v1864, %v1498
      %v1898 = vsel %vm1874, %v1865, %v1500
      %v1899 = vsel %vm1874, %v1866, %v1502
      %v1900 = vsel %vm1874, %v1867, %v1504
      %v1901 = vsel %vm1874, %v1868, %v1506
      %v1902 = vsel %vm1874, %v1869, %v1508
      %v1903 = vsel %vm1874, %v1870, %v1510
      %v1904 = vsel %vm1874, %v1871, %v1512
      %v1905 = vsel %vm1874, %v1872, %v1514
      %v1906 = vsel %vm1874, %v1873, %v1516
      %vm1907 = vcmask 261120
      %v1908 = vsel %vm1907, %v1875, %v1582
      %v1909 = vsel %vm1907, %v1876, %v1584
      %v1910 = vsel %vm1907, %v1877, %v1586
      %v1911 = vsel %vm1907, %v1878, %v1588
      %v1912 = vsel %vm1907, %v1879, %v1590
      %v1913 = vsel %vm1907, %v1880, %v1592
      %v1914 = vsel %vm1907, %v1881, %v1594
      %v1915 = vsel %vm1907, %v1882, %v1596
      %v1916 = vsel %vm1907, %v1883, %v1598
      %v1917 = vsel %vm1907, %v1884, %v1600
      %v1918 = vsel %vm1907, %v1885, %v1602
      %v1919 = vsel %vm1907, %v1886, %v1604
      %v1920 = vsel %vm1907, %v1887, %v1606
      %v1921 = vsel %vm1907, %v1888, %v1608
      %v1922 = vsel %vm1907, %v1889, %v1610
      %v1923 = vsel %vm1907, %v1890, %v1612
      %v1924 = vsel %vm1907, %v1891, %v1614
      %v1925 = vsel %vm1907, %v1892, %v1616
      %v1926 = vsel %vm1907, %v1893, %v1618
      %v1927 = vsel %vm1907, %v1894, %v1620
      %v1928 = vsel %vm1907, %v1895, %v1622
      %v1929 = vsel %vm1907, %v1896, %v1624
      %v1930 = vsel %vm1907, %v1897, %v1626
      %v1931 = vsel %vm1907, %v1898, %v1628
      %v1932 = vsel %vm1907, %v1899, %v1630
      %v1933 = vsel %vm1907, %v1900, %v1632
      %v1934 = vsel %vm1907, %v1901, %v1634
      %v1935 = vsel %vm1907, %v1902, %v1636
      %v1936 = vsel %vm1907, %v1903, %v1638
      %v1937 = vsel %vm1907, %v1904, %v1640
      %v1938 = vsel %vm1907, %v1905, %v1642
      %v1939 = vsel %vm1907, %v1906, %v1644
      %v1940 = vld [vmem:[%s1] sm:$0xff]
      %v1941 = vld [vmem:[%s1 + $0x8] sm:$0xff]
      %v1942 = vld [vmem:[%s1 + $0x10] sm:$0xff]
      %v1943 = vld [vmem:[%s1 + $0x18] sm:$0xff]
      %v1944 = vld [vmem:[%s1 + $0x20] sm:$0xf]
      %v1945 = vld [vmem:[%s4] sm:$0x1]
      %v1946 = vlaneseq
      %v1947 = vshrl.u32 %v1946, 7
      %v1948 = vsub.s32 0, %v1947
      %v1949 = vrot.slane %v1945, %v1948
      %vm1950 = vcmask 293888
      %v1952 = vsel %vm1950, %v1908, 0
      %v1955 = vsel %vm1950, %v1909, 0
      %v1958 = vsel %vm1950, %v1910, 0
      %v1961 = vsel %vm1950, %v1911, 0
      %v1964 = vsel %vm1950, %v1912, 0
      %v1967 = vsel %vm1950, %v1913, 0
      %v1970 = vsel %vm1950, %v1914, 0
      %v1973 = vsel %vm1950, %v1915, 0
      %v1976 = vsel %vm1950, %v1916, 0
      %v1979 = vsel %vm1950, %v1917, 0
      %v1982 = vsel %vm1950, %v1918, 0
      %v1985 = vsel %vm1950, %v1919, 0
      %v1988 = vsel %vm1950, %v1920, 0
      %v1991 = vsel %vm1950, %v1921, 0
      %v1994 = vsel %vm1950, %v1922, 0
      %v1997 = vsel %vm1950, %v1923, 0
      %v2000 = vsel %vm1950, %v1924, 0
      %v2003 = vsel %vm1950, %v1925, 0
      %v2006 = vsel %vm1950, %v1926, 0
      %v2009 = vsel %vm1950, %v1927, 0
      %v2012 = vsel %vm1950, %v1928, 0
      %v2015 = vsel %vm1950, %v1929, 0
      %v2018 = vsel %vm1950, %v1930, 0
      %v2021 = vsel %vm1950, %v1931, 0
      %v2024 = vsel %vm1950, %v1932, 0
      %v2027 = vsel %vm1950, %v1933, 0
      %v2030 = vsel %vm1950, %v1934, 0
      %v2033 = vsel %vm1950, %v1935, 0
      %v2036 = vsel %vm1950, %v1936, 0
      %v2039 = vsel %vm1950, %v1937, 0
      %v2042 = vsel %vm1950, %v1938, 0
      %v2045 = vsel %vm1950, %v1939, 0
      %vm2047 = vcmask 1043456
      %v2049 = vsel %vm2047, %v1944, 0
      %2051 = vmatprep.subr.mxu0 0.0
      %2052 = vmatpush1.msra.mxu0 %v1940
      %2053 = vmatprep.subr.mxu0 0.0
      %2054 = vmatpush1.msra.mxu0 %v1941
      %2055 = vmatprep.subr.mxu0 0.0
      %2056 = vmatpush1.msra.mxu0 %v1942
      %2057 = vmatprep.subr.mxu0 0.0
      %2058 = vmatpush1.msra.mxu0 %v1943
      %2059 = vmatprep.subr.mxu0 0.0
      %2060 = vmatpush1.msra.mxu0 %v2049
      %2061 = vmatprep.subr.mxu0 0.0
      %2062 = vmatpush1.msra.mxu0 0.0
      %2063 = vmatprep.subr.mxu0 0.0
      %2064 = vmatpush1.msra.mxu0 0.0
      %2065 = vmatprep.subr.mxu0 0.0
      %2066 = vmatpush1.msra.mxu0 0.0
      %2067 = vmatprep.subr.mxu0 0.0
      %2068 = vmatpush1.msra.mxu0 0.0
      %2069 = vmatprep.subr.mxu0 0.0
      %2070 = vmatpush1.msra.mxu0 0.0
      %2071 = vmatprep.subr.mxu0 0.0
      %2072 = vmatpush1.msra.mxu0 0.0
      %2073 = vmatprep.subr.mxu0 0.0
      %2074 = vmatpush1.msra.mxu0 0.0
      %2075 = vmatprep.subr.mxu0 0.0
      %2076 = vmatpush1.msra.mxu0 0.0
      %2077 = vmatprep.subr.mxu0 0.0
      %2078 = vmatpush1.msra.mxu0 0.0
      %2079 = vmatprep.subr.mxu0 0.0
      %2080 = vmatpush1.msra.mxu0 0.0
      %2081 = vmatprep.subr.mxu0 0.0
      %2082 = vmatpush1.msra.mxu0 0.0
      %2083 = vmatprep.subr.mxu0 0.0
      %2084 = vmatpush1.msra.mxu0 0.0
      %2085 = vmatprep.subr.mxu0 0.0
      %2086 = vmatpush1.msra.mxu0 0.0
      %2087 = vmatprep.subr.mxu0 0.0
      %2088 = vmatpush1.msra.mxu0 0.0
      %2089 = vmatprep.subr.mxu0 0.0
      %2090 = vmatpush1.msra.mxu0 0.0
      %2091 = vmatprep.subr.mxu0 0.0
      %2092 = vmatpush1.msra.mxu0 0.0
      %2093 = vmatprep.subr.mxu0 0.0
      %2094 = vmatpush1.msra.mxu0 0.0
      %2095 = vmatprep.subr.mxu0 0.0
      %2096 = vmatpush1.msra.mxu0 0.0
      %2097 = vmatprep.subr.mxu0 0.0
      %2098 = vmatpush1.msra.mxu0 0.0
      %2099 = vmatprep.subr.mxu0 0.0
      %2100 = vmatpush1.msra.mxu0 0.0
      %2101 = vmatprep.subr.mxu0 0.0
      %2102 = vmatpush1.msra.mxu0 0.0
      %2103 = vmatprep.subr.mxu0 0.0
      %2104 = vmatpush1.msra.mxu0 0.0
      %2105 = vmatprep.subr.mxu0 0.0
      %2106 = vmatpush1.msra.mxu0 0.0
      %2107 = vmatprep.subr.mxu0 0.0
      %2108 = vmatpush1.msra.mxu0 0.0
      %2109 = vmatprep.subr.mxu0 0.0
      %2110 = vmatpush1.msra.mxu0 0.0
      %2111 = vmatprep.subr.mxu0 0.0
      %2112 = vmatpush1.msra.mxu0 0.0
      %2113 = vmatprep.subr.mxu0 0.0
      %2114 = vmatpush1.msra.mxu0 0.0
      %2115 = vmatprep.mubr.f32.mxu0 0.0
      %2116 = vmatmul.mubr.f32.gmra.mrb[0].mxu0 %v1952
      %v2117 = vpop.f32.mrb[0].mxu0
      %v2118 = vadd.f32 %v1949, %v2117
      %v2119 = vpop.f32.mrb[0].mxu0
      %2120 = vmatprep.mubr.f32.mxu0 0.0
      %2121 = vmatmul.mubr.f32.gmra.mrb[0].mxu0 %v1955
      %v2122 = vpop.f32.mrb[0].mxu0
      %v2123 = vadd.f32 %v1949, %v2122
      %v2124 = vpop.f32.mrb[0].mxu0
      %2125 = vmatprep.mubr.f32.mxu0 0.0
      %2126 = vmatmul.mubr.f32.gmra.mrb[0].mxu0 %v1958
      %v2127 = vpop.f32.mrb[0].mxu0
      %v2128 = vadd.f32 %v1949, %v2127
      %v2129 = vpop.f32.mrb[0].mxu0
      %2130 = vmatprep.mubr.f32.mxu0 0.0
      %2131 = vmatmul.mubr.f32.gmra.mrb[0].mxu0 %v1961
      %v2132 = vpop.f32.mrb[0].mxu0
      %v2133 = vadd.f32 %v1949, %v2132
      %v2134 = vpop.f32.mrb[0].mxu0
      %2135 = vmatprep.mubr.f32.mxu0 0.0
      %2136 = vmatmul.mubr.f32.gmra.mrb[0].mxu0 %v1964
      %v2137 = vpop.f32.mrb[0].mxu0
      %v2138 = vadd.f32 %v1949, %v2137
      %v2139 = vpop.f32.mrb[0].mxu0
      %2140 = vmatprep.mubr.f32.mxu0 0.0
      %2141 = vmatmul.mubr.f32.gmra.mrb[0].mxu0 %v1967
      %v2142 = vpop.f32.mrb[0].mxu0
      %v2143 = vadd.f32 %v1949, %v2142
      %v2144 = vpop.f32.mrb[0].mxu0
      %2145 = vmatprep.mubr.f32.mxu0 0.0
      %2146 = vmatmul.mubr.f32.gmra.mrb[0].mxu0 %v1970
      %v2147 = vpop.f32.mrb[0].mxu0
      %v2148 = vadd.f32 %v1949, %v2147
      %v2149 = vpop.f32.mrb[0].mxu0
      %2150 = vmatprep.mubr.f32.mxu0 0.0
      %2151 = vmatmul.mubr.f32.gmra.mrb[0].mxu0 %v1973
      %v2152 = vpop.f32.mrb[0].mxu0
      %v2153 = vadd.f32 %v1949, %v2152
      %v2154 = vpop.f32.mrb[0].mxu0
      %2155 = vmatprep.mubr.f32.mxu0 0.0
      %2156 = vmatmul.mubr.f32.gmra.mrb[0].mxu0 %v1976
      %v2157 = vpop.f32.mrb[0].mxu0
      %v2158 = vadd.f32 %v1949, %v2157
      %v2159 = vpop.f32.mrb[0].mxu0
      %2160 = vmatprep.mubr.f32.mxu0 0.0
      %2161 = vmatmul.mubr.f32.gmra.mrb[0].mxu0 %v1979
      %v2162 = vpop.f32.mrb[0].mxu0
      %v2163 = vadd.f32 %v1949, %v2162
      %v2164 = vpop.f32.mrb[0].mxu0
      %2165 = vmatprep.mubr.f32.mxu0 0.0
      %2166 = vmatmul.mubr.f32.gmra.mrb[0].mxu0 %v1982
      %v2167 = vpop.f32.mrb[0].mxu0
      %v2168 = vadd.f32 %v1949, %v2167
      %v2169 = vpop.f32.mrb[0].mxu0
      %2170 = vmatprep.mubr.f32.mxu0 0.0
      %2171 = vmatmul.mubr.f32.gmra.mrb[0].mxu0 %v1985
      %v2172 = vpop.f32.mrb[0].mxu0
      %v2173 = vadd.f32 %v1949, %v2172
      %v2174 = vpop.f32.mrb[0].mxu0
      %2175 = vmatprep.mubr.f32.mxu0 0.0
      %2176 = vmatmul.mubr.f32.gmra.mrb[0].mxu0 %v1988
      %v2177 = vpop.f32.mrb[0].mxu0
      %v2178 = vadd.f32 %v1949, %v2177
      %v2179 = vpop.f32.mrb[0].mxu0
      %2180 = vmatprep.mubr.f32.mxu0 0.0
      %2181 = vmatmul.mubr.f32.gmra.mrb[0].mxu0 %v1991
      %v2182 = vpop.f32.mrb[0].mxu0
      %v2183 = vadd.f32 %v1949, %v2182
      %v2184 = vpop.f32.mrb[0].mxu0
      %2185 = vmatprep.mubr.f32.mxu0 0.0
      %2186 = vmatmul.mubr.f32.gmra.mrb[0].mxu0 %v1994
      %v2187 = vpop.f32.mrb[0].mxu0
      %v2188 = vadd.f32 %v1949, %v2187
      %v2189 = vpop.f32.mrb[0].mxu0
      %2190 = vmatprep.mubr.f32.mxu0 0.0
      %2191 = vmatmul.mubr.f32.gmra.mrb[0].mxu0 %v1997
      %v2192 = vpop.f32.mrb[0].mxu0
      %v2193 = vadd.f32 %v1949, %v2192
      %v2194 = vpop.f32.mrb[0].mxu0
      %2195 = vmatprep.mubr.f32.mxu0 0.0
      %2196 = vmatmul.mubr.f32.gmra.mrb[0].mxu0 %v2000
      %v2197 = vpop.f32.mrb[0].mxu0
      %v2198 = vadd.f32 %v1949, %v2197
      %v2199 = vpop.f32.mrb[0].mxu0
      %2200 = vmatprep.mubr.f32.mxu0 0.0
      %2201 = vmatmul.mubr.f32.gmra.mrb[0].mxu0 %v2003
      %v2202 = vpop.f32.mrb[0].mxu0
      %v2203 = vadd.f32 %v1949, %v2202
      %v2204 = vpop.f32.mrb[0].mxu0
      %2205 = vmatprep.mubr.f32.mxu0 0.0
      %2206 = vmatmul.mubr.f32.gmra.mrb[0].mxu0 %v2006
      %v2207 = vpop.f32.mrb[0].mxu0
      %v2208 = vadd.f32 %v1949, %v2207
      %v2209 = vpop.f32.mrb[0].mxu0
      %2210 = vmatprep.mubr.f32.mxu0 0.0
      %2211 = vmatmul.mubr.f32.gmra.mrb[0].mxu0 %v2009
      %v2212 = vpop.f32.mrb[0].mxu0
      %v2213 = vadd.f32 %v1949, %v2212
      %v2214 = vpop.f32.mrb[0].mxu0
      %2215 = vmatprep.mubr.f32.mxu0 0.0
      %2216 = vmatmul.mubr.f32.gmra.mrb[0].mxu0 %v2012
      %v2217 = vpop.f32.mrb[0].mxu0
      %v2218 = vadd.f32 %v1949, %v2217
      %v2219 = vpop.f32.mrb[0].mxu0
      %2220 = vmatprep.mubr.f32.mxu0 0.0
      %2221 = vmatmul.mubr.f32.gmra.mrb[0].mxu0 %v2015
      %v2222 = vpop.f32.mrb[0].mxu0
      %v2223 = vadd.f32 %v1949, %v2222
      %v2224 = vpop.f32.mrb[0].mxu0
      %2225 = vmatprep.mubr.f32.mxu0 0.0
      %2226 = vmatmul.mubr.f32.gmra.mrb[0].mxu0 %v2018
      %v2227 = vpop.f32.mrb[0].mxu0
      %v2228 = vadd.f32 %v1949, %v2227
      %v2229 = vpop.f32.mrb[0].mxu0
      %2230 = vmatprep.mubr.f32.mxu0 0.0
      %2231 = vmatmul.mubr.f32.gmra.mrb[0].mxu0 %v2021
      %v2232 = vpop.f32.mrb[0].mxu0
      %v2233 = vadd.f32 %v1949, %v2232
      %v2234 = vpop.f32.mrb[0].mxu0
      %2235 = vmatprep.mubr.f32.mxu0 0.0
      %2236 = vmatmul.mubr.f32.gmra.mrb[0].mxu0 %v2024
      %v2237 = vpop.f32.mrb[0].mxu0
      %v2238 = vadd.f32 %v1949, %v2237
      %v2239 = vpop.f32.mrb[0].mxu0
      %2240 = vmatprep.mubr.f32.mxu0 0.0
      %2241 = vmatmul.mubr.f32.gmra.mrb[0].mxu0 %v2027
      %v2242 = vpop.f32.mrb[0].mxu0
      %v2243 = vadd.f32 %v1949, %v2242
      %v2244 = vpop.f32.mrb[0].mxu0
      %2245 = vmatprep.mubr.f32.mxu0 0.0
      %2246 = vmatmul.mubr.f32.gmra.mrb[0].mxu0 %v2030
      %v2247 = vpop.f32.mrb[0].mxu0
      %v2248 = vadd.f32 %v1949, %v2247
      %v2249 = vpop.f32.mrb[0].mxu0
      %2250 = vmatprep.mubr.f32.mxu0 0.0
      %2251 = vmatmul.mubr.f32.gmra.mrb[0].mxu0 %v2033
      %v2252 = vpop.f32.mrb[0].mxu0
      %v2253 = vadd.f32 %v1949, %v2252
      %v2254 = vpop.f32.mrb[0].mxu0
      %2255 = vmatprep.mubr.f32.mxu0 0.0
      %2256 = vmatmul.mubr.f32.gmra.mrb[0].mxu0 %v2036
      %v2257 = vpop.f32.mrb[0].mxu0
      %v2258 = vadd.f32 %v1949, %v2257
      %v2259 = vpop.f32.mrb[0].mxu0
      %2260 = vmatprep.mubr.f32.mxu0 0.0
      %2261 = vmatmul.mubr.f32.gmra.mrb[0].mxu0 %v2039
      %v2262 = vpop.f32.mrb[0].mxu0
      %v2263 = vadd.f32 %v1949, %v2262
      %v2264 = vpop.f32.mrb[0].mxu0
      %2265 = vmatprep.mubr.f32.mxu0 0.0
      %2266 = vmatmul.mubr.f32.gmra.mrb[0].mxu0 %v2042
      %v2267 = vpop.f32.mrb[0].mxu0
      %v2268 = vadd.f32 %v1949, %v2267
      %v2269 = vpop.f32.mrb[0].mxu0
      %2270 = vmatprep.mubr.f32.mxu0 0.0
      %2271 = vmatmul.mubr.f32.gmra.mrb[0].mxu0 %v2045
      %v2272 = vpop.f32.mrb[0].mxu0
      %v2273 = vadd.f32 %v1949, %v2272
      %v2274 = vpop.f32.mrb[0].mxu0
      %2275 = vdwg.mxu0
      %v2276 = vmax.f32 %v2118, 0.0
      %v2277 = vmax.f32 %v2123, 0.0
      %v2278 = vmax.f32 %v2128, 0.0
      %v2279 = vmax.f32 %v2133, 0.0
      %v2280 = vmax.f32 %v2138, 0.0
      %v2281 = vmax.f32 %v2143, 0.0
      %v2282 = vmax.f32 %v2148, 0.0
      %v2283 = vmax.f32 %v2153, 0.0
      %v2284 = vmax.f32 %v2158, 0.0
      %v2285 = vmax.f32 %v2163, 0.0
      %v2286 = vmax.f32 %v2168, 0.0
      %v2287 = vmax.f32 %v2173, 0.0
      %v2288 = vmax.f32 %v2178, 0.0
      %v2289 = vmax.f32 %v2183, 0.0
      %v2290 = vmax.f32 %v2188, 0.0
      %v2291 = vmax.f32 %v2193, 0.0
      %v2292 = vmax.f32 %v2198, 0.0
      %v2293 = vmax.f32 %v2203, 0.0
      %v2294 = vmax.f32 %v2208, 0.0
      %v2295 = vmax.f32 %v2213, 0.0
      %v2296 = vmax.f32 %v2218, 0.0
      %v2297 = vmax.f32 %v2223, 0.0
      %v2298 = vmax.f32 %v2228, 0.0
      %v2299 = vmax.f32 %v2233, 0.0
      %v2300 = vmax.f32 %v2238, 0.0
      %v2301 = vmax.f32 %v2243, 0.0
      %v2302 = vmax.f32 %v2248, 0.0
      %v2303 = vmax.f32 %v2253, 0.0
      %v2304 = vmax.f32 %v2258, 0.0
      %v2305 = vmax.f32 %v2263, 0.0
      %v2306 = vmax.f32 %v2268, 0.0
      %v2307 = vmax.f32 %v2273, 0.0
      %2308 = vst.msk [vmem:[#allocation3] sm:$0xff] %vm1709, 0.0
      %2309 = vst.msk [vmem:[#allocation3 + $0x8] sm:$0xff] %vm1709, 0.0
      %vm2310 = vcmask 60416
      %2311 = vst.msk [vmem:[#allocation3 + $0x10] sm:$0xf] %vm2310, 0.0
      %2312 = vst.msk [vmem:[#allocation3 + $0x18] sm:$0xff] %vm1709, 0.0
      %2313 = vst.msk [vmem:[#allocation3 + $0x20] sm:$0xff] %vm1709, 0.0
      %2314 = vst.msk [vmem:[#allocation3 + $0x28] sm:$0xf] %vm2310, 0.0
      %s2315 = scalar_lea.vmem [#allocation3], 432
      %2316 = vst.msk [vmem:[%s2315] sm:$0xff] %vm1709, 0.0
      %2317 = vst.msk [vmem:[%s2315 + $0x8] sm:$0xff] %vm1709, 0.0
      %2318 = vst.msk [vmem:[%s2315 + $0x10] sm:$0xf] %vm2310, 0.0
      %2319 = vst.msk [vmem:[%s2315 + $0x18] sm:$0xff] %vm1709, 0.0
      %2320 = vst.msk [vmem:[%s2315 + $0x20] sm:$0xff] %vm1709, 0.0
      %2321 = vst.msk [vmem:[%s2315 + $0x28] sm:$0xf] %vm2310, 0.0
      %vm2322 = vcmask 58368
      %2323 = vst.msk [vmem:[#allocation3] sm:$0x3] %vm2322, 0.0
      %2324 = vst.msk [vmem:[#allocation3 + $0x18] sm:$0x3] %vm2322, 0.0
      %2325 = vst.msk [vmem:[#allocation3 + $0x30] sm:$0x3] %vm2322, 0.0
      %2326 = vst.msk [vmem:[#allocation3 + $0x48] sm:$0x3] %vm2322, 0.0
      %2327 = vst.msk [vmem:[#allocation3 + $0x60] sm:$0x3] %vm2322, 0.0
      %2328 = vst.msk [vmem:[#allocation3 + $0x78] sm:$0x3] %vm2322, 0.0
      %2329 = vst.msk [vmem:[#allocation3 + $0x90] sm:$0x3] %vm2322, 0.0
      %2330 = vst.msk [vmem:[#allocation3 + $0xa8] sm:$0x3] %vm2322, 0.0
      %2331 = vst.msk [vmem:[#allocation3 + $0xc0] sm:$0x3] %vm2322, 0.0
      %2332 = vst.msk [vmem:[#allocation3 + $0xd8] sm:$0x3] %vm2322, 0.0
      %2333 = vst.msk [vmem:[#allocation3 + $0xf0] sm:$0x3] %vm2322, 0.0
      %2334 = vst.msk [vmem:[#allocation3 + $0x108] sm:$0x3] %vm2322, 0.0
      %2335 = vst.msk [vmem:[#allocation3 + $0x120] sm:$0x3] %vm2322, 0.0
      %2336 = vst.msk [vmem:[#allocation3 + $0x138] sm:$0x3] %vm2322, 0.0
      %2337 = vst.msk [vmem:[#allocation3 + $0x150] sm:$0x3] %vm2322, 0.0
      %2338 = vst.msk [vmem:[#allocation3 + $0x168] sm:$0x3] %vm2322, 0.0
      %2339 = vst.msk [vmem:[#allocation3 + $0x180] sm:$0x3] %vm2322, 0.0
      %2340 = vst.msk [vmem:[#allocation3 + $0x198] sm:$0x3] %vm2322, 0.0
      %2341 = vst.msk [vmem:[#allocation3 + $0x1b0] sm:$0x3] %vm2322, 0.0
      %2342 = vst.msk [vmem:[#allocation3 + $0x1c8] sm:$0x3] %vm2322, 0.0
      %2343 = vst.msk [vmem:[#allocation3 + $0x12] sm:$0x3] %vm2322, 0.0
      %2344 = vst.msk [vmem:[#allocation3 + $0x2a] sm:$0x3] %vm2322, 0.0
      %2345 = vst.msk [vmem:[#allocation3 + $0x42] sm:$0x3] %vm2322, 0.0
      %2346 = vst.msk [vmem:[#allocation3 + $0x5a] sm:$0x3] %vm2322, 0.0
      %2347 = vst.msk [vmem:[#allocation3 + $0x72] sm:$0x3] %vm2322, 0.0
      %2348 = vst.msk [vmem:[#allocation3 + $0x8a] sm:$0x3] %vm2322, 0.0
      %2349 = vst.msk [vmem:[#allocation3 + $0xa2] sm:$0x3] %vm2322, 0.0
      %2350 = vst.msk [vmem:[#allocation3 + $0xba] sm:$0x3] %vm2322, 0.0
      %2351 = vst.msk [vmem:[#allocation3 + $0xd2] sm:$0x3] %vm2322, 0.0
      %2352 = vst.msk [vmem:[#allocation3 + $0xea] sm:$0x3] %vm2322, 0.0
      %2353 = vst.msk [vmem:[#allocation3 + $0x102] sm:$0x3] %vm2322, 0.0
      %2354 = vst.msk [vmem:[#allocation3 + $0x11a] sm:$0x3] %vm2322, 0.0
      %2355 = vst.msk [vmem:[#allocation3 + $0x132] sm:$0x3] %vm2322, 0.0
      %2356 = vst.msk [vmem:[#allocation3 + $0x14a] sm:$0x3] %vm2322, 0.0
      %2357 = vst.msk [vmem:[#allocation3 + $0x162] sm:$0x3] %vm2322, 0.0
      %2358 = vst.msk [vmem:[#allocation3 + $0x17a] sm:$0x3] %vm2322, 0.0
      %2359 = vst.msk [vmem:[#allocation3 + $0x192] sm:$0x3] %vm2322, 0.0
      %2360 = vst.msk [vmem:[#allocation3 + $0x1aa] sm:$0x3] %vm2322, 0.0
      %2361 = vst.msk [vmem:[#allocation3 + $0x1c2] sm:$0x3] %vm2322, 0.0
      %2362 = vst.msk [vmem:[#allocation3 + $0x1da] sm:$0x3] %vm2322, 0.0
      %s2363 = scalar_lea.vmem [#allocation3], 48
      %2364 = vst.msk [vmem:[%s2363 + $0x2] sm:$0xff] %vm1709, %v2276
      %2365 = vst.msk [vmem:[%s2363 + $0xa] sm:$0xff] %vm1709, %v2277
      %2366 = vst.msk [vmem:[%s2363 + $0x1a] sm:$0xff] %vm1709, %v2278
      %2367 = vst.msk [vmem:[%s2363 + $0x22] sm:$0xff] %vm1709, %v2279
      %2368 = vst.msk [vmem:[%s2363 + $0x32] sm:$0xff] %vm1709, %v2280
      %2369 = vst.msk [vmem:[%s2363 + $0x3a] sm:$0xff] %vm1709, %v2281
      %2370 = vst.msk [vmem:[%s2363 + $0x4a] sm:$0xff] %vm1709, %v2282
      %2371 = vst.msk [vmem:[%s2363 + $0x52] sm:$0xff] %vm1709, %v2283
      %2372 = vst.msk [vmem:[%s2363 + $0x62] sm:$0xff] %vm1709, %v2284
      %2373 = vst.msk [vmem:[%s2363 + $0x6a] sm:$0xff] %vm1709, %v2285
      %2374 = vst.msk [vmem:[%s2363 + $0x7a] sm:$0xff] %vm1709, %v2286
      %2375 = vst.msk [vmem:[%s2363 + $0x82] sm:$0xff] %vm1709, %v2287
      %2376 = vst.msk [vmem:[%s2363 + $0x92] sm:$0xff] %vm1709, %v2288
      %2377 = vst.msk [vmem:[%s2363 + $0x9a] sm:$0xff] %vm1709, %v2289
      %2378 = vst.msk [vmem:[%s2363 + $0xaa] sm:$0xff] %vm1709, %v2290
      %2379 = vst.msk [vmem:[%s2363 + $0xb2] sm:$0xff] %vm1709, %v2291
      %2380 = vst.msk [vmem:[%s2363 + $0xc2] sm:$0xff] %vm1709, %v2292
      %2381 = vst.msk [vmem:[%s2363 + $0xca] sm:$0xff] %vm1709, %v2293
      %2382 = vst.msk [vmem:[%s2363 + $0xda] sm:$0xff] %vm1709, %v2294
      %2383 = vst.msk [vmem:[%s2363 + $0xe2] sm:$0xff] %vm1709, %v2295
      %2384 = vst.msk [vmem:[%s2363 + $0xf2] sm:$0xff] %vm1709, %v2296
      %2385 = vst.msk [vmem:[%s2363 + $0xfa] sm:$0xff] %vm1709, %v2297
      %2386 = vst.msk [vmem:[%s2363 + $0x10a] sm:$0xff] %vm1709, %v2298
      %2387 = vst.msk [vmem:[%s2363 + $0x112] sm:$0xff] %vm1709, %v2299
      %2388 = vst.msk [vmem:[%s2363 + $0x122] sm:$0xff] %vm1709, %v2300
      %2389 = vst.msk [vmem:[%s2363 + $0x12a] sm:$0xff] %vm1709, %v2301
      %2390 = vst.msk [vmem:[%s2363 + $0x13a] sm:$0xff] %vm1709, %v2302
      %2391 = vst.msk [vmem:[%s2363 + $0x142] sm:$0xff] %vm1709, %v2303
      %2392 = vst.msk [vmem:[%s2363 + $0x152] sm:$0xff] %vm1709, %v2304
      %2393 = vst.msk [vmem:[%s2363 + $0x15a] sm:$0xff] %vm1709, %v2305
      %2394 = vst.msk [vmem:[%s2363 + $0x16a] sm:$0xff] %vm1709, %v2306
      %2395 = vst.msk [vmem:[%s2363 + $0x172] sm:$0xff] %vm1709, %v2307
      %v2396 = vld [vmem:[#allocation3] ss:$2 sm:$0xff]
      %s2397 = scalar_lea.vmem [#allocation3], 48
      %v2398 = vld [vmem:[%s2397] ss:$2 sm:$0xff]
      %s2399 = scalar_lea.vmem [#allocation3], 96
      %v2400 = vld [vmem:[%s2399] ss:$2 sm:$0xff]
      %s2401 = scalar_lea.vmem [#allocation3], 144
      %v2402 = vld [vmem:[%s2401] ss:$2 sm:$0xff]
      %s2403 = scalar_lea.vmem [#allocation3], 192
      %v2404 = vld [vmem:[%s2403] ss:$2 sm:$0xff]
      %s2405 = scalar_lea.vmem [#allocation3], 240
      %v2406 = vld [vmem:[%s2405] ss:$2 sm:$0xff]
      %s2407 = scalar_lea.vmem [#allocation3], 288
      %v2408 = vld [vmem:[%s2407] ss:$2 sm:$0xff]
      %s2409 = scalar_lea.vmem [#allocation3], 336
      %v2410 = vld [vmem:[%s2409] ss:$2 sm:$0xff]
      %s2411 = scalar_lea.vmem [#allocation3], 1
      %v2412 = vld [vmem:[%s2411] ss:$2 sm:$0xff]
      %s2413 = scalar_lea.vmem [#allocation3], 49
      %v2414 = vld [vmem:[%s2413] ss:$2 sm:$0xff]
      %s2415 = scalar_lea.vmem [#allocation3], 97
      %v2416 = vld [vmem:[%s2415] ss:$2 sm:$0xff]
      %s2417 = scalar_lea.vmem [#allocation3], 145
      %v2418 = vld [vmem:[%s2417] ss:$2 sm:$0xff]
      %s2419 = scalar_lea.vmem [#allocation3], 193
      %v2420 = vld [vmem:[%s2419] ss:$2 sm:$0xff]
      %s2421 = scalar_lea.vmem [#allocation3], 241
      %v2422 = vld [vmem:[%s2421] ss:$2 sm:$0xff]
      %s2423 = scalar_lea.vmem [#allocation3], 289
      %v2424 = vld [vmem:[%s2423] ss:$2 sm:$0xff]
      %s2425 = scalar_lea.vmem [#allocation3], 337
      %v2426 = vld [vmem:[%s2425] ss:$2 sm:$0xff]
      %s2427 = scalar_lea.vmem [#allocation3], 2
      %v2428 = vld [vmem:[%s2427] ss:$2 sm:$0xff]
      %s2429 = scalar_lea.vmem [#allocation3], 50
      %v2430 = vld [vmem:[%s2429] ss:$2 sm:$0xff]
      %s2431 = scalar_lea.vmem [#allocation3], 98
      %v2432 = vld [vmem:[%s2431] ss:$2 sm:$0xff]
      %s2433 = scalar_lea.vmem [#allocation3], 146
      %v2434 = vld [vmem:[%s2433] ss:$2 sm:$0xff]
      %s2435 = scalar_lea.vmem [#allocation3], 194
      %v2436 = vld [vmem:[%s2435] ss:$2 sm:$0xff]
      %s2437 = scalar_lea.vmem [#allocation3], 242
      %v2438 = vld [vmem:[%s2437] ss:$2 sm:$0xff]
      %s2439 = scalar_lea.vmem [#allocation3], 290
      %v2440 = vld [vmem:[%s2439] ss:$2 sm:$0xff]
      %s2441 = scalar_lea.vmem [#allocation3], 338
      %v2442 = vld [vmem:[%s2441] ss:$2 sm:$0xff]
      %s2443 = scalar_lea.vmem [#allocation3], 3
      %v2444 = vld [vmem:[%s2443] ss:$2 sm:$0xff]
      %s2445 = scalar_lea.vmem [#allocation3], 51
      %v2446 = vld [vmem:[%s2445] ss:$2 sm:$0xff]
      %s2447 = scalar_lea.vmem [#allocation3], 99
      %v2448 = vld [vmem:[%s2447] ss:$2 sm:$0xff]
      %s2449 = scalar_lea.vmem [#allocation3], 147
      %v2450 = vld [vmem:[%s2449] ss:$2 sm:$0xff]
      %s2451 = scalar_lea.vmem [#allocation3], 195
      %v2452 = vld [vmem:[%s2451] ss:$2 sm:$0xff]
      %s2453 = scalar_lea.vmem [#allocation3], 243
      %v2454 = vld [vmem:[%s2453] ss:$2 sm:$0xff]
      %s2455 = scalar_lea.vmem [#allocation3], 291
      %v2456 = vld [vmem:[%s2455] ss:$2 sm:$0xff]
      %s2457 = scalar_lea.vmem [#allocation3], 339
      %v2458 = vld [vmem:[%s2457] ss:$2 sm:$0xff]
      %s2459 = scalar_lea.vmem [#allocation3], 4
      %v2460 = vld [vmem:[%s2459] ss:$2 sm:$0xff]
      %s2461 = scalar_lea.vmem [#allocation3], 52
      %v2462 = vld [vmem:[%s2461] ss:$2 sm:$0xff]
      %s2463 = scalar_lea.vmem [#allocation3], 100
      %v2464 = vld [vmem:[%s2463] ss:$2 sm:$0xff]
      %s2465 = scalar_lea.vmem [#allocation3], 148
      %v2466 = vld [vmem:[%s2465] ss:$2 sm:$0xff]
      %s2467 = scalar_lea.vmem [#allocation3], 196
      %v2468 = vld [vmem:[%s2467] ss:$2 sm:$0xff]
      %s2469 = scalar_lea.vmem [#allocation3], 244
      %v2470 = vld [vmem:[%s2469] ss:$2 sm:$0xff]
      %s2471 = scalar_lea.vmem [#allocation3], 292
      %v2472 = vld [vmem:[%s2471] ss:$2 sm:$0xff]
      %s2473 = scalar_lea.vmem [#allocation3], 340
      %v2474 = vld [vmem:[%s2473] ss:$2 sm:$0xff]
      %s2475 = scalar_lea.vmem [#allocation3], 24
      %v2476 = vld [vmem:[%s2475] ss:$2 sm:$0xff]
      %s2477 = scalar_lea.vmem %s2475, 48 [#allocation3]
      %v2478 = vld [vmem:[%s2477] ss:$2 sm:$0xff]
      %s2479 = scalar_lea.vmem %s2475, 96 [#allocation3]
      %v2480 = vld [vmem:[%s2479] ss:$2 sm:$0xff]
      %s2481 = scalar_lea.vmem %s2475, 144 [#allocation3]
      %v2482 = vld [vmem:[%s2481] ss:$2 sm:$0xff]
      %s2483 = scalar_lea.vmem %s2475, 192 [#allocation3]
      %v2484 = vld [vmem:[%s2483] ss:$2 sm:$0xff]
      %s2485 = scalar_lea.vmem %s2475, 240 [#allocation3]
      %v2486 = vld [vmem:[%s2485] ss:$2 sm:$0xff]
      %s2487 = scalar_lea.vmem %s2475, 288 [#allocation3]
      %v2488 = vld [vmem:[%s2487] ss:$2 sm:$0xff]
      %s2489 = scalar_lea.vmem %s2475, 336 [#allocation3]
      %v2490 = vld [vmem:[%s2489] ss:$2 sm:$0xff]
      %s2491 = scalar_lea.vmem %s2475, 1 [#allocation3]
      %v2492 = vld [vmem:[%s2491] ss:$2 sm:$0xff]
      %s2493 = scalar_lea.vmem %s2475, 49 [#allocation3]
      %v2494 = vld [vmem:[%s2493] ss:$2 sm:$0xff]
      %s2495 = scalar_lea.vmem %s2475, 97 [#allocation3]
      %v2496 = vld [vmem:[%s2495] ss:$2 sm:$0xff]
      %s2497 = scalar_lea.vmem %s2475, 145 [#allocation3]
      %v2498 = vld [vmem:[%s2497] ss:$2 sm:$0xff]
      %s2499 = scalar_lea.vmem %s2475, 193 [#allocation3]
      %v2500 = vld [vmem:[%s2499] ss:$2 sm:$0xff]
      %s2501 = scalar_lea.vmem %s2475, 241 [#allocation3]
      %v2502 = vld [vmem:[%s2501] ss:$2 sm:$0xff]
      %s2503 = scalar_lea.vmem %s2475, 289 [#allocation3]
      %v2504 = vld [vmem:[%s2503] ss:$2 sm:$0xff]
      %s2505 = scalar_lea.vmem %s2475, 337 [#allocation3]
      %v2506 = vld [vmem:[%s2505] ss:$2 sm:$0xff]
      %s2507 = scalar_lea.vmem %s2475, 2 [#allocation3]
      %v2508 = vld [vmem:[%s2507] ss:$2 sm:$0xff]
      %s2509 = scalar_lea.vmem %s2475, 50 [#allocation3]
      %v2510 = vld [vmem:[%s2509] ss:$2 sm:$0xff]
      %s2511 = scalar_lea.vmem %s2475, 98 [#allocation3]
      %v2512 = vld [vmem:[%s2511] ss:$2 sm:$0xff]
      %s2513 = scalar_lea.vmem %s2475, 146 [#allocation3]
      %v2514 = vld [vmem:[%s2513] ss:$2 sm:$0xff]
      %s2515 = scalar_lea.vmem %s2475, 194 [#allocation3]
      %v2516 = vld [vmem:[%s2515] ss:$2 sm:$0xff]
      %s2517 = scalar_lea.vmem %s2475, 242 [#allocation3]
      %v2518 = vld [vmem:[%s2517] ss:$2 sm:$0xff]
      %s2519 = scalar_lea.vmem %s2475, 290 [#allocation3]
      %v2520 = vld [vmem:[%s2519] ss:$2 sm:$0xff]
      %s2521 = scalar_lea.vmem %s2475, 338 [#allocation3]
      %v2522 = vld [vmem:[%s2521] ss:$2 sm:$0xff]
      %s2523 = scalar_lea.vmem %s2475, 3 [#allocation3]
      %v2524 = vld [vmem:[%s2523] ss:$2 sm:$0xff]
      %s2525 = scalar_lea.vmem %s2475, 51 [#allocation3]
      %v2526 = vld [vmem:[%s2525] ss:$2 sm:$0xff]
      %s2527 = scalar_lea.vmem %s2475, 99 [#allocation3]
      %v2528 = vld [vmem:[%s2527] ss:$2 sm:$0xff]
      %s2529 = scalar_lea.vmem %s2475, 147 [#allocation3]
      %v2530 = vld [vmem:[%s2529] ss:$2 sm:$0xff]
      %s2531 = scalar_lea.vmem %s2475, 195 [#allocation3]
      %v2532 = vld [vmem:[%s2531] ss:$2 sm:$0xff]
      %s2533 = scalar_lea.vmem %s2475, 243 [#allocation3]
      %v2534 = vld [vmem:[%s2533] ss:$2 sm:$0xff]
      %s2535 = scalar_lea.vmem %s2475, 291 [#allocation3]
      %v2536 = vld [vmem:[%s2535] ss:$2 sm:$0xff]
      %s2537 = scalar_lea.vmem %s2475, 339 [#allocation3]
      %v2538 = vld [vmem:[%s2537] ss:$2 sm:$0xff]
      %s2539 = scalar_lea.vmem %s2475, 4 [#allocation3]
      %v2540 = vld [vmem:[%s2539] ss:$2 sm:$0xff]
      %s2541 = scalar_lea.vmem %s2475, 52 [#allocation3]
      %v2542 = vld [vmem:[%s2541] ss:$2 sm:$0xff]
      %s2543 = scalar_lea.vmem %s2475, 100 [#allocation3]
      %v2544 = vld [vmem:[%s2543] ss:$2 sm:$0xff]
      %s2545 = scalar_lea.vmem %s2475, 148 [#allocation3]
      %v2546 = vld [vmem:[%s2545] ss:$2 sm:$0xff]
      %s2547 = scalar_lea.vmem %s2475, 196 [#allocation3]
      %v2548 = vld [vmem:[%s2547] ss:$2 sm:$0xff]
      %s2549 = scalar_lea.vmem %s2475, 244 [#allocation3]
      %v2550 = vld [vmem:[%s2549] ss:$2 sm:$0xff]
      %s2551 = scalar_lea.vmem %s2475, 292 [#allocation3]
      %v2552 = vld [vmem:[%s2551] ss:$2 sm:$0xff]
      %s2553 = scalar_lea.vmem %s2475, 340 [#allocation3]
      %v2554 = vld [vmem:[%s2553] ss:$2 sm:$0xff]
      %v2555 = vld [vmem:[%s2363] ss:$2 sm:$0xff]
      %s2556 = scalar_lea.vmem %s2363, 48 [#allocation3]
      %v2557 = vld [vmem:[%s2556] ss:$2 sm:$0xff]
      %s2558 = scalar_lea.vmem %s2363, 96 [#allocation3]
      %v2559 = vld [vmem:[%s2558] ss:$2 sm:$0xff]
      %s2560 = scalar_lea.vmem %s2363, 144 [#allocation3]
      %v2561 = vld [vmem:[%s2560] ss:$2 sm:$0xff]
      %s2562 = scalar_lea.vmem %s2363, 192 [#allocation3]
      %v2563 = vld [vmem:[%s2562] ss:$2 sm:$0xff]
      %s2564 = scalar_lea.vmem %s2363, 240 [#allocation3]
      %v2565 = vld [vmem:[%s2564] ss:$2 sm:$0xff]
      %s2566 = scalar_lea.vmem %s2363, 288 [#allocation3]
      %v2567 = vld [vmem:[%s2566] ss:$2 sm:$0xff]
      %s2568 = scalar_lea.vmem %s2363, 336 [#allocation3]
      %v2569 = vld [vmem:[%s2568] ss:$2 sm:$0xff]
      %s2570 = scalar_lea.vmem %s2363, 1 [#allocation3]
      %v2571 = vld [vmem:[%s2570] ss:$2 sm:$0xff]
      %s2572 = scalar_lea.vmem %s2363, 49 [#allocation3]
      %v2573 = vld [vmem:[%s2572] ss:$2 sm:$0xff]
      %s2574 = scalar_lea.vmem %s2363, 97 [#allocation3]
      %v2575 = vld [vmem:[%s2574] ss:$2 sm:$0xff]
      %s2576 = scalar_lea.vmem %s2363, 145 [#allocation3]
      %v2577 = vld [vmem:[%s2576] ss:$2 sm:$0xff]
      %s2578 = scalar_lea.vmem %s2363, 193 [#allocation3]
      %v2579 = vld [vmem:[%s2578] ss:$2 sm:$0xff]
      %s2580 = scalar_lea.vmem %s2363, 241 [#allocation3]
      %v2581 = vld [vmem:[%s2580] ss:$2 sm:$0xff]
      %s2582 = scalar_lea.vmem %s2363, 289 [#allocation3]
      %v2583 = vld [vmem:[%s2582] ss:$2 sm:$0xff]
      %s2584 = scalar_lea.vmem %s2363, 337 [#allocation3]
      %v2585 = vld [vmem:[%s2584] ss:$2 sm:$0xff]
      %s2586 = scalar_lea.vmem %s2363, 2 [#allocation3]
      %v2587 = vld [vmem:[%s2586] ss:$2 sm:$0xff]
      %s2588 = scalar_lea.vmem %s2363, 50 [#allocation3]
      %v2589 = vld [vmem:[%s2588] ss:$2 sm:$0xff]
      %s2590 = scalar_lea.vmem %s2363, 98 [#allocation3]
      %v2591 = vld [vmem:[%s2590] ss:$2 sm:$0xff]
      %s2592 = scalar_lea.vmem %s2363, 146 [#allocation3]
      %v2593 = vld [vmem:[%s2592] ss:$2 sm:$0xff]
      %s2594 = scalar_lea.vmem %s2363, 194 [#allocation3]
      %v2595 = vld [vmem:[%s2594] ss:$2 sm:$0xff]
      %s2596 = scalar_lea.vmem %s2363, 242 [#allocation3]
      %v2597 = vld [vmem:[%s2596] ss:$2 sm:$0xff]
      %s2598 = scalar_lea.vmem %s2363, 290 [#allocation3]
      %v2599 = vld [vmem:[%s2598] ss:$2 sm:$0xff]
      %s2600 = scalar_lea.vmem %s2363, 338 [#allocation3]
      %v2601 = vld [vmem:[%s2600] ss:$2 sm:$0xff]
      %s2602 = scalar_lea.vmem %s2363, 3 [#allocation3]
      %v2603 = vld [vmem:[%s2602] ss:$2 sm:$0xff]
      %s2604 = scalar_lea.vmem %s2363, 51 [#allocation3]
      %v2605 = vld [vmem:[%s2604] ss:$2 sm:$0xff]
      %s2606 = scalar_lea.vmem %s2363, 99 [#allocation3]
      %v2607 = vld [vmem:[%s2606] ss:$2 sm:$0xff]
      %s2608 = scalar_lea.vmem %s2363, 147 [#allocation3]
      %v2609 = vld [vmem:[%s2608] ss:$2 sm:$0xff]
      %s2610 = scalar_lea.vmem %s2363, 195 [#allocation3]
      %v2611 = vld [vmem:[%s2610] ss:$2 sm:$0xff]
      %s2612 = scalar_lea.vmem %s2363, 243 [#allocation3]
      %v2613 = vld [vmem:[%s2612] ss:$2 sm:$0xff]
      %s2614 = scalar_lea.vmem %s2363, 291 [#allocation3]
      %v2615 = vld [vmem:[%s2614] ss:$2 sm:$0xff]
      %s2616 = scalar_lea.vmem %s2363, 339 [#allocation3]
      %v2617 = vld [vmem:[%s2616] ss:$2 sm:$0xff]
      %s2618 = scalar_lea.vmem %s2363, 4 [#allocation3]
      %v2619 = vld [vmem:[%s2618] ss:$2 sm:$0xff]
      %s2620 = scalar_lea.vmem %s2363, 52 [#allocation3]
      %v2621 = vld [vmem:[%s2620] ss:$2 sm:$0xff]
      %s2622 = scalar_lea.vmem %s2363, 100 [#allocation3]
      %v2623 = vld [vmem:[%s2622] ss:$2 sm:$0xff]
      %s2624 = scalar_lea.vmem %s2363, 148 [#allocation3]
      %v2625 = vld [vmem:[%s2624] ss:$2 sm:$0xff]
      %s2626 = scalar_lea.vmem %s2363, 196 [#allocation3]
      %v2627 = vld [vmem:[%s2626] ss:$2 sm:$0xff]
      %s2628 = scalar_lea.vmem %s2363, 244 [#allocation3]
      %v2629 = vld [vmem:[%s2628] ss:$2 sm:$0xff]
      %s2630 = scalar_lea.vmem %s2363, 292 [#allocation3]
      %v2631 = vld [vmem:[%s2630] ss:$2 sm:$0xff]
      %s2632 = scalar_lea.vmem %s2363, 340 [#allocation3]
      %v2633 = vld [vmem:[%s2632] ss:$2 sm:$0xff]
      %s2634 = scalar_lea.vmem [#allocation3], 72
      %v2635 = vld [vmem:[%s2634] ss:$2 sm:$0xff]
      %s2636 = scalar_lea.vmem %s2634, 48 [#allocation3]
      %v2637 = vld [vmem:[%s2636] ss:$2 sm:$0xff]
      %s2638 = scalar_lea.vmem %s2634, 96 [#allocation3]
      %v2639 = vld [vmem:[%s2638] ss:$2 sm:$0xff]
      %s2640 = scalar_lea.vmem %s2634, 144 [#allocation3]
      %v2641 = vld [vmem:[%s2640] ss:$2 sm:$0xff]
      %s2642 = scalar_lea.vmem %s2634, 192 [#allocation3]
      %v2643 = vld [vmem:[%s2642] ss:$2 sm:$0xff]
      %s2644 = scalar_lea.vmem %s2634, 240 [#allocation3]
      %v2645 = vld [vmem:[%s2644] ss:$2 sm:$0xff]
      %s2646 = scalar_lea.vmem %s2634, 288 [#allocation3]
      %v2647 = vld [vmem:[%s2646] ss:$2 sm:$0xff]
      %s2648 = scalar_lea.vmem %s2634, 336 [#allocation3]
      %v2649 = vld [vmem:[%s2648] ss:$2 sm:$0xff]
      %s2650 = scalar_lea.vmem %s2634, 1 [#allocation3]
      %v2651 = vld [vmem:[%s2650] ss:$2 sm:$0xff]
      %s2652 = scalar_lea.vmem %s2634, 49 [#allocation3]
      %v2653 = vld [vmem:[%s2652] ss:$2 sm:$0xff]
      %s2654 = scalar_lea.vmem %s2634, 97 [#allocation3]
      %v2655 = vld [vmem:[%s2654] ss:$2 sm:$0xff]
      %s2656 = scalar_lea.vmem %s2634, 145 [#allocation3]
      %v2657 = vld [vmem:[%s2656] ss:$2 sm:$0xff]
      %s2658 = scalar_lea.vmem %s2634, 193 [#allocation3]
      %v2659 = vld [vmem:[%s2658] ss:$2 sm:$0xff]
      %s2660 = scalar_lea.vmem %s2634, 241 [#allocation3]
      %v2661 = vld [vmem:[%s2660] ss:$2 sm:$0xff]
      %s2662 = scalar_lea.vmem %s2634, 289 [#allocation3]
      %v2663 = vld [vmem:[%s2662] ss:$2 sm:$0xff]
      %s2664 = scalar_lea.vmem %s2634, 337 [#allocation3]
      %v2665 = vld [vmem:[%s2664] ss:$2 sm:$0xff]
      %s2666 = scalar_lea.vmem %s2634, 2 [#allocation3]
      %v2667 = vld [vmem:[%s2666] ss:$2 sm:$0xff]
      %s2668 = scalar_lea.vmem %s2634, 50 [#allocation3]
      %v2669 = vld [vmem:[%s2668] ss:$2 sm:$0xff]
      %s2670 = scalar_lea.vmem %s2634, 98 [#allocation3]
      %v2671 = vld [vmem:[%s2670] ss:$2 sm:$0xff]
      %s2672 = scalar_lea.vmem %s2634, 146 [#allocation3]
      %v2673 = vld [vmem:[%s2672] ss:$2 sm:$0xff]
      %s2674 = scalar_lea.vmem %s2634, 194 [#allocation3]
      %v2675 = vld [vmem:[%s2674] ss:$2 sm:$0xff]
      %s2676 = scalar_lea.vmem %s2634, 242 [#allocation3]
      %v2677 = vld [vmem:[%s2676] ss:$2 sm:$0xff]
      %s2678 = scalar_lea.vmem %s2634, 290 [#allocation3]
      %v2679 = vld [vmem:[%s2678] ss:$2 sm:$0xff]
      %s2680 = scalar_lea.vmem %s2634, 338 [#allocation3]
      %v2681 = vld [vmem:[%s2680] ss:$2 sm:$0xff]
      %s2682 = scalar_lea.vmem %s2634, 3 [#allocation3]
      %v2683 = vld [vmem:[%s2682] ss:$2 sm:$0xff]
      %s2684 = scalar_lea.vmem %s2634, 51 [#allocation3]
      %v2685 = vld [vmem:[%s2684] ss:$2 sm:$0xff]
      %s2686 = scalar_lea.vmem %s2634, 99 [#allocation3]
      %v2687 = vld [vmem:[%s2686] ss:$2 sm:$0xff]
      %s2688 = scalar_lea.vmem %s2634, 147 [#allocation3]
      %v2689 = vld [vmem:[%s2688] ss:$2 sm:$0xff]
      %s2690 = scalar_lea.vmem %s2634, 195 [#allocation3]
      %v2691 = vld [vmem:[%s2690] ss:$2 sm:$0xff]
      %s2692 = scalar_lea.vmem %s2634, 243 [#allocation3]
      %v2693 = vld [vmem:[%s2692] ss:$2 sm:$0xff]
      %s2694 = scalar_lea.vmem %s2634, 291 [#allocation3]
      %v2695 = vld [vmem:[%s2694] ss:$2 sm:$0xff]
      %s2696 = scalar_lea.vmem %s2634, 339 [#allocation3]
      %v2697 = vld [vmem:[%s2696] ss:$2 sm:$0xff]
      %s2698 = scalar_lea.vmem %s2634, 4 [#allocation3]
      %v2699 = vld [vmem:[%s2698] ss:$2 sm:$0xff]
      %s2700 = scalar_lea.vmem %s2634, 52 [#allocation3]
      %v2701 = vld [vmem:[%s2700] ss:$2 sm:$0xff]
      %s2702 = scalar_lea.vmem %s2634, 100 [#allocation3]
      %v2703 = vld [vmem:[%s2702] ss:$2 sm:$0xff]
      %s2704 = scalar_lea.vmem %s2634, 148 [#allocation3]
      %v2705 = vld [vmem:[%s2704] ss:$2 sm:$0xff]
      %s2706 = scalar_lea.vmem %s2634, 196 [#allocation3]
      %v2707 = vld [vmem:[%s2706] ss:$2 sm:$0xff]
      %s2708 = scalar_lea.vmem %s2634, 244 [#allocation3]
      %v2709 = vld [vmem:[%s2708] ss:$2 sm:$0xff]
      %s2710 = scalar_lea.vmem %s2634, 292 [#allocation3]
      %v2711 = vld [vmem:[%s2710] ss:$2 sm:$0xff]
      %s2712 = scalar_lea.vmem %s2634, 340 [#allocation3]
      %v2713 = vld [vmem:[%s2712] ss:$2 sm:$0xff]
      %s2714 = scalar_lea.vmem [#allocation3], 96
      %v2715 = vld [vmem:[%s2714] ss:$2 sm:$0xff]
      %s2716 = scalar_lea.vmem %s2714, 48 [#allocation3]
      %v2717 = vld [vmem:[%s2716] ss:$2 sm:$0xff]
      %s2718 = scalar_lea.vmem %s2714, 96 [#allocation3]
      %v2719 = vld [vmem:[%s2718] ss:$2 sm:$0xff]
      %s2720 = scalar_lea.vmem %s2714, 144 [#allocation3]
      %v2721 = vld [vmem:[%s2720] ss:$2 sm:$0xff]
      %s2722 = scalar_lea.vmem %s2714, 192 [#allocation3]
      %v2723 = vld [vmem:[%s2722] ss:$2 sm:$0xff]
      %s2724 = scalar_lea.vmem %s2714, 240 [#allocation3]
      %v2725 = vld [vmem:[%s2724] ss:$2 sm:$0xff]
      %s2726 = scalar_lea.vmem %s2714, 288 [#allocation3]
      %v2727 = vld [vmem:[%s2726] ss:$2 sm:$0xff]
      %s2728 = scalar_lea.vmem %s2714, 336 [#allocation3]
      %v2729 = vld [vmem:[%s2728] ss:$2 sm:$0xff]
      %s2730 = scalar_lea.vmem %s2714, 1 [#allocation3]
      %v2731 = vld [vmem:[%s2730] ss:$2 sm:$0xff]
      %s2732 = scalar_lea.vmem %s2714, 49 [#allocation3]
      %v2733 = vld [vmem:[%s2732] ss:$2 sm:$0xff]
      %s2734 = scalar_lea.vmem %s2714, 97 [#allocation3]
      %v2735 = vld [vmem:[%s2734] ss:$2 sm:$0xff]
      %s2736 = scalar_lea.vmem %s2714, 145 [#allocation3]
      %v2737 = vld [vmem:[%s2736] ss:$2 sm:$0xff]
      %s2738 = scalar_lea.vmem %s2714, 193 [#allocation3]
      %v2739 = vld [vmem:[%s2738] ss:$2 sm:$0xff]
      %s2740 = scalar_lea.vmem %s2714, 241 [#allocation3]
      %v2741 = vld [vmem:[%s2740] ss:$2 sm:$0xff]
      %s2742 = scalar_lea.vmem %s2714, 289 [#allocation3]
      %v2743 = vld [vmem:[%s2742] ss:$2 sm:$0xff]
      %s2744 = scalar_lea.vmem %s2714, 337 [#allocation3]
      %v2745 = vld [vmem:[%s2744] ss:$2 sm:$0xff]
      %s2746 = scalar_lea.vmem %s2714, 2 [#allocation3]
      %v2747 = vld [vmem:[%s2746] ss:$2 sm:$0xff]
      %s2748 = scalar_lea.vmem %s2714, 50 [#allocation3]
      %v2749 = vld [vmem:[%s2748] ss:$2 sm:$0xff]
      %s2750 = scalar_lea.vmem %s2714, 98 [#allocation3]
      %v2751 = vld [vmem:[%s2750] ss:$2 sm:$0xff]
      %s2752 = scalar_lea.vmem %s2714, 146 [#allocation3]
      %v2753 = vld [vmem:[%s2752] ss:$2 sm:$0xff]
      %s2754 = scalar_lea.vmem %s2714, 194 [#allocation3]
      %v2755 = vld [vmem:[%s2754] ss:$2 sm:$0xff]
      %s2756 = scalar_lea.vmem %s2714, 242 [#allocation3]
      %v2757 = vld [vmem:[%s2756] ss:$2 sm:$0xff]
      %s2758 = scalar_lea.vmem %s2714, 290 [#allocation3]
      %v2759 = vld [vmem:[%s2758] ss:$2 sm:$0xff]
      %s2760 = scalar_lea.vmem %s2714, 338 [#allocation3]
      %v2761 = vld [vmem:[%s2760] ss:$2 sm:$0xff]
      %s2762 = scalar_lea.vmem %s2714, 3 [#allocation3]
      %v2763 = vld [vmem:[%s2762] ss:$2 sm:$0xff]
      %s2764 = scalar_lea.vmem %s2714, 51 [#allocation3]
      %v2765 = vld [vmem:[%s2764] ss:$2 sm:$0xff]
      %s2766 = scalar_lea.vmem %s2714, 99 [#allocation3]
      %v2767 = vld [vmem:[%s2766] ss:$2 sm:$0xff]
      %s2768 = scalar_lea.vmem %s2714, 147 [#allocation3]
      %v2769 = vld [vmem:[%s2768] ss:$2 sm:$0xff]
      %s2770 = scalar_lea.vmem %s2714, 195 [#allocation3]
      %v2771 = vld [vmem:[%s2770] ss:$2 sm:$0xff]
      %s2772 = scalar_lea.vmem %s2714, 243 [#allocation3]
      %v2773 = vld [vmem:[%s2772] ss:$2 sm:$0xff]
      %s2774 = scalar_lea.vmem %s2714, 291 [#allocation3]
      %v2775 = vld [vmem:[%s2774] ss:$2 sm:$0xff]
      %s2776 = scalar_lea.vmem %s2714, 339 [#allocation3]
      %v2777 = vld [vmem:[%s2776] ss:$2 sm:$0xff]
      %s2778 = scalar_lea.vmem %s2714, 4 [#allocation3]
      %v2779 = vld [vmem:[%s2778] ss:$2 sm:$0xff]
      %s2780 = scalar_lea.vmem %s2714, 52 [#allocation3]
      %v2781 = vld [vmem:[%s2780] ss:$2 sm:$0xff]
      %s2782 = scalar_lea.vmem %s2714, 100 [#allocation3]
      %v2783 = vld [vmem:[%s2782] ss:$2 sm:$0xff]
      %s2784 = scalar_lea.vmem %s2714, 148 [#allocation3]
      %v2785 = vld [vmem:[%s2784] ss:$2 sm:$0xff]
      %s2786 = scalar_lea.vmem %s2714, 196 [#allocation3]
      %v2787 = vld [vmem:[%s2786] ss:$2 sm:$0xff]
      %s2788 = scalar_lea.vmem %s2714, 244 [#allocation3]
      %v2789 = vld [vmem:[%s2788] ss:$2 sm:$0xff]
      %s2790 = scalar_lea.vmem %s2714, 292 [#allocation3]
      %v2791 = vld [vmem:[%s2790] ss:$2 sm:$0xff]
      %s2792 = scalar_lea.vmem %s2714, 340 [#allocation3]
      %v2793 = vld [vmem:[%s2792] ss:$2 sm:$0xff]
      %2802 = vrot.lane.b32.xlu0 %v2412, 8
      %v2803 = vpop.permute.xlu0 %2802
      %2804 = vrot.lane.b32.xlu0 %v2414, 8
      %v2805 = vpop.permute.xlu0 %2804
      %2806 = vrot.lane.b32.xlu0 %v2416, 8
      %v2807 = vpop.permute.xlu0 %2806
      %2808 = vrot.lane.b32.xlu0 %v2418, 8
      %v2809 = vpop.permute.xlu0 %2808
      %2810 = vrot.lane.b32.xlu0 %v2420, 8
      %v2811 = vpop.permute.xlu0 %2810
      %2812 = vrot.lane.b32.xlu0 %v2422, 8
      %v2813 = vpop.permute.xlu0 %2812
      %2814 = vrot.lane.b32.xlu0 %v2424, 8
      %v2815 = vpop.permute.xlu0 %2814
      %2816 = vrot.lane.b32.xlu0 %v2426, 8
      %v2817 = vpop.permute.xlu0 %2816
      %2834 = vrot.lane.b32.xlu0 %v2428, 16
      %v2835 = vpop.permute.xlu0 %2834
      %2836 = vrot.lane.b32.xlu0 %v2430, 16
      %v2837 = vpop.permute.xlu0 %2836
      %2838 = vrot.lane.b32.xlu0 %v2432, 16
      %v2839 = vpop.permute.xlu0 %2838
      %2840 = vrot.lane.b32.xlu0 %v2434, 16
      %v2841 = vpop.permute.xlu0 %2840
      %2842 = vrot.lane.b32.xlu0 %v2436, 16
      %v2843 = vpop.permute.xlu0 %2842
      %2844 = vrot.lane.b32.xlu0 %v2438, 16
      %v2845 = vpop.permute.xlu0 %2844
      %2846 = vrot.lane.b32.xlu0 %v2440, 16
      %v2847 = vpop.permute.xlu0 %2846
      %2848 = vrot.lane.b32.xlu0 %v2442, 16
      %v2849 = vpop.permute.xlu0 %2848
      %2866 = vrot.lane.b32.xlu0 %v2444, 24
      %v2867 = vpop.permute.xlu0 %2866
      %2868 = vrot.lane.b32.xlu0 %v2446, 24
      %v2869 = vpop.permute.xlu0 %2868
      %2870 = vrot.lane.b32.xlu0 %v2448, 24
      %v2871 = vpop.permute.xlu0 %2870
      %2872 = vrot.lane.b32.xlu0 %v2450, 24
      %v2873 = vpop.permute.xlu0 %2872
      %2874 = vrot.lane.b32.xlu0 %v2452, 24
      %v2875 = vpop.permute.xlu0 %2874
      %2876 = vrot.lane.b32.xlu0 %v2454, 24
      %v2877 = vpop.permute.xlu0 %2876
      %2878 = vrot.lane.b32.xlu0 %v2456, 24
      %v2879 = vpop.permute.xlu0 %2878
      %2880 = vrot.lane.b32.xlu0 %v2458, 24
      %v2881 = vpop.permute.xlu0 %2880
      %2898 = vrot.lane.b32.xlu0 %v2460, 32
      %v2899 = vpop.permute.xlu0 %2898
      %2900 = vrot.lane.b32.xlu0 %v2462, 32
      %v2901 = vpop.permute.xlu0 %2900
      %2902 = vrot.lane.b32.xlu0 %v2464, 32
      %v2903 = vpop.permute.xlu0 %2902
      %2904 = vrot.lane.b32.xlu0 %v2466, 32
      %v2905 = vpop.permute.xlu0 %2904
      %2906 = vrot.lane.b32.xlu0 %v2468, 32
      %v2907 = vpop.permute.xlu0 %2906
      %2908 = vrot.lane.b32.xlu0 %v2470, 32
      %v2909 = vpop.permute.xlu0 %2908
      %2910 = vrot.lane.b32.xlu0 %v2472, 32
      %v2911 = vpop.permute.xlu0 %2910
      %2912 = vrot.lane.b32.xlu0 %v2474, 32
      %v2913 = vpop.permute.xlu0 %2912
      %2930 = vrot.lane.b32.xlu0 %v2476, 40
      %v2931 = vpop.permute.xlu0 %2930
      %2932 = vrot.lane.b32.xlu0 %v2478, 40
      %v2933 = vpop.permute.xlu0 %2932
      %2934 = vrot.lane.b32.xlu0 %v2480, 40
      %v2935 = vpop.permute.xlu0 %2934
      %2936 = vrot.lane.b32.xlu0 %v2482, 40
      %v2937 = vpop.permute.xlu0 %2936
      %2938 = vrot.lane.b32.xlu0 %v2484, 40
      %v2939 = vpop.permute.xlu0 %2938
      %2940 = vrot.lane.b32.xlu0 %v2486, 40
      %v2941 = vpop.permute.xlu0 %2940
      %2942 = vrot.lane.b32.xlu0 %v2488, 40
      %v2943 = vpop.permute.xlu0 %2942
      %2944 = vrot.lane.b32.xlu0 %v2490, 40
      %v2945 = vpop.permute.xlu0 %2944
      %2962 = vrot.lane.b32.xlu0 %v2492, 48
      %v2963 = vpop.permute.xlu0 %2962
      %2964 = vrot.lane.b32.xlu0 %v2494, 48
      %v2965 = vpop.permute.xlu0 %2964
      %2966 = vrot.lane.b32.xlu0 %v2496, 48
      %v2967 = vpop.permute.xlu0 %2966
      %2968 = vrot.lane.b32.xlu0 %v2498, 48
      %v2969 = vpop.permute.xlu0 %2968
      %2970 = vrot.lane.b32.xlu0 %v2500, 48
      %v2971 = vpop.permute.xlu0 %2970
      %2972 = vrot.lane.b32.xlu0 %v2502, 48
      %v2973 = vpop.permute.xlu0 %2972
      %2974 = vrot.lane.b32.xlu0 %v2504, 48
      %v2975 = vpop.permute.xlu0 %2974
      %2976 = vrot.lane.b32.xlu0 %v2506, 48
      %v2977 = vpop.permute.xlu0 %2976
      %2994 = vrot.lane.b32.xlu0 %v2508, 56
      %v2995 = vpop.permute.xlu0 %2994
      %2996 = vrot.lane.b32.xlu0 %v2510, 56
      %v2997 = vpop.permute.xlu0 %2996
      %2998 = vrot.lane.b32.xlu0 %v2512, 56
      %v2999 = vpop.permute.xlu0 %2998
      %3000 = vrot.lane.b32.xlu0 %v2514, 56
      %v3001 = vpop.permute.xlu0 %3000
      %3002 = vrot.lane.b32.xlu0 %v2516, 56
      %v3003 = vpop.permute.xlu0 %3002
      %3004 = vrot.lane.b32.xlu0 %v2518, 56
      %v3005 = vpop.permute.xlu0 %3004
      %3006 = vrot.lane.b32.xlu0 %v2520, 56
      %v3007 = vpop.permute.xlu0 %3006
      %3008 = vrot.lane.b32.xlu0 %v2522, 56
      %v3009 = vpop.permute.xlu0 %3008
      %3026 = vrot.lane.b32.xlu0 %v2524, 64
      %v3027 = vpop.permute.xlu0 %3026
      %3028 = vrot.lane.b32.xlu0 %v2526, 64
      %v3029 = vpop.permute.xlu0 %3028
      %3030 = vrot.lane.b32.xlu0 %v2528, 64
      %v3031 = vpop.permute.xlu0 %3030
      %3032 = vrot.lane.b32.xlu0 %v2530, 64
      %v3033 = vpop.permute.xlu0 %3032
      %3034 = vrot.lane.b32.xlu0 %v2532, 64
      %v3035 = vpop.permute.xlu0 %3034
      %3036 = vrot.lane.b32.xlu0 %v2534, 64
      %v3037 = vpop.permute.xlu0 %3036
      %3038 = vrot.lane.b32.xlu0 %v2536, 64
      %v3039 = vpop.permute.xlu0 %3038
      %3040 = vrot.lane.b32.xlu0 %v2538, 64
      %v3041 = vpop.permute.xlu0 %3040
      %3058 = vrot.lane.b32.xlu0 %v2540, 72
      %v3059 = vpop.permute.xlu0 %3058
      %3060 = vrot.lane.b32.xlu0 %v2542, 72
      %v3061 = vpop.permute.xlu0 %3060
      %3062 = vrot.lane.b32.xlu0 %v2544, 72
      %v3063 = vpop.permute.xlu0 %3062
      %3064 = vrot.lane.b32.xlu0 %v2546, 72
      %v3065 = vpop.permute.xlu0 %3064
      %3066 = vrot.lane.b32.xlu0 %v2548, 72
      %v3067 = vpop.permute.xlu0 %3066
      %3068 = vrot.lane.b32.xlu0 %v2550, 72
      %v3069 = vpop.permute.xlu0 %3068
      %3070 = vrot.lane.b32.xlu0 %v2552, 72
      %v3071 = vpop.permute.xlu0 %3070
      %3072 = vrot.lane.b32.xlu0 %v2554, 72
      %v3073 = vpop.permute.xlu0 %3072
      %3090 = vrot.lane.b32.xlu0 %v2555, 80
      %v3091 = vpop.permute.xlu0 %3090
      %3092 = vrot.lane.b32.xlu0 %v2557, 80
      %v3093 = vpop.permute.xlu0 %3092
      %3094 = vrot.lane.b32.xlu0 %v2559, 80
      %v3095 = vpop.permute.xlu0 %3094
      %3096 = vrot.lane.b32.xlu0 %v2561, 80
      %v3097 = vpop.permute.xlu0 %3096
      %3098 = vrot.lane.b32.xlu0 %v2563, 80
      %v3099 = vpop.permute.xlu0 %3098
      %3100 = vrot.lane.b32.xlu0 %v2565, 80
      %v3101 = vpop.permute.xlu0 %3100
      %3102 = vrot.lane.b32.xlu0 %v2567, 80
      %v3103 = vpop.permute.xlu0 %3102
      %3104 = vrot.lane.b32.xlu0 %v2569, 80
      %v3105 = vpop.permute.xlu0 %3104
      %3122 = vrot.lane.b32.xlu0 %v2571, 88
      %v3123 = vpop.permute.xlu0 %3122
      %3124 = vrot.lane.b32.xlu0 %v2573, 88
      %v3125 = vpop.permute.xlu0 %3124
      %3126 = vrot.lane.b32.xlu0 %v2575, 88
      %v3127 = vpop.permute.xlu0 %3126
      %3128 = vrot.lane.b32.xlu0 %v2577, 88
      %v3129 = vpop.permute.xlu0 %3128
      %3130 = vrot.lane.b32.xlu0 %v2579, 88
      %v3131 = vpop.permute.xlu0 %3130
      %3132 = vrot.lane.b32.xlu0 %v2581, 88
      %v3133 = vpop.permute.xlu0 %3132
      %3134 = vrot.lane.b32.xlu0 %v2583, 88
      %v3135 = vpop.permute.xlu0 %3134
      %3136 = vrot.lane.b32.xlu0 %v2585, 88
      %v3137 = vpop.permute.xlu0 %3136
      %3154 = vrot.lane.b32.xlu0 %v2587, 96
      %v3155 = vpop.permute.xlu0 %3154
      %3156 = vrot.lane.b32.xlu0 %v2589, 96
      %v3157 = vpop.permute.xlu0 %3156
      %3158 = vrot.lane.b32.xlu0 %v2591, 96
      %v3159 = vpop.permute.xlu0 %3158
      %3160 = vrot.lane.b32.xlu0 %v2593, 96
      %v3161 = vpop.permute.xlu0 %3160
      %3162 = vrot.lane.b32.xlu0 %v2595, 96
      %v3163 = vpop.permute.xlu0 %3162
      %3164 = vrot.lane.b32.xlu0 %v2597, 96
      %v3165 = vpop.permute.xlu0 %3164
      %3166 = vrot.lane.b32.xlu0 %v2599, 96
      %v3167 = vpop.permute.xlu0 %3166
      %3168 = vrot.lane.b32.xlu0 %v2601, 96
      %v3169 = vpop.permute.xlu0 %3168
      %3186 = vrot.lane.b32.xlu0 %v2603, 104
      %v3187 = vpop.permute.xlu0 %3186
      %3188 = vrot.lane.b32.xlu0 %v2605, 104
      %v3189 = vpop.permute.xlu0 %3188
      %3190 = vrot.lane.b32.xlu0 %v2607, 104
      %v3191 = vpop.permute.xlu0 %3190
      %3192 = vrot.lane.b32.xlu0 %v2609, 104
      %v3193 = vpop.permute.xlu0 %3192
      %3194 = vrot.lane.b32.xlu0 %v2611, 104
      %v3195 = vpop.permute.xlu0 %3194
      %3196 = vrot.lane.b32.xlu0 %v2613, 104
      %v3197 = vpop.permute.xlu0 %3196
      %3198 = vrot.lane.b32.xlu0 %v2615, 104
      %v3199 = vpop.permute.xlu0 %3198
      %3200 = vrot.lane.b32.xlu0 %v2617, 104
      %v3201 = vpop.permute.xlu0 %3200
      %3218 = vrot.lane.b32.xlu0 %v2619, 112
      %v3219 = vpop.permute.xlu0 %3218
      %3220 = vrot.lane.b32.xlu0 %v2621, 112
      %v3221 = vpop.permute.xlu0 %3220
      %3222 = vrot.lane.b32.xlu0 %v2623, 112
      %v3223 = vpop.permute.xlu0 %3222
      %3224 = vrot.lane.b32.xlu0 %v2625, 112
      %v3225 = vpop.permute.xlu0 %3224
      %3226 = vrot.lane.b32.xlu0 %v2627, 112
      %v3227 = vpop.permute.xlu0 %3226
      %3228 = vrot.lane.b32.xlu0 %v2629, 112
      %v3229 = vpop.permute.xlu0 %3228
      %3230 = vrot.lane.b32.xlu0 %v2631, 112
      %v3231 = vpop.permute.xlu0 %3230
      %3232 = vrot.lane.b32.xlu0 %v2633, 112
      %v3233 = vpop.permute.xlu0 %3232
      %3250 = vrot.lane.b32.xlu0 %v2635, 120
      %v3251 = vpop.permute.xlu0 %3250
      %3252 = vrot.lane.b32.xlu0 %v2637, 120
      %v3253 = vpop.permute.xlu0 %3252
      %3254 = vrot.lane.b32.xlu0 %v2639, 120
      %v3255 = vpop.permute.xlu0 %3254
      %3256 = vrot.lane.b32.xlu0 %v2641, 120
      %v3257 = vpop.permute.xlu0 %3256
      %3258 = vrot.lane.b32.xlu0 %v2643, 120
      %v3259 = vpop.permute.xlu0 %3258
      %3260 = vrot.lane.b32.xlu0 %v2645, 120
      %v3261 = vpop.permute.xlu0 %3260
      %3262 = vrot.lane.b32.xlu0 %v2647, 120
      %v3263 = vpop.permute.xlu0 %3262
      %3264 = vrot.lane.b32.xlu0 %v2649, 120
      %v3265 = vpop.permute.xlu0 %3264
      %v3274 = vsel %vm1709, %v2396, %v2803
      %v3275 = vsel %vm1709, %v2398, %v2805
      %v3276 = vsel %vm1709, %v2400, %v2807
      %v3277 = vsel %vm1709, %v2402, %v2809
      %v3278 = vsel %vm1709, %v2404, %v2811
      %v3279 = vsel %vm1709, %v2406, %v2813
      %v3280 = vsel %vm1709, %v2408, %v2815
      %v3281 = vsel %vm1709, %v2410, %v2817
      %v3282 = vsel %vm1775, %v3274, %v2835
      %v3283 = vsel %vm1775, %v3275, %v2837
      %v3284 = vsel %vm1775, %v3276, %v2839
      %v3285 = vsel %vm1775, %v3277, %v2841
      %v3286 = vsel %vm1775, %v3278, %v2843
      %v3287 = vsel %vm1775, %v3279, %v2845
      %v3288 = vsel %vm1775, %v3280, %v2847
      %v3289 = vsel %vm1775, %v3281, %v2849
      %v3290 = vsel %vm1841, %v3282, %v2867
      %v3291 = vsel %vm1841, %v3283, %v2869
      %v3292 = vsel %vm1841, %v3284, %v2871
      %v3293 = vsel %vm1841, %v3285, %v2873
      %v3294 = vsel %vm1841, %v3286, %v2875
      %v3295 = vsel %vm1841, %v3287, %v2877
      %v3296 = vsel %vm1841, %v3288, %v2879
      %v3297 = vsel %vm1841, %v3289, %v2881
      %v3298 = vsel %vm1907, %v3290, %v2899
      %v3299 = vsel %vm1907, %v3291, %v2901
      %v3300 = vsel %vm1907, %v3292, %v2903
      %v3301 = vsel %vm1907, %v3293, %v2905
      %v3302 = vsel %vm1907, %v3294, %v2907
      %v3303 = vsel %vm1907, %v3295, %v2909
      %v3304 = vsel %vm1907, %v3296, %v2911
      %v3305 = vsel %vm1907, %v3297, %v2913
      %vm3306 = vcmask 326656
      %v3307 = vsel %vm3306, %v3298, %v2931
      %v3308 = vsel %vm3306, %v3299, %v2933
      %v3309 = vsel %vm3306, %v3300, %v2935
      %v3310 = vsel %vm3306, %v3301, %v2937
      %v3311 = vsel %vm3306, %v3302, %v2939
      %v3312 = vsel %vm3306, %v3303, %v2941
      %v3313 = vsel %vm3306, %v3304, %v2943
      %v3314 = vsel %vm3306, %v3305, %v2945
      %vm3315 = vcmask 392192
      %v3316 = vsel %vm3315, %v3307, %v2963
      %v3317 = vsel %vm3315, %v3308, %v2965
      %v3318 = vsel %vm3315, %v3309, %v2967
      %v3319 = vsel %vm3315, %v3310, %v2969
      %v3320 = vsel %vm3315, %v3311, %v2971
      %v3321 = vsel %vm3315, %v3312, %v2973
      %v3322 = vsel %vm3315, %v3313, %v2975
      %v3323 = vsel %vm3315, %v3314, %v2977
      %vm3324 = vcmask 457728
      %v3325 = vsel %vm3324, %v3316, %v2995
      %v3326 = vsel %vm3324, %v3317, %v2997
      %v3327 = vsel %vm3324, %v3318, %v2999
      %v3328 = vsel %vm3324, %v3319, %v3001
      %v3329 = vsel %vm3324, %v3320, %v3003
      %v3330 = vsel %vm3324, %v3321, %v3005
      %v3331 = vsel %vm3324, %v3322, %v3007
      %v3332 = vsel %vm3324, %v3323, %v3009
      %vm3333 = vcmask 523264
      %v3334 = vsel %vm3333, %v3325, %v3027
      %v3335 = vsel %vm3333, %v3326, %v3029
      %v3336 = vsel %vm3333, %v3327, %v3031
      %v3337 = vsel %vm3333, %v3328, %v3033
      %v3338 = vsel %vm3333, %v3329, %v3035
      %v3339 = vsel %vm3333, %v3330, %v3037
      %v3340 = vsel %vm3333, %v3331, %v3039
      %v3341 = vsel %vm3333, %v3332, %v3041
      %vm3342 = vcmask 588800
      %v3343 = vsel %vm3342, %v3334, %v3059
      %v3344 = vsel %vm3342, %v3335, %v3061
      %v3345 = vsel %vm3342, %v3336, %v3063
      %v3346 = vsel %vm3342, %v3337, %v3065
      %v3347 = vsel %vm3342, %v3338, %v3067
      %v3348 = vsel %vm3342, %v3339, %v3069
      %v3349 = vsel %vm3342, %v3340, %v3071
      %v3350 = vsel %vm3342, %v3341, %v3073
      %vm3351 = vcmask 654336
      %v3352 = vsel %vm3351, %v3343, %v3091
      %v3353 = vsel %vm3351, %v3344, %v3093
      %v3354 = vsel %vm3351, %v3345, %v3095
      %v3355 = vsel %vm3351, %v3346, %v3097
      %v3356 = vsel %vm3351, %v3347, %v3099
      %v3357 = vsel %vm3351, %v3348, %v3101
      %v3358 = vsel %vm3351, %v3349, %v3103
      %v3359 = vsel %vm3351, %v3350, %v3105
      %vm3360 = vcmask 719872
      %v3361 = vsel %vm3360, %v3352, %v3123
      %v3362 = vsel %vm3360, %v3353, %v3125
      %v3363 = vsel %vm3360, %v3354, %v3127
      %v3364 = vsel %vm3360, %v3355, %v3129
      %v3365 = vsel %vm3360, %v3356, %v3131
      %v3366 = vsel %vm3360, %v3357, %v3133
      %v3367 = vsel %vm3360, %v3358, %v3135
      %v3368 = vsel %vm3360, %v3359, %v3137
      %vm3369 = vcmask 785408
      %v3370 = vsel %vm3369, %v3361, %v3155
      %v3371 = vsel %vm3369, %v3362, %v3157
      %v3372 = vsel %vm3369, %v3363, %v3159
      %v3373 = vsel %vm3369, %v3364, %v3161
      %v3374 = vsel %vm3369, %v3365, %v3163
      %v3375 = vsel %vm3369, %v3366, %v3165
      %v3376 = vsel %vm3369, %v3367, %v3167
      %v3377 = vsel %vm3369, %v3368, %v3169
      %vm3378 = vcmask 850944
      %v3379 = vsel %vm3378, %v3370, %v3187
      %v3380 = vsel %vm3378, %v3371, %v3189
      %v3381 = vsel %vm3378, %v3372, %v3191
      %v3382 = vsel %vm3378, %v3373, %v3193
      %v3383 = vsel %vm3378, %v3374, %v3195
      %v3384 = vsel %vm3378, %v3375, %v3197
      %v3385 = vsel %vm3378, %v3376, %v3199
      %v3386 = vsel %vm3378, %v3377, %v3201
      %vm3387 = vcmask 916480
      %v3388 = vsel %vm3387, %v3379, %v3219
      %v3389 = vsel %vm3387, %v3380, %v3221
      %v3390 = vsel %vm3387, %v3381, %v3223
      %v3391 = vsel %vm3387, %v3382, %v3225
      %v3392 = vsel %vm3387, %v3383, %v3227
      %v3393 = vsel %vm3387, %v3384, %v3229
      %v3394 = vsel %vm3387, %v3385, %v3231
      %v3395 = vsel %vm3387, %v3386, %v3233
      %vm3396 = vcmask 982016
      %v3397 = vsel %vm3396, %v3388, %v3251
      %v3398 = vsel %vm3396, %v3389, %v3253
      %v3399 = vsel %vm3396, %v3390, %v3255
      %v3400 = vsel %vm3396, %v3391, %v3257
      %v3401 = vsel %vm3396, %v3392, %v3259
      %v3402 = vsel %vm3396, %v3393, %v3261
      %v3403 = vsel %vm3396, %v3394, %v3263
      %v3404 = vsel %vm3396, %v3395, %v3265
      %3413 = vrot.lane.b32.xlu0 %v2667, 8
      %v3414 = vpop.permute.xlu0 %3413
      %3415 = vrot.lane.b32.xlu0 %v2669, 8
      %v3416 = vpop.permute.xlu0 %3415
      %3417 = vrot.lane.b32.xlu0 %v2671, 8
      %v3418 = vpop.permute.xlu0 %3417
      %3419 = vrot.lane.b32.xlu0 %v2673, 8
      %v3420 = vpop.permute.xlu0 %3419
      %3421 = vrot.lane.b32.xlu0 %v2675, 8
      %v3422 = vpop.permute.xlu0 %3421
      %3423 = vrot.lane.b32.xlu0 %v2677, 8
      %v3424 = vpop.permute.xlu0 %3423
      %3425 = vrot.lane.b32.xlu0 %v2679, 8
      %v3426 = vpop.permute.xlu0 %3425
      %3427 = vrot.lane.b32.xlu0 %v2681, 8
      %v3428 = vpop.permute.xlu0 %3427
      %3445 = vrot.lane.b32.xlu0 %v2683, 16
      %v3446 = vpop.permute.xlu0 %3445
      %3447 = vrot.lane.b32.xlu0 %v2685, 16
      %v3448 = vpop.permute.xlu0 %3447
      %3449 = vrot.lane.b32.xlu0 %v2687, 16
      %v3450 = vpop.permute.xlu0 %3449
      %3451 = vrot.lane.b32.xlu0 %v2689, 16
      %v3452 = vpop.permute.xlu0 %3451
      %3453 = vrot.lane.b32.xlu0 %v2691, 16
      %v3454 = vpop.permute.xlu0 %3453
      %3455 = vrot.lane.b32.xlu0 %v2693, 16
      %v3456 = vpop.permute.xlu0 %3455
      %3457 = vrot.lane.b32.xlu0 %v2695, 16
      %v3458 = vpop.permute.xlu0 %3457
      %3459 = vrot.lane.b32.xlu0 %v2697, 16
      %v3460 = vpop.permute.xlu0 %3459
      %3477 = vrot.lane.b32.xlu0 %v2699, 24
      %v3478 = vpop.permute.xlu0 %3477
      %3479 = vrot.lane.b32.xlu0 %v2701, 24
      %v3480 = vpop.permute.xlu0 %3479
      %3481 = vrot.lane.b32.xlu0 %v2703, 24
      %v3482 = vpop.permute.xlu0 %3481
      %3483 = vrot.lane.b32.xlu0 %v2705, 24
      %v3484 = vpop.permute.xlu0 %3483
      %3485 = vrot.lane.b32.xlu0 %v2707, 24
      %v3486 = vpop.permute.xlu0 %3485
      %3487 = vrot.lane.b32.xlu0 %v2709, 24
      %v3488 = vpop.permute.xlu0 %3487
      %3489 = vrot.lane.b32.xlu0 %v2711, 24
      %v3490 = vpop.permute.xlu0 %3489
      %3491 = vrot.lane.b32.xlu0 %v2713, 24
      %v3492 = vpop.permute.xlu0 %3491
      %3509 = vrot.lane.b32.xlu0 %v2715, 32
      %v3510 = vpop.permute.xlu0 %3509
      %3511 = vrot.lane.b32.xlu0 %v2717, 32
      %v3512 = vpop.permute.xlu0 %3511
      %3513 = vrot.lane.b32.xlu0 %v2719, 32
      %v3514 = vpop.permute.xlu0 %3513
      %3515 = vrot.lane.b32.xlu0 %v2721, 32
      %v3516 = vpop.permute.xlu0 %3515
      %3517 = vrot.lane.b32.xlu0 %v2723, 32
      %v3518 = vpop.permute.xlu0 %3517
      %3519 = vrot.lane.b32.xlu0 %v2725, 32
      %v3520 = vpop.permute.xlu0 %3519
      %3521 = vrot.lane.b32.xlu0 %v2727, 32
      %v3522 = vpop.permute.xlu0 %3521
      %3523 = vrot.lane.b32.xlu0 %v2729, 32
      %v3524 = vpop.permute.xlu0 %3523
      %3541 = vrot.lane.b32.xlu0 %v2731, 40
      %v3542 = vpop.permute.xlu0 %3541
      %3543 = vrot.lane.b32.xlu0 %v2733, 40
      %v3544 = vpop.permute.xlu0 %3543
      %3545 = vrot.lane.b32.xlu0 %v2735, 40
      %v3546 = vpop.permute.xlu0 %3545
      %3547 = vrot.lane.b32.xlu0 %v2737, 40
      %v3548 = vpop.permute.xlu0 %3547
      %3549 = vrot.lane.b32.xlu0 %v2739, 40
      %v3550 = vpop.permute.xlu0 %3549
      %3551 = vrot.lane.b32.xlu0 %v2741, 40
      %v3552 = vpop.permute.xlu0 %3551
      %3553 = vrot.lane.b32.xlu0 %v2743, 40
      %v3554 = vpop.permute.xlu0 %3553
      %3555 = vrot.lane.b32.xlu0 %v2745, 40
      %v3556 = vpop.permute.xlu0 %3555
      %3573 = vrot.lane.b32.xlu0 %v2747, 48
      %v3574 = vpop.permute.xlu0 %3573
      %3575 = vrot.lane.b32.xlu0 %v2749, 48
      %v3576 = vpop.permute.xlu0 %3575
      %3577 = vrot.lane.b32.xlu0 %v2751, 48
      %v3578 = vpop.permute.xlu0 %3577
      %3579 = vrot.lane.b32.xlu0 %v2753, 48
      %v3580 = vpop.permute.xlu0 %3579
      %3581 = vrot.lane.b32.xlu0 %v2755, 48
      %v3582 = vpop.permute.xlu0 %3581
      %3583 = vrot.lane.b32.xlu0 %v2757, 48
      %v3584 = vpop.permute.xlu0 %3583
      %3585 = vrot.lane.b32.xlu0 %v2759, 48
      %v3586 = vpop.permute.xlu0 %3585
      %3587 = vrot.lane.b32.xlu0 %v2761, 48
      %v3588 = vpop.permute.xlu0 %3587
      %3605 = vrot.lane.b32.xlu0 %v2763, 56
      %v3606 = vpop.permute.xlu0 %3605
      %3607 = vrot.lane.b32.xlu0 %v2765, 56
      %v3608 = vpop.permute.xlu0 %3607
      %3609 = vrot.lane.b32.xlu0 %v2767, 56
      %v3610 = vpop.permute.xlu0 %3609
      %3611 = vrot.lane.b32.xlu0 %v2769, 56
      %v3612 = vpop.permute.xlu0 %3611
      %3613 = vrot.lane.b32.xlu0 %v2771, 56
      %v3614 = vpop.permute.xlu0 %3613
      %3615 = vrot.lane.b32.xlu0 %v2773, 56
      %v3616 = vpop.permute.xlu0 %3615
      %3617 = vrot.lane.b32.xlu0 %v2775, 56
      %v3618 = vpop.permute.xlu0 %3617
      %3619 = vrot.lane.b32.xlu0 %v2777, 56
      %v3620 = vpop.permute.xlu0 %3619
      %3637 = vrot.lane.b32.xlu0 %v2779, 64
      %v3638 = vpop.permute.xlu0 %3637
      %3639 = vrot.lane.b32.xlu0 %v2781, 64
      %v3640 = vpop.permute.xlu0 %3639
      %3641 = vrot.lane.b32.xlu0 %v2783, 64
      %v3642 = vpop.permute.xlu0 %3641
      %3643 = vrot.lane.b32.xlu0 %v2785, 64
      %v3644 = vpop.permute.xlu0 %3643
      %3645 = vrot.lane.b32.xlu0 %v2787, 64
      %v3646 = vpop.permute.xlu0 %3645
      %3647 = vrot.lane.b32.xlu0 %v2789, 64
      %v3648 = vpop.permute.xlu0 %3647
      %3649 = vrot.lane.b32.xlu0 %v2791, 64
      %v3650 = vpop.permute.xlu0 %3649
      %3651 = vrot.lane.b32.xlu0 %v2793, 64
      %v3652 = vpop.permute.xlu0 %3651
      %v3661 = vsel %vm1709, %v2651, %v3414
      %v3662 = vsel %vm1709, %v2653, %v3416
      %v3663 = vsel %vm1709, %v2655, %v3418
      %v3664 = vsel %vm1709, %v2657, %v3420
      %v3665 = vsel %vm1709, %v2659, %v3422
      %v3666 = vsel %vm1709, %v2661, %v3424
      %v3667 = vsel %vm1709, %v2663, %v3426
      %v3668 = vsel %vm1709, %v2665, %v3428
      %v3669 = vsel %vm1775, %v3661, %v3446
      %v3670 = vsel %vm1775, %v3662, %v3448
      %v3671 = vsel %vm1775, %v3663, %v3450
      %v3672 = vsel %vm1775, %v3664, %v3452
      %v3673 = vsel %vm1775, %v3665, %v3454
      %v3674 = vsel %vm1775, %v3666, %v3456
      %v3675 = vsel %vm1775, %v3667, %v3458
      %v3676 = vsel %vm1775, %v3668, %v3460
      %v3677 = vsel %vm1841, %v3669, %v3478
      %v3678 = vsel %vm1841, %v3670, %v3480
      %v3679 = vsel %vm1841, %v3671, %v3482
      %v3680 = vsel %vm1841, %v3672, %v3484
      %v3681 = vsel %vm1841, %v3673, %v3486
      %v3682 = vsel %vm1841, %v3674, %v3488
      %v3683 = vsel %vm1841, %v3675, %v3490
      %v3684 = vsel %vm1841, %v3676, %v3492
      %v3685 = vsel %vm1907, %v3677, %v3510
      %v3686 = vsel %vm1907, %v3678, %v3512
      %v3687 = vsel %vm1907, %v3679, %v3514
      %v3688 = vsel %vm1907, %v3680, %v3516
      %v3689 = vsel %vm1907, %v3681, %v3518
      %v3690 = vsel %vm1907, %v3682, %v3520
      %v3691 = vsel %vm1907, %v3683, %v3522
      %v3692 = vsel %vm1907, %v3684, %v3524
      %v3693 = vsel %vm3306, %v3685, %v3542
      %v3694 = vsel %vm3306, %v3686, %v3544
      %v3695 = vsel %vm3306, %v3687, %v3546
      %v3696 = vsel %vm3306, %v3688, %v3548
      %v3697 = vsel %vm3306, %v3689, %v3550
      %v3698 = vsel %vm3306, %v3690, %v3552
      %v3699 = vsel %vm3306, %v3691, %v3554
      %v3700 = vsel %vm3306, %v3692, %v3556
      %v3701 = vsel %vm3315, %v3693, %v3574
      %v3702 = vsel %vm3315, %v3694, %v3576
      %v3703 = vsel %vm3315, %v3695, %v3578
      %v3704 = vsel %vm3315, %v3696, %v3580
      %v3705 = vsel %vm3315, %v3697, %v3582
      %v3706 = vsel %vm3315, %v3698, %v3584
      %v3707 = vsel %vm3315, %v3699, %v3586
      %v3708 = vsel %vm3315, %v3700, %v3588
      %v3709 = vsel %vm3324, %v3701, %v3606
      %v3710 = vsel %vm3324, %v3702, %v3608
      %v3711 = vsel %vm3324, %v3703, %v3610
      %v3712 = vsel %vm3324, %v3704, %v3612
      %v3713 = vsel %vm3324, %v3705, %v3614
      %v3714 = vsel %vm3324, %v3706, %v3616
      %v3715 = vsel %vm3324, %v3707, %v3618
      %v3716 = vsel %vm3324, %v3708, %v3620
      %v3717 = vsel %vm3333, %v3709, %v3638
      %v3718 = vsel %vm3333, %v3710, %v3640
      %v3719 = vsel %vm3333, %v3711, %v3642
      %v3720 = vsel %vm3333, %v3712, %v3644
      %v3721 = vsel %vm3333, %v3713, %v3646
      %v3722 = vsel %vm3333, %v3714, %v3648
      %v3723 = vsel %vm3333, %v3715, %v3650
      %v3724 = vsel %vm3333, %v3716, %v3652
      %v3725 = vld [vmem:[%s2] sm:$0xff]
      %v3726 = vld [vmem:[%s2 + $0x8] sm:$0xff]
      %v3727 = vld [vmem:[%s2 + $0x10] sm:$0xff]
      %v3728 = vld [vmem:[%s2 + $0x18] sm:$0xff]
      %v3729 = vld [vmem:[%s2 + $0x20] sm:$0xff]
      %v3730 = vld [vmem:[%s2 + $0x28] sm:$0xff]
      %v3731 = vld [vmem:[%s2 + $0x30] sm:$0xff]
      %v3732 = vld [vmem:[%s2 + $0x38] sm:$0xff]
      %v3733 = vld [vmem:[%s2 + $0x40] sm:$0xff]
      %v3734 = vld [vmem:[%s2 + $0x48] sm:$0xff]
      %v3735 = vld [vmem:[%s2 + $0x50] sm:$0xff]
      %v3736 = vld [vmem:[%s2 + $0x58] sm:$0xff]
      %v3737 = vld [vmem:[%s2 + $0x60] sm:$0xff]
      %v3738 = vld [vmem:[%s2 + $0x68] sm:$0xff]
      %v3739 = vld [vmem:[%s2 + $0x70] sm:$0xff]
      %v3740 = vld [vmem:[%s2 + $0x78] sm:$0xff]
      %v3741 = vld [vmem:[%s2 + $0x80] sm:$0xff]
      %v3742 = vld [vmem:[%s2 + $0x88] sm:$0xff]
      %v3743 = vld [vmem:[%s2 + $0x90] sm:$0xff]
      %v3744 = vld [vmem:[%s2 + $0x98] sm:$0xff]
      %v3745 = vld [vmem:[%s2 + $0xa0] sm:$0xff]
      %v3746 = vld [vmem:[%s2 + $0xa8] sm:$0xff]
      %v3747 = vld [vmem:[%s2 + $0xb0] sm:$0xff]
      %v3748 = vld [vmem:[%s2 + $0xb8] sm:$0xff]
      %v3749 = vld [vmem:[%s2 + $0xc0] sm:$0xff]
      %v3750 = vld [vmem:[%s4 + $0x1] sm:$0x1]
      %v3751 = vlaneseq
      %v3752 = vshrl.u32 %v3751, 7
      %v3753 = vsub.s32 0, %v3752
      %v3754 = vrot.slane %v3750, %v3753
      %v3756 = vsel %vm3342, %v3717, 0
      %v3759 = vsel %vm3342, %v3718, 0
      %v3762 = vsel %vm3342, %v3719, 0
      %v3765 = vsel %vm3342, %v3720, 0
      %v3768 = vsel %vm3342, %v3721, 0
      %v3771 = vsel %vm3342, %v3722, 0
      %v3774 = vsel %vm3342, %v3723, 0
      %v3777 = vsel %vm3342, %v3724, 0
      %3779 = vmatprep.subr.mxu0 0.0
      %3780 = vmatpush1.msra.mxu0 %v3725
      %3781 = vmatprep.subr.mxu0 0.0
      %3782 = vmatpush1.msra.mxu0 %v3726
      %3783 = vmatprep.subr.mxu0 0.0
      %3784 = vmatpush1.msra.mxu0 %v3727
      %3785 = vmatprep.subr.mxu0 0.0
      %3786 = vmatpush1.msra.mxu0 %v3728
      %3787 = vmatprep.subr.mxu0 0.0
      %3788 = vmatpush1.msra.mxu0 %v3729
      %3789 = vmatprep.subr.mxu0 0.0
      %3790 = vmatpush1.msra.mxu0 %v3730
      %3791 = vmatprep.subr.mxu0 0.0
      %3792 = vmatpush1.msra.mxu0 %v3731
      %3793 = vmatprep.subr.mxu0 0.0
      %3794 = vmatpush1.msra.mxu0 %v3732
      %3795 = vmatprep.subr.mxu0 0.0
      %3796 = vmatpush1.msra.mxu0 %v3733
      %3797 = vmatprep.subr.mxu0 0.0
      %3798 = vmatpush1.msra.mxu0 %v3734
      %3799 = vmatprep.subr.mxu0 0.0
      %3800 = vmatpush1.msra.mxu0 %v3735
      %3801 = vmatprep.subr.mxu0 0.0
      %3802 = vmatpush1.msra.mxu0 %v3736
      %3803 = vmatprep.subr.mxu0 0.0
      %3804 = vmatpush1.msra.mxu0 %v3737
      %3805 = vmatprep.subr.mxu0 0.0
      %3806 = vmatpush1.msra.mxu0 %v3738
      %3807 = vmatprep.subr.mxu0 0.0
      %3808 = vmatpush1.msra.mxu0 %v3739
      %3809 = vmatprep.subr.mxu0 0.0
      %3810 = vmatpush1.msra.mxu0 %v3740
      %3811 = vmatprep.subr.mxu0 0.0
      %3812 = vmatpush1.msra.mxu0 %v3741
      %3813 = vmatprep.subr.mxu0 0.0
      %3814 = vmatpush1.msra.mxu0 %v3742
      %3815 = vmatprep.subr.mxu0 0.0
      %3816 = vmatpush1.msra.mxu0 %v3743
      %3817 = vmatprep.subr.mxu0 0.0
      %3818 = vmatpush1.msra.mxu0 %v3744
      %3819 = vmatprep.subr.mxu0 0.0
      %3820 = vmatpush1.msra.mxu0 %v3745
      %3821 = vmatprep.subr.mxu0 0.0
      %3822 = vmatpush1.msra.mxu0 %v3746
      %3823 = vmatprep.subr.mxu0 0.0
      %3824 = vmatpush1.msra.mxu0 %v3747
      %3825 = vmatprep.subr.mxu0 0.0
      %3826 = vmatpush1.msra.mxu0 %v3748
      %3827 = vmatprep.subr.mxu0 0.0
      %3828 = vmatpush1.msra.mxu0 %v3749
      %3829 = vmatprep.subr.mxu0 0.0
      %3830 = vmatpush1.msra.mxu0 0.0
      %3831 = vmatprep.subr.mxu0 0.0
      %3832 = vmatpush1.msra.mxu0 0.0
      %3833 = vmatprep.subr.mxu0 0.0
      %3834 = vmatpush1.msra.mxu0 0.0
      %3835 = vmatprep.subr.mxu0 0.0
      %3836 = vmatpush1.msra.mxu0 0.0
      %3837 = vmatprep.subr.mxu0 0.0
      %3838 = vmatpush1.msra.mxu0 0.0
      %3839 = vmatprep.subr.mxu0 0.0
      %3840 = vmatpush1.msra.mxu0 0.0
      %3841 = vmatprep.subr.mxu0 0.0
      %3842 = vmatpush1.msra.mxu0 0.0
      %3843 = vmatprep.mubr.f32.mxu0 %v3756
      %3844 = vmatmul.mubr.f32.gmra.mrb[0].mxu0 %v3397
      %v3845 = vpop.f32.mrb[0].mxu0
      %v3846 = vadd.f32 %v3754, %v3845
      %v3847 = vpop.f32.mrb[0].mxu0
      %3848 = vmatprep.mubr.f32.mxu0 %v3759
      %3849 = vmatmul.mubr.f32.gmra.mrb[0].mxu0 %v3398
      %v3850 = vpop.f32.mrb[0].mxu0
      %v3851 = vadd.f32 %v3754, %v3850
      %v3852 = vpop.f32.mrb[0].mxu0
      %3853 = vmatprep.mubr.f32.mxu0 %v3762
      %3854 = vmatmul.mubr.f32.gmra.mrb[0].mxu0 %v3399
      %v3855 = vpop.f32.mrb[0].mxu0
      %v3856 = vadd.f32 %v3754, %v3855
      %v3857 = vpop.f32.mrb[0].mxu0
      %3858 = vmatprep.mubr.f32.mxu0 %v3765
      %3859 = vmatmul.mubr.f32.gmra.mrb[0].mxu0 %v3400
      %v3860 = vpop.f32.mrb[0].mxu0
      %v3861 = vadd.f32 %v3754, %v3860
      %v3862 = vpop.f32.mrb[0].mxu0
      %3863 = vmatprep.mubr.f32.mxu0 %v3768
      %3864 = vmatmul.mubr.f32.gmra.mrb[0].mxu0 %v3401
      %v3865 = vpop.f32.mrb[0].mxu0
      %v3866 = vadd.f32 %v3754, %v3865
      %v3867 = vpop.f32.mrb[0].mxu0
      %3868 = vmatprep.mubr.f32.mxu0 %v3771
      %3869 = vmatmul.mubr.f32.gmra.mrb[0].mxu0 %v3402
      %v3870 = vpop.f32.mrb[0].mxu0
      %v3871 = vadd.f32 %v3754, %v3870
      %v3872 = vpop.f32.mrb[0].mxu0
      %3873 = vmatprep.mubr.f32.mxu0 %v3774
      %3874 = vmatmul.mubr.f32.gmra.mrb[0].mxu0 %v3403
      %v3875 = vpop.f32.mrb[0].mxu0
      %v3876 = vadd.f32 %v3754, %v3875
      %v3877 = vpop.f32.mrb[0].mxu0
      %3878 = vmatprep.mubr.f32.mxu0 %v3777
      %3879 = vmatmul.mubr.f32.gmra.mrb[0].mxu0 %v3404
      %v3880 = vpop.f32.mrb[0].mxu0
      %v3881 = vadd.f32 %v3754, %v3880
      %v3882 = vpop.f32.mrb[0].mxu0
      %3883 = vdwg.mxu0
      %v3884 = vmax.f32 %v3846, 0.0
      %v3885 = vmax.f32 %v3851, 0.0
      %v3886 = vmax.f32 %v3856, 0.0
      %v3887 = vmax.f32 %v3861, 0.0
      %v3888 = vmax.f32 %v3866, 0.0
      %v3889 = vmax.f32 %v3871, 0.0
      %v3890 = vmax.f32 %v3876, 0.0
      %v3891 = vmax.f32 %v3881, 0.0
      %3892 = vst.msk [vmem:[#allocation4] sm:$0xff] %vm1709, 0.0
      %3893 = vst.msk [vmem:[#allocation4 + $0x8] sm:$0xf] %vm2310, 0.0
      %3894 = vst.msk [vmem:[#allocation4 + $0x10] sm:$0xff] %vm1709, 0.0
      %3895 = vst.msk [vmem:[#allocation4 + $0x18] sm:$0xf] %vm2310, 0.0
      %s3896 = scalar_lea.vmem [#allocation4], 160
      %3897 = vst.msk [vmem:[%s3896] sm:$0xff] %vm1709, 0.0
      %3898 = vst.msk [vmem:[%s3896 + $0x8] sm:$0xf] %vm2310, 0.0
      %3899 = vst.msk [vmem:[%s3896 + $0x10] sm:$0xff] %vm1709, 0.0
      %3900 = vst.msk [vmem:[%s3896 + $0x18] sm:$0xf] %vm2310, 0.0
      %3901 = vst.msk [vmem:[#allocation4] sm:$0x3] %vm2322, 0.0
      %3902 = vst.msk [vmem:[#allocation4 + $0x10] sm:$0x3] %vm2322, 0.0
      %3903 = vst.msk [vmem:[#allocation4 + $0x20] sm:$0x3] %vm2322, 0.0
      %3904 = vst.msk [vmem:[#allocation4 + $0x30] sm:$0x3] %vm2322, 0.0
      %3905 = vst.msk [vmem:[#allocation4 + $0x40] sm:$0x3] %vm2322, 0.0
      %3906 = vst.msk [vmem:[#allocation4 + $0x50] sm:$0x3] %vm2322, 0.0
      %3907 = vst.msk [vmem:[#allocation4 + $0x60] sm:$0x3] %vm2322, 0.0
      %3908 = vst.msk [vmem:[#allocation4 + $0x70] sm:$0x3] %vm2322, 0.0
      %3909 = vst.msk [vmem:[#allocation4 + $0x80] sm:$0x3] %vm2322, 0.0
      %3910 = vst.msk [vmem:[#allocation4 + $0x90] sm:$0x3] %vm2322, 0.0
      %3911 = vst.msk [vmem:[#allocation4 + $0xa0] sm:$0x3] %vm2322, 0.0
      %3912 = vst.msk [vmem:[#allocation4 + $0xb0] sm:$0x3] %vm2322, 0.0
      %3913 = vst.msk [vmem:[#allocation4 + $0xa] sm:$0x3] %vm2322, 0.0
      %3914 = vst.msk [vmem:[#allocation4 + $0x1a] sm:$0x3] %vm2322, 0.0
      %3915 = vst.msk [vmem:[#allocation4 + $0x2a] sm:$0x3] %vm2322, 0.0
      %3916 = vst.msk [vmem:[#allocation4 + $0x3a] sm:$0x3] %vm2322, 0.0
      %3917 = vst.msk [vmem:[#allocation4 + $0x4a] sm:$0x3] %vm2322, 0.0
      %3918 = vst.msk [vmem:[#allocation4 + $0x5a] sm:$0x3] %vm2322, 0.0
      %3919 = vst.msk [vmem:[#allocation4 + $0x6a] sm:$0x3] %vm2322, 0.0
      %3920 = vst.msk [vmem:[#allocation4 + $0x7a] sm:$0x3] %vm2322, 0.0
      %3921 = vst.msk [vmem:[#allocation4 + $0x8a] sm:$0x3] %vm2322, 0.0
      %3922 = vst.msk [vmem:[#allocation4 + $0x9a] sm:$0x3] %vm2322, 0.0
      %3923 = vst.msk [vmem:[#allocation4 + $0xaa] sm:$0x3] %vm2322, 0.0
      %3924 = vst.msk [vmem:[#allocation4 + $0xba] sm:$0x3] %vm2322, 0.0
      %s3925 = scalar_lea.vmem [#allocation4], 32
      %3926 = vst.msk [vmem:[%s3925 + $0x2] sm:$0xff] %vm1709, %v3884
      %3927 = vst.msk [vmem:[%s3925 + $0x12] sm:$0xff] %vm1709, %v3885
      %3928 = vst.msk [vmem:[%s3925 + $0x22] sm:$0xff] %vm1709, %v3886
      %3929 = vst.msk [vmem:[%s3925 + $0x32] sm:$0xff] %vm1709, %v3887
      %3930 = vst.msk [vmem:[%s3925 + $0x42] sm:$0xff] %vm1709, %v3888
      %3931 = vst.msk [vmem:[%s3925 + $0x52] sm:$0xff] %vm1709, %v3889
      %3932 = vst.msk [vmem:[%s3925 + $0x62] sm:$0xff] %vm1709, %v3890
      %3933 = vst.msk [vmem:[%s3925 + $0x72] sm:$0xff] %vm1709, %v3891
      %v3934 = vld [vmem:[#allocation4] ss:$2 sm:$0xf]
      %s3935 = scalar_lea.vmem [#allocation4], 32
      %v3936 = vld [vmem:[%s3935] ss:$2 sm:$0xf]
      %s3937 = scalar_lea.vmem [#allocation4], 64
      %v3938 = vld [vmem:[%s3937] ss:$2 sm:$0xf]
      %s3939 = scalar_lea.vmem [#allocation4], 96
      %v3940 = vld [vmem:[%s3939] ss:$2 sm:$0xf]
      %s3941 = scalar_lea.vmem [#allocation4], 1
      %v3942 = vld [vmem:[%s3941] ss:$2 sm:$0xf]
      %s3943 = scalar_lea.vmem [#allocation4], 33
      %v3944 = vld [vmem:[%s3943] ss:$2 sm:$0xf]
      %s3945 = scalar_lea.vmem [#allocation4], 65
      %v3946 = vld [vmem:[%s3945] ss:$2 sm:$0xf]
      %s3947 = scalar_lea.vmem [#allocation4], 97
      %v3948 = vld [vmem:[%s3947] ss:$2 sm:$0xf]
      %s3949 = scalar_lea.vmem [#allocation4], 2
      %v3950 = vld [vmem:[%s3949] ss:$2 sm:$0xf]
      %s3951 = scalar_lea.vmem [#allocation4], 34
      %v3952 = vld [vmem:[%s3951] ss:$2 sm:$0xf]
      %s3953 = scalar_lea.vmem [#allocation4], 66
      %v3954 = vld [vmem:[%s3953] ss:$2 sm:$0xf]
      %s3955 = scalar_lea.vmem [#allocation4], 98
      %v3956 = vld [vmem:[%s3955] ss:$2 sm:$0xf]
      %s3957 = scalar_lea.vmem [#allocation4], 3
      %v3958 = vld [vmem:[%s3957] ss:$2 sm:$0xf]
      %s3959 = scalar_lea.vmem [#allocation4], 35
      %v3960 = vld [vmem:[%s3959] ss:$2 sm:$0xf]
      %s3961 = scalar_lea.vmem [#allocation4], 67
      %v3962 = vld [vmem:[%s3961] ss:$2 sm:$0xf]
      %s3963 = scalar_lea.vmem [#allocation4], 99
      %v3964 = vld [vmem:[%s3963] ss:$2 sm:$0xf]
      %s3965 = scalar_lea.vmem [#allocation4], 4
      %v3966 = vld [vmem:[%s3965] ss:$2 sm:$0xf]
      %s3967 = scalar_lea.vmem [#allocation4], 36
      %v3968 = vld [vmem:[%s3967] ss:$2 sm:$0xf]
      %s3969 = scalar_lea.vmem [#allocation4], 68
      %v3970 = vld [vmem:[%s3969] ss:$2 sm:$0xf]
      %s3971 = scalar_lea.vmem [#allocation4], 100
      %v3972 = vld [vmem:[%s3971] ss:$2 sm:$0xf]
      %s3973 = scalar_lea.vmem [#allocation4], 16
      %v3974 = vld [vmem:[%s3973] ss:$2 sm:$0xf]
      %s3975 = scalar_lea.vmem %s3973, 32 [#allocation4]
      %v3976 = vld [vmem:[%s3975] ss:$2 sm:$0xf]
      %s3977 = scalar_lea.vmem %s3973, 64 [#allocation4]
      %v3978 = vld [vmem:[%s3977] ss:$2 sm:$0xf]
      %s3979 = scalar_lea.vmem %s3973, 96 [#allocation4]
      %v3980 = vld [vmem:[%s3979] ss:$2 sm:$0xf]
      %s3981 = scalar_lea.vmem %s3973, 1 [#allocation4]
      %v3982 = vld [vmem:[%s3981] ss:$2 sm:$0xf]
      %s3983 = scalar_lea.vmem %s3973, 33 [#allocation4]
      %v3984 = vld [vmem:[%s3983] ss:$2 sm:$0xf]
      %s3985 = scalar_lea.vmem %s3973, 65 [#allocation4]
      %v3986 = vld [vmem:[%s3985] ss:$2 sm:$0xf]
      %s3987 = scalar_lea.vmem %s3973, 97 [#allocation4]
      %v3988 = vld [vmem:[%s3987] ss:$2 sm:$0xf]
      %s3989 = scalar_lea.vmem %s3973, 2 [#allocation4]
      %v3990 = vld [vmem:[%s3989] ss:$2 sm:$0xf]
      %s3991 = scalar_lea.vmem %s3973, 34 [#allocation4]
      %v3992 = vld [vmem:[%s3991] ss:$2 sm:$0xf]
      %s3993 = scalar_lea.vmem %s3973, 66 [#allocation4]
      %v3994 = vld [vmem:[%s3993] ss:$2 sm:$0xf]
      %s3995 = scalar_lea.vmem %s3973, 98 [#allocation4]
      %v3996 = vld [vmem:[%s3995] ss:$2 sm:$0xf]
      %s3997 = scalar_lea.vmem %s3973, 3 [#allocation4]
      %v3998 = vld [vmem:[%s3997] ss:$2 sm:$0xf]
      %s3999 = scalar_lea.vmem %s3973, 35 [#allocation4]
      %v4000 = vld [vmem:[%s3999] ss:$2 sm:$0xf]
      %s4001 = scalar_lea.vmem %s3973, 67 [#allocation4]
      %v4002 = vld [vmem:[%s4001] ss:$2 sm:$0xf]
      %s4003 = scalar_lea.vmem %s3973, 99 [#allocation4]
      %v4004 = vld [vmem:[%s4003] ss:$2 sm:$0xf]
      %s4005 = scalar_lea.vmem %s3973, 4 [#allocation4]
      %v4006 = vld [vmem:[%s4005] ss:$2 sm:$0xf]
      %s4007 = scalar_lea.vmem %s3973, 36 [#allocation4]
      %v4008 = vld [vmem:[%s4007] ss:$2 sm:$0xf]
      %s4009 = scalar_lea.vmem %s3973, 68 [#allocation4]
      %v4010 = vld [vmem:[%s4009] ss:$2 sm:$0xf]
      %s4011 = scalar_lea.vmem %s3973, 100 [#allocation4]
      %v4012 = vld [vmem:[%s4011] ss:$2 sm:$0xf]
      %v4013 = vld [vmem:[%s3925] ss:$2 sm:$0xf]
      %s4014 = scalar_lea.vmem %s3925, 32 [#allocation4]
      %v4015 = vld [vmem:[%s4014] ss:$2 sm:$0xf]
      %s4016 = scalar_lea.vmem %s3925, 64 [#allocation4]
      %v4017 = vld [vmem:[%s4016] ss:$2 sm:$0xf]
      %s4018 = scalar_lea.vmem %s3925, 96 [#allocation4]
      %v4019 = vld [vmem:[%s4018] ss:$2 sm:$0xf]
      %s4020 = scalar_lea.vmem %s3925, 1 [#allocation4]
      %v4021 = vld [vmem:[%s4020] ss:$2 sm:$0xf]
      %s4022 = scalar_lea.vmem %s3925, 33 [#allocation4]
      %v4023 = vld [vmem:[%s4022] ss:$2 sm:$0xf]
      %s4024 = scalar_lea.vmem %s3925, 65 [#allocation4]
      %v4025 = vld [vmem:[%s4024] ss:$2 sm:$0xf]
      %s4026 = scalar_lea.vmem %s3925, 97 [#allocation4]
      %v4027 = vld [vmem:[%s4026] ss:$2 sm:$0xf]
      %s4028 = scalar_lea.vmem %s3925, 2 [#allocation4]
      %v4029 = vld [vmem:[%s4028] ss:$2 sm:$0xf]
      %s4030 = scalar_lea.vmem %s3925, 34 [#allocation4]
      %v4031 = vld [vmem:[%s4030] ss:$2 sm:$0xf]
      %s4032 = scalar_lea.vmem %s3925, 66 [#allocation4]
      %v4033 = vld [vmem:[%s4032] ss:$2 sm:$0xf]
      %s4034 = scalar_lea.vmem %s3925, 98 [#allocation4]
      %v4035 = vld [vmem:[%s4034] ss:$2 sm:$0xf]
      %s4036 = scalar_lea.vmem %s3925, 3 [#allocation4]
      %v4037 = vld [vmem:[%s4036] ss:$2 sm:$0xf]
      %s4038 = scalar_lea.vmem %s3925, 35 [#allocation4]
      %v4039 = vld [vmem:[%s4038] ss:$2 sm:$0xf]
      %s4040 = scalar_lea.vmem %s3925, 67 [#allocation4]
      %v4041 = vld [vmem:[%s4040] ss:$2 sm:$0xf]
      %s4042 = scalar_lea.vmem %s3925, 99 [#allocation4]
      %v4043 = vld [vmem:[%s4042] ss:$2 sm:$0xf]
      %s4044 = scalar_lea.vmem %s3925, 4 [#allocation4]
      %v4045 = vld [vmem:[%s4044] ss:$2 sm:$0xf]
      %s4046 = scalar_lea.vmem %s3925, 36 [#allocation4]
      %v4047 = vld [vmem:[%s4046] ss:$2 sm:$0xf]
      %s4048 = scalar_lea.vmem %s3925, 68 [#allocation4]
      %v4049 = vld [vmem:[%s4048] ss:$2 sm:$0xf]
      %s4050 = scalar_lea.vmem %s3925, 100 [#allocation4]
      %v4051 = vld [vmem:[%s4050] ss:$2 sm:$0xf]
      %s4052 = scalar_lea.vmem [#allocation4], 48
      %v4053 = vld [vmem:[%s4052] ss:$2 sm:$0xf]
      %s4054 = scalar_lea.vmem %s4052, 32 [#allocation4]
      %v4055 = vld [vmem:[%s4054] ss:$2 sm:$0xf]
      %s4056 = scalar_lea.vmem %s4052, 64 [#allocation4]
      %v4057 = vld [vmem:[%s4056] ss:$2 sm:$0xf]
      %s4058 = scalar_lea.vmem %s4052, 96 [#allocation4]
      %v4059 = vld [vmem:[%s4058] ss:$2 sm:$0xf]
      %s4060 = scalar_lea.vmem %s4052, 1 [#allocation4]
      %v4061 = vld [vmem:[%s4060] ss:$2 sm:$0xf]
      %s4062 = scalar_lea.vmem %s4052, 33 [#allocation4]
      %v4063 = vld [vmem:[%s4062] ss:$2 sm:$0xf]
      %s4064 = scalar_lea.vmem %s4052, 65 [#allocation4]
      %v4065 = vld [vmem:[%s4064] ss:$2 sm:$0xf]
      %s4066 = scalar_lea.vmem %s4052, 97 [#allocation4]
      %v4067 = vld [vmem:[%s4066] ss:$2 sm:$0xf]
      %s4068 = scalar_lea.vmem %s4052, 2 [#allocation4]
      %v4069 = vld [vmem:[%s4068] ss:$2 sm:$0xf]
      %s4070 = scalar_lea.vmem %s4052, 34 [#allocation4]
      %v4071 = vld [vmem:[%s4070] ss:$2 sm:$0xf]
      %s4072 = scalar_lea.vmem %s4052, 66 [#allocation4]
      %v4073 = vld [vmem:[%s4072] ss:$2 sm:$0xf]
      %s4074 = scalar_lea.vmem %s4052, 98 [#allocation4]
      %v4075 = vld [vmem:[%s4074] ss:$2 sm:$0xf]
      %s4076 = scalar_lea.vmem %s4052, 3 [#allocation4]
      %v4077 = vld [vmem:[%s4076] ss:$2 sm:$0xf]
      %s4078 = scalar_lea.vmem %s4052, 35 [#allocation4]
      %v4079 = vld [vmem:[%s4078] ss:$2 sm:$0xf]
      %s4080 = scalar_lea.vmem %s4052, 67 [#allocation4]
      %v4081 = vld [vmem:[%s4080] ss:$2 sm:$0xf]
      %s4082 = scalar_lea.vmem %s4052, 99 [#allocation4]
      %v4083 = vld [vmem:[%s4082] ss:$2 sm:$0xf]
      %s4084 = scalar_lea.vmem %s4052, 4 [#allocation4]
      %v4085 = vld [vmem:[%s4084] ss:$2 sm:$0xf]
      %s4086 = scalar_lea.vmem %s4052, 36 [#allocation4]
      %v4087 = vld [vmem:[%s4086] ss:$2 sm:$0xf]
      %s4088 = scalar_lea.vmem %s4052, 68 [#allocation4]
      %v4089 = vld [vmem:[%s4088] ss:$2 sm:$0xf]
      %s4090 = scalar_lea.vmem %s4052, 100 [#allocation4]
      %v4091 = vld [vmem:[%s4090] ss:$2 sm:$0xf]
      %s4092 = scalar_lea.vmem [#allocation4], 64
      %v4093 = vld [vmem:[%s4092] ss:$2 sm:$0xf]
      %s4094 = scalar_lea.vmem %s4092, 32 [#allocation4]
      %v4095 = vld [vmem:[%s4094] ss:$2 sm:$0xf]
      %s4096 = scalar_lea.vmem %s4092, 64 [#allocation4]
      %v4097 = vld [vmem:[%s4096] ss:$2 sm:$0xf]
      %s4098 = scalar_lea.vmem %s4092, 96 [#allocation4]
      %v4099 = vld [vmem:[%s4098] ss:$2 sm:$0xf]
      %s4100 = scalar_lea.vmem %s4092, 1 [#allocation4]
      %v4101 = vld [vmem:[%s4100] ss:$2 sm:$0xf]
      %s4102 = scalar_lea.vmem %s4092, 33 [#allocation4]
      %v4103 = vld [vmem:[%s4102] ss:$2 sm:$0xf]
      %s4104 = scalar_lea.vmem %s4092, 65 [#allocation4]
      %v4105 = vld [vmem:[%s4104] ss:$2 sm:$0xf]
      %s4106 = scalar_lea.vmem %s4092, 97 [#allocation4]
      %v4107 = vld [vmem:[%s4106] ss:$2 sm:$0xf]
      %s4108 = scalar_lea.vmem %s4092, 2 [#allocation4]
      %v4109 = vld [vmem:[%s4108] ss:$2 sm:$0xf]
      %s4110 = scalar_lea.vmem %s4092, 34 [#allocation4]
      %v4111 = vld [vmem:[%s4110] ss:$2 sm:$0xf]
      %s4112 = scalar_lea.vmem %s4092, 66 [#allocation4]
      %v4113 = vld [vmem:[%s4112] ss:$2 sm:$0xf]
      %s4114 = scalar_lea.vmem %s4092, 98 [#allocation4]
      %v4115 = vld [vmem:[%s4114] ss:$2 sm:$0xf]
      %s4116 = scalar_lea.vmem %s4092, 3 [#allocation4]
      %v4117 = vld [vmem:[%s4116] ss:$2 sm:$0xf]
      %s4118 = scalar_lea.vmem %s4092, 35 [#allocation4]
      %v4119 = vld [vmem:[%s4118] ss:$2 sm:$0xf]
      %s4120 = scalar_lea.vmem %s4092, 67 [#allocation4]
      %v4121 = vld [vmem:[%s4120] ss:$2 sm:$0xf]
      %s4122 = scalar_lea.vmem %s4092, 99 [#allocation4]
      %v4123 = vld [vmem:[%s4122] ss:$2 sm:$0xf]
      %s4124 = scalar_lea.vmem %s4092, 4 [#allocation4]
      %v4125 = vld [vmem:[%s4124] ss:$2 sm:$0xf]
      %s4126 = scalar_lea.vmem %s4092, 36 [#allocation4]
      %v4127 = vld [vmem:[%s4126] ss:$2 sm:$0xf]
      %s4128 = scalar_lea.vmem %s4092, 68 [#allocation4]
      %v4129 = vld [vmem:[%s4128] ss:$2 sm:$0xf]
      %s4130 = scalar_lea.vmem %s4092, 100 [#allocation4]
      %v4131 = vld [vmem:[%s4130] ss:$2 sm:$0xf]
      %4136 = vrot.lane.b32.xlu0 %v3942, 8
      %v4137 = vpop.permute.xlu0 %4136
      %4138 = vrot.lane.b32.xlu0 %v3944, 8
      %v4139 = vpop.permute.xlu0 %4138
      %4140 = vrot.lane.b32.xlu0 %v3946, 8
      %v4141 = vpop.permute.xlu0 %4140
      %4142 = vrot.lane.b32.xlu0 %v3948, 8
      %v4143 = vpop.permute.xlu0 %4142
      %4152 = vrot.lane.b32.xlu0 %v3950, 16
      %v4153 = vpop.permute.xlu0 %4152
      %4154 = vrot.lane.b32.xlu0 %v3952, 16
      %v4155 = vpop.permute.xlu0 %4154
      %4156 = vrot.lane.b32.xlu0 %v3954, 16
      %v4157 = vpop.permute.xlu0 %4156
      %4158 = vrot.lane.b32.xlu0 %v3956, 16
      %v4159 = vpop.permute.xlu0 %4158
      %4168 = vrot.lane.b32.xlu0 %v3958, 24
      %v4169 = vpop.permute.xlu0 %4168
      %4170 = vrot.lane.b32.xlu0 %v3960, 24
      %v4171 = vpop.permute.xlu0 %4170
      %4172 = vrot.lane.b32.xlu0 %v3962, 24
      %v4173 = vpop.permute.xlu0 %4172
      %4174 = vrot.lane.b32.xlu0 %v3964, 24
      %v4175 = vpop.permute.xlu0 %4174
      %4184 = vrot.lane.b32.xlu0 %v3966, 32
      %v4185 = vpop.permute.xlu0 %4184
      %4186 = vrot.lane.b32.xlu0 %v3968, 32
      %v4187 = vpop.permute.xlu0 %4186
      %4188 = vrot.lane.b32.xlu0 %v3970, 32
      %v4189 = vpop.permute.xlu0 %4188
      %4190 = vrot.lane.b32.xlu0 %v3972, 32
      %v4191 = vpop.permute.xlu0 %4190
      %4200 = vrot.lane.b32.xlu0 %v3974, 40
      %v4201 = vpop.permute.xlu0 %4200
      %4202 = vrot.lane.b32.xlu0 %v3976, 40
      %v4203 = vpop.permute.xlu0 %4202
      %4204 = vrot.lane.b32.xlu0 %v3978, 40
      %v4205 = vpop.permute.xlu0 %4204
      %4206 = vrot.lane.b32.xlu0 %v3980, 40
      %v4207 = vpop.permute.xlu0 %4206
      %4216 = vrot.lane.b32.xlu0 %v3982, 48
      %v4217 = vpop.permute.xlu0 %4216
      %4218 = vrot.lane.b32.xlu0 %v3984, 48
      %v4219 = vpop.permute.xlu0 %4218
      %4220 = vrot.lane.b32.xlu0 %v3986, 48
      %v4221 = vpop.permute.xlu0 %4220
      %4222 = vrot.lane.b32.xlu0 %v3988, 48
      %v4223 = vpop.permute.xlu0 %4222
      %4232 = vrot.lane.b32.xlu0 %v3990, 56
      %v4233 = vpop.permute.xlu0 %4232
      %4234 = vrot.lane.b32.xlu0 %v3992, 56
      %v4235 = vpop.permute.xlu0 %4234
      %4236 = vrot.lane.b32.xlu0 %v3994, 56
      %v4237 = vpop.permute.xlu0 %4236
      %4238 = vrot.lane.b32.xlu0 %v3996, 56
      %v4239 = vpop.permute.xlu0 %4238
      %4248 = vrot.lane.b32.xlu0 %v3998, 64
      %v4249 = vpop.permute.xlu0 %4248
      %4250 = vrot.lane.b32.xlu0 %v4000, 64
      %v4251 = vpop.permute.xlu0 %4250
      %4252 = vrot.lane.b32.xlu0 %v4002, 64
      %v4253 = vpop.permute.xlu0 %4252
      %4254 = vrot.lane.b32.xlu0 %v4004, 64
      %v4255 = vpop.permute.xlu0 %4254
      %4264 = vrot.lane.b32.xlu0 %v4006, 72
      %v4265 = vpop.permute.xlu0 %4264
      %4266 = vrot.lane.b32.xlu0 %v4008, 72
      %v4267 = vpop.permute.xlu0 %4266
      %4268 = vrot.lane.b32.xlu0 %v4010, 72
      %v4269 = vpop.permute.xlu0 %4268
      %4270 = vrot.lane.b32.xlu0 %v4012, 72
      %v4271 = vpop.permute.xlu0 %4270
      %4280 = vrot.lane.b32.xlu0 %v4013, 80
      %v4281 = vpop.permute.xlu0 %4280
      %4282 = vrot.lane.b32.xlu0 %v4015, 80
      %v4283 = vpop.permute.xlu0 %4282
      %4284 = vrot.lane.b32.xlu0 %v4017, 80
      %v4285 = vpop.permute.xlu0 %4284
      %4286 = vrot.lane.b32.xlu0 %v4019, 80
      %v4287 = vpop.permute.xlu0 %4286
      %4296 = vrot.lane.b32.xlu0 %v4021, 88
      %v4297 = vpop.permute.xlu0 %4296
      %4298 = vrot.lane.b32.xlu0 %v4023, 88
      %v4299 = vpop.permute.xlu0 %4298
      %4300 = vrot.lane.b32.xlu0 %v4025, 88
      %v4301 = vpop.permute.xlu0 %4300
      %4302 = vrot.lane.b32.xlu0 %v4027, 88
      %v4303 = vpop.permute.xlu0 %4302
      %4312 = vrot.lane.b32.xlu0 %v4029, 96
      %v4313 = vpop.permute.xlu0 %4312
      %4314 = vrot.lane.b32.xlu0 %v4031, 96
      %v4315 = vpop.permute.xlu0 %4314
      %4316 = vrot.lane.b32.xlu0 %v4033, 96
      %v4317 = vpop.permute.xlu0 %4316
      %4318 = vrot.lane.b32.xlu0 %v4035, 96
      %v4319 = vpop.permute.xlu0 %4318
      %4328 = vrot.lane.b32.xlu0 %v4037, 104
      %v4329 = vpop.permute.xlu0 %4328
      %4330 = vrot.lane.b32.xlu0 %v4039, 104
      %v4331 = vpop.permute.xlu0 %4330
      %4332 = vrot.lane.b32.xlu0 %v4041, 104
      %v4333 = vpop.permute.xlu0 %4332
      %4334 = vrot.lane.b32.xlu0 %v4043, 104
      %v4335 = vpop.permute.xlu0 %4334
      %4344 = vrot.lane.b32.xlu0 %v4045, 112
      %v4345 = vpop.permute.xlu0 %4344
      %4346 = vrot.lane.b32.xlu0 %v4047, 112
      %v4347 = vpop.permute.xlu0 %4346
      %4348 = vrot.lane.b32.xlu0 %v4049, 112
      %v4349 = vpop.permute.xlu0 %4348
      %4350 = vrot.lane.b32.xlu0 %v4051, 112
      %v4351 = vpop.permute.xlu0 %4350
      %4360 = vrot.lane.b32.xlu0 %v4053, 120
      %v4361 = vpop.permute.xlu0 %4360
      %4362 = vrot.lane.b32.xlu0 %v4055, 120
      %v4363 = vpop.permute.xlu0 %4362
      %4364 = vrot.lane.b32.xlu0 %v4057, 120
      %v4365 = vpop.permute.xlu0 %4364
      %4366 = vrot.lane.b32.xlu0 %v4059, 120
      %v4367 = vpop.permute.xlu0 %4366
      %v4372 = vsel %vm1709, %v3934, %v4137
      %v4373 = vsel %vm1709, %v3936, %v4139
      %v4374 = vsel %vm1709, %v3938, %v4141
      %v4375 = vsel %vm1709, %v3940, %v4143
      %v4376 = vsel %vm1775, %v4372, %v4153
      %v4377 = vsel %vm1775, %v4373, %v4155
      %v4378 = vsel %vm1775, %v4374, %v4157
      %v4379 = vsel %vm1775, %v4375, %v4159
      %v4380 = vsel %vm1841, %v4376, %v4169
      %v4381 = vsel %vm1841, %v4377, %v4171
      %v4382 = vsel %vm1841, %v4378, %v4173
      %v4383 = vsel %vm1841, %v4379, %v4175
      %v4384 = vsel %vm1907, %v4380, %v4185
      %v4385 = vsel %vm1907, %v4381, %v4187
      %v4386 = vsel %vm1907, %v4382, %v4189
      %v4387 = vsel %vm1907, %v4383, %v4191
      %v4388 = vsel %vm3306, %v4384, %v4201
      %v4389 = vsel %vm3306, %v4385, %v4203
      %v4390 = vsel %vm3306, %v4386, %v4205
      %v4391 = vsel %vm3306, %v4387, %v4207
      %v4392 = vsel %vm3315, %v4388, %v4217
      %v4393 = vsel %vm3315, %v4389, %v4219
      %v4394 = vsel %vm3315, %v4390, %v4221
      %v4395 = vsel %vm3315, %v4391, %v4223
      %v4396 = vsel %vm3324, %v4392, %v4233
      %v4397 = vsel %vm3324, %v4393, %v4235
      %v4398 = vsel %vm3324, %v4394, %v4237
      %v4399 = vsel %vm3324, %v4395, %v4239
      %v4400 = vsel %vm3333, %v4396, %v4249
      %v4401 = vsel %vm3333, %v4397, %v4251
      %v4402 = vsel %vm3333, %v4398, %v4253
      %v4403 = vsel %vm3333, %v4399, %v4255
      %v4404 = vsel %vm3342, %v4400, %v4265
      %v4405 = vsel %vm3342, %v4401, %v4267
      %v4406 = vsel %vm3342, %v4402, %v4269
      %v4407 = vsel %vm3342, %v4403, %v4271
      %v4408 = vsel %vm3351, %v4404, %v4281
      %v4409 = vsel %vm3351, %v4405, %v4283
      %v4410 = vsel %vm3351, %v4406, %v4285
      %v4411 = vsel %vm3351, %v4407, %v4287
      %v4412 = vsel %vm3360, %v4408, %v4297
      %v4413 = vsel %vm3360, %v4409, %v4299
      %v4414 = vsel %vm3360, %v4410, %v4301
      %v4415 = vsel %vm3360, %v4411, %v4303
      %v4416 = vsel %vm3369, %v4412, %v4313
      %v4417 = vsel %vm3369, %v4413, %v4315
      %v4418 = vsel %vm3369, %v4414, %v4317
      %v4419 = vsel %vm3369, %v4415, %v4319
      %v4420 = vsel %vm3378, %v4416, %v4329
      %v4421 = vsel %vm3378, %v4417, %v4331
      %v4422 = vsel %vm3378, %v4418, %v4333
      %v4423 = vsel %vm3378, %v4419, %v4335
      %v4424 = vsel %vm3387, %v4420, %v4345
      %v4425 = vsel %vm3387, %v4421, %v4347
      %v4426 = vsel %vm3387, %v4422, %v4349
      %v4427 = vsel %vm3387, %v4423, %v4351
      %v4428 = vsel %vm3396, %v4424, %v4361
      %v4429 = vsel %vm3396, %v4425, %v4363
      %v4430 = vsel %vm3396, %v4426, %v4365
      %v4431 = vsel %vm3396, %v4427, %v4367
      %4436 = vrot.lane.b32.xlu0 %v4069, 8
      %v4437 = vpop.permute.xlu0 %4436
      %4438 = vrot.lane.b32.xlu0 %v4071, 8
      %v4439 = vpop.permute.xlu0 %4438
      %4440 = vrot.lane.b32.xlu0 %v4073, 8
      %v4441 = vpop.permute.xlu0 %4440
      %4442 = vrot.lane.b32.xlu0 %v4075, 8
      %v4443 = vpop.permute.xlu0 %4442
      %4452 = vrot.lane.b32.xlu0 %v4077, 16
      %v4453 = vpop.permute.xlu0 %4452
      %4454 = vrot.lane.b32.xlu0 %v4079, 16
      %v4455 = vpop.permute.xlu0 %4454
      %4456 = vrot.lane.b32.xlu0 %v4081, 16
      %v4457 = vpop.permute.xlu0 %4456
      %4458 = vrot.lane.b32.xlu0 %v4083, 16
      %v4459 = vpop.permute.xlu0 %4458
      %4468 = vrot.lane.b32.xlu0 %v4085, 24
      %v4469 = vpop.permute.xlu0 %4468
      %4470 = vrot.lane.b32.xlu0 %v4087, 24
      %v4471 = vpop.permute.xlu0 %4470
      %4472 = vrot.lane.b32.xlu0 %v4089, 24
      %v4473 = vpop.permute.xlu0 %4472
      %4474 = vrot.lane.b32.xlu0 %v4091, 24
      %v4475 = vpop.permute.xlu0 %4474
      %4484 = vrot.lane.b32.xlu0 %v4093, 32
      %v4485 = vpop.permute.xlu0 %4484
      %4486 = vrot.lane.b32.xlu0 %v4095, 32
      %v4487 = vpop.permute.xlu0 %4486
      %4488 = vrot.lane.b32.xlu0 %v4097, 32
      %v4489 = vpop.permute.xlu0 %4488
      %4490 = vrot.lane.b32.xlu0 %v4099, 32
      %v4491 = vpop.permute.xlu0 %4490
      %4500 = vrot.lane.b32.xlu0 %v4101, 40
      %v4501 = vpop.permute.xlu0 %4500
      %4502 = vrot.lane.b32.xlu0 %v4103, 40
      %v4503 = vpop.permute.xlu0 %4502
      %4504 = vrot.lane.b32.xlu0 %v4105, 40
      %v4505 = vpop.permute.xlu0 %4504
      %4506 = vrot.lane.b32.xlu0 %v4107, 40
      %v4507 = vpop.permute.xlu0 %4506
      %4516 = vrot.lane.b32.xlu0 %v4109, 48
      %v4517 = vpop.permute.xlu0 %4516
      %4518 = vrot.lane.b32.xlu0 %v4111, 48
      %v4519 = vpop.permute.xlu0 %4518
      %4520 = vrot.lane.b32.xlu0 %v4113, 48
      %v4521 = vpop.permute.xlu0 %4520
      %4522 = vrot.lane.b32.xlu0 %v4115, 48
      %v4523 = vpop.permute.xlu0 %4522
      %4532 = vrot.lane.b32.xlu0 %v4117, 56
      %v4533 = vpop.permute.xlu0 %4532
      %4534 = vrot.lane.b32.xlu0 %v4119, 56
      %v4535 = vpop.permute.xlu0 %4534
      %4536 = vrot.lane.b32.xlu0 %v4121, 56
      %v4537 = vpop.permute.xlu0 %4536
      %4538 = vrot.lane.b32.xlu0 %v4123, 56
      %v4539 = vpop.permute.xlu0 %4538
      %4548 = vrot.lane.b32.xlu0 %v4125, 64
      %v4549 = vpop.permute.xlu0 %4548
      %4550 = vrot.lane.b32.xlu0 %v4127, 64
      %v4551 = vpop.permute.xlu0 %4550
      %4552 = vrot.lane.b32.xlu0 %v4129, 64
      %v4553 = vpop.permute.xlu0 %4552
      %4554 = vrot.lane.b32.xlu0 %v4131, 64
      %v4555 = vpop.permute.xlu0 %4554
      %v4560 = vsel %vm1709, %v4061, %v4437
      %v4561 = vsel %vm1709, %v4063, %v4439
      %v4562 = vsel %vm1709, %v4065, %v4441
      %v4563 = vsel %vm1709, %v4067, %v4443
      %v4564 = vsel %vm1775, %v4560, %v4453
      %v4565 = vsel %vm1775, %v4561, %v4455
      %v4566 = vsel %vm1775, %v4562, %v4457
      %v4567 = vsel %vm1775, %v4563, %v4459
      %v4568 = vsel %vm1841, %v4564, %v4469
      %v4569 = vsel %vm1841, %v4565, %v4471
      %v4570 = vsel %vm1841, %v4566, %v4473
      %v4571 = vsel %vm1841, %v4567, %v4475
      %v4572 = vsel %vm1907, %v4568, %v4485
      %v4573 = vsel %vm1907, %v4569, %v4487
      %v4574 = vsel %vm1907, %v4570, %v4489
      %v4575 = vsel %vm1907, %v4571, %v4491
      %v4576 = vsel %vm3306, %v4572, %v4501
      %v4577 = vsel %vm3306, %v4573, %v4503
      %v4578 = vsel %vm3306, %v4574, %v4505
      %v4579 = vsel %vm3306, %v4575, %v4507
      %v4580 = vsel %vm3315, %v4576, %v4517
      %v4581 = vsel %vm3315, %v4577, %v4519
      %v4582 = vsel %vm3315, %v4578, %v4521
      %v4583 = vsel %vm3315, %v4579, %v4523
      %v4584 = vsel %vm3324, %v4580, %v4533
      %v4585 = vsel %vm3324, %v4581, %v4535
      %v4586 = vsel %vm3324, %v4582, %v4537
      %v4587 = vsel %vm3324, %v4583, %v4539
      %v4588 = vsel %vm3333, %v4584, %v4549
      %v4589 = vsel %vm3333, %v4585, %v4551
      %v4590 = vsel %vm3333, %v4586, %v4553
      %v4591 = vsel %vm3333, %v4587, %v4555
      %v4600 = vcombine.low %v4428, %v4588
      %v4601 = vcombine.low %v4429, %v4589
      %v4602 = vcombine.low %v4430, %v4590
      %v4603 = vcombine.low %v4431, %v4591
      %v4604 = vld [vmem:[%s3] sm:$0xff]
      %v4605 = vld [vmem:[%s3 + $0x8] sm:$0xff]
      %v4606 = vld [vmem:[%s3 + $0x10] sm:$0xff]
      %v4607 = vld [vmem:[%s3 + $0x18] sm:$0xff]
      %v4608 = vld [vmem:[%s3 + $0x20] sm:$0xff]
      %v4609 = vld [vmem:[%s3 + $0x28] sm:$0xff]
      %v4610 = vld [vmem:[%s3 + $0x30] sm:$0xff]
      %v4611 = vld [vmem:[%s3 + $0x38] sm:$0xff]
      %v4612 = vld [vmem:[%s3 + $0x40] sm:$0xff]
      %v4613 = vld [vmem:[%s3 + $0x48] sm:$0xff]
      %v4614 = vld [vmem:[%s3 + $0x50] sm:$0xff]
      %v4615 = vld [vmem:[%s3 + $0x58] sm:$0xff]
      %v4616 = vld [vmem:[%s3 + $0x60] sm:$0xff]
      %v4617 = vld [vmem:[%s3 + $0x68] sm:$0xff]
      %v4618 = vld [vmem:[%s3 + $0x70] sm:$0xff]
      %v4619 = vld [vmem:[%s3 + $0x78] sm:$0xff]
      %v4620 = vld [vmem:[%s3 + $0x80] sm:$0xff]
      %v4621 = vld [vmem:[%s3 + $0x88] sm:$0xff]
      %v4622 = vld [vmem:[%s3 + $0x90] sm:$0xff]
      %v4623 = vld [vmem:[%s3 + $0x98] sm:$0xff]
      %v4624 = vld [vmem:[%s3 + $0xa0] sm:$0xff]
      %v4625 = vld [vmem:[%s3 + $0xa8] sm:$0xff]
      %v4626 = vld [vmem:[%s3 + $0xb0] sm:$0xff]
      %v4627 = vld [vmem:[%s3 + $0xb8] sm:$0xff]
      %v4628 = vld [vmem:[%s3 + $0xc0] sm:$0xff]
      %v4629 = vld [vmem:[%s4 + $0x2] sm:$0x1]
      %v4630 = vlaneseq
      %v4631 = vshrl.u32 %v4630, 7
      %v4632 = vsub.s32 0, %v4631
      %v4633 = vrot.slane %v4629, %v4632
      %v4634 = vcombine.low %v4600, %v4601
      %v4635 = vcombine.high %v4600, %v4601
      %v4636 = vcombine.low %v4602, %v4603
      %v4637 = vcombine.high %v4602, %v4603
      %v4640 = vsel %vm3342, %v4635, 0
      %v4642 = vsel %vm3342, %v4637, 0
      %4644 = vmatprep.subr.mxu0 0.0
      %4645 = vmatpush1.msra.mxu0 %v4604
      %4646 = vmatprep.subr.mxu0 0.0
      %4647 = vmatpush1.msra.mxu0 %v4605
      %4648 = vmatprep.subr.mxu0 0.0
      %4649 = vmatpush1.msra.mxu0 %v4606
      %4650 = vmatprep.subr.mxu0 0.0
      %4651 = vmatpush1.msra.mxu0 %v4607
      %4652 = vmatprep.subr.mxu0 0.0
      %4653 = vmatpush1.msra.mxu0 %v4608
      %4654 = vmatprep.subr.mxu0 0.0
      %4655 = vmatpush1.msra.mxu0 %v4609
      %4656 = vmatprep.subr.mxu0 0.0
      %4657 = vmatpush1.msra.mxu0 %v4610
      %4658 = vmatprep.subr.mxu0 0.0
      %4659 = vmatpush1.msra.mxu0 %v4611
      %4660 = vmatprep.subr.mxu0 0.0
      %4661 = vmatpush1.msra.mxu0 %v4612
      %4662 = vmatprep.subr.mxu0 0.0
      %4663 = vmatpush1.msra.mxu0 %v4613
      %4664 = vmatprep.subr.mxu0 0.0
      %4665 = vmatpush1.msra.mxu0 %v4614
      %4666 = vmatprep.subr.mxu0 0.0
      %4667 = vmatpush1.msra.mxu0 %v4615
      %4668 = vmatprep.subr.mxu0 0.0
      %4669 = vmatpush1.msra.mxu0 %v4616
      %4670 = vmatprep.subr.mxu0 0.0
      %4671 = vmatpush1.msra.mxu0 %v4617
      %4672 = vmatprep.subr.mxu0 0.0
      %4673 = vmatpush1.msra.mxu0 %v4618
      %4674 = vmatprep.subr.mxu0 0.0
      %4675 = vmatpush1.msra.mxu0 %v4619
      %4676 = vmatprep.subr.mxu0 0.0
      %4677 = vmatpush1.msra.mxu0 %v4620
      %4678 = vmatprep.subr.mxu0 0.0
      %4679 = vmatpush1.msra.mxu0 %v4621
      %4680 = vmatprep.subr.mxu0 0.0
      %4681 = vmatpush1.msra.mxu0 %v4622
      %4682 = vmatprep.subr.mxu0 0.0
      %4683 = vmatpush1.msra.mxu0 %v4623
      %4684 = vmatprep.subr.mxu0 0.0
      %4685 = vmatpush1.msra.mxu0 %v4624
      %4686 = vmatprep.subr.mxu0 0.0
      %4687 = vmatpush1.msra.mxu0 %v4625
      %4688 = vmatprep.subr.mxu0 0.0
      %4689 = vmatpush1.msra.mxu0 %v4626
      %4690 = vmatprep.subr.mxu0 0.0
      %4691 = vmatpush1.msra.mxu0 %v4627
      %4692 = vmatprep.subr.mxu0 0.0
      %4693 = vmatpush1.msra.mxu0 %v4628
      %4694 = vmatprep.subr.mxu0 0.0
      %4695 = vmatpush1.msra.mxu0 0.0
      %4696 = vmatprep.subr.mxu0 0.0
      %4697 = vmatpush1.msra.mxu0 0.0
      %4698 = vmatprep.subr.mxu0 0.0
      %4699 = vmatpush1.msra.mxu0 0.0
      %4700 = vmatprep.subr.mxu0 0.0
      %4701 = vmatpush1.msra.mxu0 0.0
      %4702 = vmatprep.subr.mxu0 0.0
      %4703 = vmatpush1.msra.mxu0 0.0
      %4704 = vmatprep.subr.mxu0 0.0
      %4705 = vmatpush1.msra.mxu0 0.0
      %4706 = vmatprep.subr.mxu0 0.0
      %4707 = vmatpush1.msra.mxu0 0.0
      %4708 = vmatprep.mubr.f32.mxu0 %v4640
      %4709 = vmatmul.mubr.f32.gmra.mrb[0].mxu0 %v4634
      %v4710 = vpop.f32.mrb[0].mxu0
      %v4711 = vadd.f32 %v4633, %v4710
      %v4712 = vpop.f32.mrb[0].mxu0
      %4713 = vmatprep.mubr.f32.mxu0 %v4642
      %4714 = vmatmul.mubr.f32.gmra.mrb[0].mxu0 %v4636
      %v4715 = vpop.f32.mrb[0].mxu0
      %v4716 = vadd.f32 %v4633, %v4715
      %v4717 = vpop.f32.mrb[0].mxu0
      %4718 = vdwg.mxu0
      %v4720 = vrot.slane %v4711, 1
      %4721 = vrot.lane.b32.xlu0 %v4720, 8
      %v4722 = vpop.permute.xlu0 %4721
      %v4724 = vrot.slane %v4711, 2
      %4725 = vrot.lane.b32.xlu0 %v4724, 16
      %v4726 = vpop.permute.xlu0 %4725
      %v4728 = vrot.slane %v4711, 3
      %4729 = vrot.lane.b32.xlu0 %v4728, 24
      %v4730 = vpop.permute.xlu0 %4729
      %v4732 = vrot.slane %v4711, 4
      %4733 = vrot.lane.b32.xlu0 %v4732, 32
      %v4734 = vpop.permute.xlu0 %4733
      %v4736 = vrot.slane %v4711, 5
      %4737 = vrot.lane.b32.xlu0 %v4736, 40
      %v4738 = vpop.permute.xlu0 %4737
      %v4740 = vrot.slane %v4711, 6
      %4741 = vrot.lane.b32.xlu0 %v4740, 48
      %v4742 = vpop.permute.xlu0 %4741
      %v4744 = vrot.slane %v4711, 7
      %4745 = vrot.lane.b32.xlu0 %v4744, 56
      %v4746 = vpop.permute.xlu0 %4745
      %4749 = vrot.lane.b32.xlu0 %v4716, 64
      %v4750 = vpop.permute.xlu0 %4749
      %v4752 = vrot.slane %v4716, 1
      %4753 = vrot.lane.b32.xlu0 %v4752, 72
      %v4754 = vpop.permute.xlu0 %4753
      %v4756 = vrot.slane %v4716, 2
      %4757 = vrot.lane.b32.xlu0 %v4756, 80
      %v4758 = vpop.permute.xlu0 %4757
      %v4760 = vrot.slane %v4716, 3
      %4761 = vrot.lane.b32.xlu0 %v4760, 88
      %v4762 = vpop.permute.xlu0 %4761
      %v4764 = vrot.slane %v4716, 4
      %4765 = vrot.lane.b32.xlu0 %v4764, 96
      %v4766 = vpop.permute.xlu0 %4765
      %v4768 = vrot.slane %v4716, 5
      %4769 = vrot.lane.b32.xlu0 %v4768, 104
      %v4770 = vpop.permute.xlu0 %4769
      %v4772 = vrot.slane %v4716, 6
      %4773 = vrot.lane.b32.xlu0 %v4772, 112
      %v4774 = vpop.permute.xlu0 %4773
      %v4776 = vrot.slane %v4716, 7
      %4777 = vrot.lane.b32.xlu0 %v4776, 120
      %v4778 = vpop.permute.xlu0 %4777
      %v4780 = vsel %vm1709, %v4711, %v4722
      %v4781 = vsel %vm1775, %v4780, %v4726
      %v4782 = vsel %vm1841, %v4781, %v4730
      %v4783 = vsel %vm1907, %v4782, %v4734
      %v4784 = vsel %vm3306, %v4783, %v4738
      %v4785 = vsel %vm3315, %v4784, %v4742
      %v4786 = vsel %vm3324, %v4785, %v4746
      %v4787 = vsel %vm3333, %v4786, %v4750
      %v4788 = vsel %vm3342, %v4787, %v4754
      %v4789 = vsel %vm3351, %v4788, %v4758
      %v4790 = vsel %vm3360, %v4789, %v4762
      %v4791 = vsel %vm3369, %v4790, %v4766
      %v4792 = vsel %vm3378, %v4791, %v4770
      %v4793 = vsel %vm3387, %v4792, %v4774
      %v4794 = vsel %vm3396, %v4793, %v4778
      %4795 = vst [vmem:[%s220] sm:$0x1] %v4794
      %p4796 = scmp.lt.s32.totalorder %s16, 1
      %s4797 = scalar_select %p4796, %s16, 1
      %s4798 = scalar_lea.vmem %s5, %s4797
      // Predicated region
      $region41: #{analysis_prior_net.1} parent=39 // pred_check
        %p4799 = pneg %p144
      $region42: #{analysis_prior_net.1} parent=39 // pred_check_branch
        %4801 = sbr.rel (%p4799) target = $region44
      $region43: #{analysis_prior_net.1} parent=39 // pred_region
        _
      $region44: #{analysis_prior_net.1} parent=39 // pred_fallthru
        _
    $region40: #{analysis_prior_net.1} parent=5 // pred_fallthru
      _
    %p4802 = scmp.le.s32.totalorder 2, %s11
    // Predicated region
    $region45: #{analysis_prior_net.1} parent=5 // pred_check
      %p4803 = pneg %p4802
    $region46: #{analysis_prior_net.1} parent=5 // pred_check_branch
      %4805 = sbr.rel (%p4803) target = $region48
    $region47: #{analysis_prior_net.1} parent=5 // pred_region
      %s4806 = ssub.s32 %s11, 2
      // Predicated region
      $region49: #{analysis_prior_net.1} parent=47 // pred_check
        %p4807 = pneg %p150
      $region50: #{analysis_prior_net.1} parent=47 // pred_check_branch
        %4809 = sbr.rel (%p4807) target = $region52
      $region51: #{analysis_prior_net.1} parent=47 // pred_region
        %p4810 = scmp.lt.s32.totalorder %s17, 1
        %s4811 = scalar_select %p4810, %s17, 1
        %s4812 = scalar_lea.vmem %s5, %s4811
      $region52: #{analysis_prior_net.1} parent=47 // pred_fallthru
        _
    $region48: #{analysis_prior_net.1} parent=5 // pred_fallthru
      _
  $region6: #{analysis_prior_net.1} parent=0 // loop_footer
    %s15 = sadd.s32 1, %s11
  $region7: #{analysis_prior_net.1} parent=0 // loop_footer_branch
    %10 = sbr.rel target = $region3
  $region8: #{analysis_prior_net.1} parent=0 // loop_exit
    _

</llo_original>
